<compile_context>
chip_gen: v7x
topology: tpu7x:2x2x1
jax: 0.10.0
libtpu: 0.0.40
codegen_flags: <defaults>
</compile_context>

<pallas_src>
import functools

import jax
import jax.numpy as jnp
from jax.experimental import pallas as pl
from jax.experimental.pallas import tpu as pltpu

LEAKY_SLOPE = 0.01              # torch.nn.LeakyReLU default negative_slope
VMEM_LIMIT = 64 * 1024 * 1024   # explicit scoped-VMEM budget (v5e default is 16 MiB)


def _pick_tile(dim, prefs, align):
    """First preferred tile that is `align`-aligned and divides `dim`; otherwise
    the full dimension (full-array blocks are always legal)."""
    for p in prefs:
        if p <= dim and p % align == 0 and dim % p == 0:
            return p
    return dim


def _leaky(y, slope):
    return jnp.where(y > 0, y, slope * y)


# ---------------------------------------------------------------------------
# Conv (as im2col matmul) + bias + LeakyReLU, BOTH branches per tile.
# Patches are streamed once; weights/bias stay resident (constant block index).
# ---------------------------------------------------------------------------
def _conv_kernel(p_ref, w_ref, b_ref, o_ref, *, slope, n_branch):
    p = p_ref[...]                                           # (tm, 48) bf16
    for g in range(n_branch):                                # static unroll
        y = jnp.dot(p, w_ref[g], preferred_element_type=jnp.float32) + b_ref[g]
        o_ref[g] = _leaky(y, slope).astype(o_ref.dtype)


def conv_both_branches(patches, conv_w, conv_b, *, out_dtype=jnp.bfloat16):
    """patches:(M,Kc) shared, conv_w:(G,Kc,Co), conv_b:(G,Co) -> (G,M,Co)."""
    M, Kc = patches.shape
    G, _, Co = conv_w.shape
    tm = _pick_tile(M, (8192, 4096, 2048, 1024, 512, 256, 128), 16)
    b3 = conv_b.reshape(G, 1, Co).astype(jnp.float32)
    kern = functools.partial(_conv_kernel, slope=LEAKY_SLOPE, n_branch=G)
    return pl.pallas_call(
        kern,
        grid=(M // tm,),
        in_specs=[
            pl.BlockSpec((tm, Kc), lambda i: (i, 0)),
            pl.BlockSpec((G, Kc, Co), lambda i: (0, 0, 0)),
            pl.BlockSpec((G, 1, Co), lambda i: (0, 0, 0)),
        ],
        out_specs=pl.BlockSpec((G, tm, Co), lambda i: (0, i, 0)),
        out_shape=jax.ShapeDtypeStruct((G, M, Co), out_dtype),
        compiler_params=pltpu.CompilerParams(
            dimension_semantics=("parallel",),
            vmem_limit_bytes=VMEM_LIMIT),
    )(patches, conv_w, b3)


# ---------------------------------------------------------------------------
# Tiled, branch-batched fused linear:  out[g] = act(x[g] @ w[g] + b[g])
# ---------------------------------------------------------------------------
def _bmm_acc_kernel(x_ref, w_ref, b_ref, o_ref, acc_ref, *, slope):
    k = pl.program_id(3)

    @pl.when(k == 0)
    def _init():
        acc_ref[...] = jnp.zeros_like(acc_ref)

    acc_ref[...] += jnp.dot(x_ref[0], w_ref[0],
                            preferred_element_type=jnp.float32)

    @pl.when(k == pl.num_programs(3) - 1)
    def _finalize():
        y = acc_ref[...] + b_ref[0]
        if slope is not None:
            y = _leaky(y, slope)
        o_ref[0] = y.astype(o_ref.dtype)


def _bmm_single_kernel(x_ref, w_ref, b_ref, o_ref, *, slope):
    # Single reduction step: no accumulator scratch, no predicated branches.
    y = jnp.dot(x_ref[0], w_ref[0], preferred_element_type=jnp.float32) + b_ref[0]
    if slope is not None:
        y = _leaky(y, slope)
    o_ref[0] = y.astype(o_ref.dtype)


def batched_linear(x, w, b, *, slope=None, out_dtype=jnp.bfloat16,
                   tm_cap=1024,
                   tk_prefs=(4096, 2048, 1024, 512, 256, 128),
                   tn_prefs=(512, 256, 128)):
    """x:(G,M,K), w:(G,K,N), b:(G,N) -> (G,M,N).

    * tm = full M whenever M <= tm_cap, so each branch's (possibly 205 MB)
      weight matrix is streamed exactly once -- the main memory-bound win.
    * Large K tile (2048-4096) cuts grid-step overhead ~8x on the deep
      reduction; tiles stay well inside v7x's 64 MiB VMEM.
    * G is the leading "parallel" axis: v7x megacore takes one branch per core.
    """
    G, M, K = x.shape
    _, Kw, N = w.shape
    assert Kw == K, (Kw, K)

    if M <= tm_cap:
        tm = M                                       # no weight re-streaming
    else:
        tm = _pick_tile(M, (1024, 512, 256, 128, 64, 32, 16), 16)
    tn = _pick_tile(N, tn_prefs, 128)
    tk = _pick_tile(K, tk_prefs, 128)

    b3 = b.reshape(G, 1, N).astype(jnp.float32)
    n_m, n_n, n_k = M // tm, N // tn, K // tk

    flops = 2 * G * M * N * K
    bytes_accessed = int(x.size) * x.dtype.itemsize * n_n \
        + int(w.size) * w.dtype.itemsize * n_m \
        + int(b3.size) * 4 + G * M * N * jnp.dtype(out_dtype).itemsize
    cost = pl.CostEstimate(flops=flops, transcendentals=0,
                           bytes_accessed=int(bytes_accessed))

    if n_k == 1:
        return pl.pallas_call(
            functools.partial(_bmm_single_kernel, slope=slope),
            grid=(G, n_m, n_n),
            in_specs=[
                pl.BlockSpec((1, tm, tk), lambda g, i, j: (g, i, 0)),
                pl.BlockSpec((1, tk, tn), lambda g, i, j: (g, 0, j)),
                pl.BlockSpec((1, 1, tn), lambda g, i, j: (g, 0, j)),
            ],
            out_specs=pl.BlockSpec((1, tm, tn), lambda g, i, j: (g, i, j)),
            out_shape=jax.ShapeDtypeStruct((G, M, N), out_dtype),
            compiler_params=pltpu.CompilerParams(
                dimension_semantics=("parallel", "parallel", "parallel"),
                vmem_limit_bytes=VMEM_LIMIT),
            cost_estimate=cost,
        )(x, w, b3)

    return pl.pallas_call(
        functools.partial(_bmm_acc_kernel, slope=slope),
        grid=(G, n_m, n_n, n_k),
        in_specs=[
            pl.BlockSpec((1, tm, tk), lambda g, i, j, k: (g, i, k)),
            pl.BlockSpec((1, tk, tn), lambda g, i, j, k: (g, k, j)),
            pl.BlockSpec((1, 1, tn), lambda g, i, j, k: (g, 0, j)),
        ],
        out_specs=pl.BlockSpec((1, tm, tn), lambda g, i, j, k: (g, i, j)),
        out_shape=jax.ShapeDtypeStruct((G, M, N), out_dtype),
        scratch_shapes=[pltpu.VMEM((tm, tn), jnp.float32)],
        compiler_params=pltpu.CompilerParams(
            dimension_semantics=("parallel", "parallel", "parallel", "arbitrary"),
            vmem_limit_bytes=VMEM_LIMIT),
        cost_estimate=cost,
    )(x, w, b3)


# ---------------------------------------------------------------------------
# Fused tail MLP (both branches in one kernel):
#   q[g] = ( leaky( leaky(h[g]@w2h[g] + u@w2u[g] + b2[g]) @ w3[g] + b3[g] )
#            @ w4[g] + b4[g] )
# The 512+A concat is replaced by the split dot h@w2[:512] + u@w2[512:].
# ---------------------------------------------------------------------------
def _tail_kernel(h_ref, u_ref, w2h_ref, w2u_ref, b2_ref, w3_ref, b3_ref,
                 w4_ref, b4_ref, q_ref, *, slope):
    f32 = jnp.float32
    h = h_ref[0].astype(f32)                      # (B, 512)
    u = u_ref[...].astype(f32)                    # (B, A)
    y = jnp.dot(h, w2h_ref[0], preferred_element_type=f32)
    y = y + jnp.dot(u, w2u_ref[0], preferred_element_type=f32) + b2_ref[0]
    y = _leaky(y, slope)
    y = jnp.dot(y, w3_ref[0], preferred_element_type=f32) + b3_ref[0]
    y = _leaky(y, slope)
    q_ref[0] = jnp.dot(y, w4_ref[0], preferred_element_type=f32) + b4_ref[0]


def fused_tail(h, u, p):
    G, B, Hd = h.shape
    A = u.shape[1]
    kern = functools.partial(_tail_kernel, slope=LEAKY_SLOPE)
    per_branch = lambda shape: pl.BlockSpec(shape, lambda g: (g, 0, 0))
    return pl.pallas_call(
        kern,
        grid=(G,),
        in_specs=[
            per_branch((1, B, Hd)),                          # h
            pl.BlockSpec((B, A), lambda g: (0, 0)),          # u (shared)
            per_branch((1, Hd, 40)),                         # w2h
            per_branch((1, A, 40)),                          # w2u
            per_branch((1, 1, 40)),                          # b2
            per_branch((1, 40, 30)),                         # w3
            per_branch((1, 1, 30)),                          # b3
            per_branch((1, 30, 1)),                          # w4
            per_branch((1, 1, 1)),                           # b4
        ],
        out_specs=pl.BlockSpec((1, B, 1), lambda g: (g, 0, 0)),
        out_shape=jax.ShapeDtypeStruct((G, B, 1), jnp.float32),
        compiler_params=pltpu.CompilerParams(dimension_semantics=("parallel",)),
    )(h, u, p["w2h"], p["w2u"], p["b2"], p["w3"], p["b3"], p["w4"], p["b4"])


# ---------------------------------------------------------------------------
# im2col for Conv2d(3, 16, kernel=4, stride=2, padding=1), built directly in
# NHWC row order (b, ho, wo) with (kh, kw, ci) reduction order.
# ---------------------------------------------------------------------------
def im2col_nhwc(x):
    B, C, H, W = x.shape
    Ho, Wo = H // 2, W // 2
    xn = jnp.transpose(x, (0, 2, 3, 1))                       # NHWC
    xp = jnp.pad(xn, ((0, 0), (1, 1), (1, 1), (0, 0)))
    cols = []
    for kh in range(4):
        for kw in range(4):
            cols.append(xp[:, kh:kh + 2 * Ho:2, kw:kw + 2 * Wo:2, :])
    p = jnp.concatenate(cols, axis=-1)                        # (B,Ho,Wo, 16*C)
    return p.reshape(B * Ho * Wo, 16 * C)


# ---------------------------------------------------------------------------
# Critic forward (both Q heads)
# ---------------------------------------------------------------------------
def critic_forward(x, u, params):
    B = x.shape[0]
    # TODO(synk): fuse the im2col patch extraction into the conv pallas_call via
    #             strided index_map windows instead of materializing it in HBM.
    patches = im2col_nhwc(x.astype(jnp.bfloat16))             # (B*Ho*Wo, 48) bf16

    # Conv + LeakyReLU for BOTH branches per tile (patches streamed once).
    conv = conv_both_branches(patches, params["conv_w"], params["conv_b"])

    # Flatten stays in (h, w, c) order -- matched by w1's row permutation at init.
    # TODO(synk): the 16-lane conv output is lane-sparse; fusing the conv into the
    #             w1 kernel (producing each K-tile of feat in VMEM) would remove
    #             this intermediate HBM round-trip entirely.
    feat = conv.reshape(2, B, -1)                             # (2, B, flat_dim)

    # Dominant layer: Linear(flat_dim, 512) + LeakyReLU.  Full-batch M tile so
    # each branch's weight is streamed exactly once; K tiled at 2048-4096.
    # TODO(synk): int8 (v5e/v6e) or fp8 (v7x) weight compression of w1 would
    #             halve the dominant HBM stream; kept bf16 here for parity.
    h = batched_linear(feat, params["w1"], params["b1"],
                       slope=LEAKY_SLOPE)                     # (2, B, 512) bf16

    # Fused tiny tail: cat(u) -> 40 -> 30 -> 1 for both branches in one kernel.
    q = fused_tail(h, u, params)                              # (2, B, 1) f32
    return q[0], q[1]


# ---------------------------------------------------------------------------
# Parameter init (PyTorch-style uniform(-1/sqrt(fan_in), +)), converted ONCE at
# init time into the branch-stacked, kernel-friendly layouts.
# ---------------------------------------------------------------------------
def init_params(key, Ho, Wo, action_dim):
    flat_dim = Ho * Wo * 16

    def unif(k, shape, fan_in):
        bound = 1.0 / float(fan_in) ** 0.5
        return jax.random.uniform(k, shape, jnp.float32, -bound, bound)

    def branch(k):
        ks = jax.random.split(k, 10)
        conv_fan = 3 * 4 * 4
        return dict(
            conv_w=unif(ks[0], (16, 3, 4, 4), conv_fan),           # torch layout
            conv_b=unif(ks[1], (16,), conv_fan),
            w1=unif(ks[2], (512, flat_dim), flat_dim),             # torch (out,in)
            b1=unif(ks[3], (512,), flat_dim),
            w2=unif(ks[4], (40, 512 + action_dim), 512 + action_dim),
            b2=unif(ks[5], (40,), 512 + action_dim),
            w3=unif(ks[6], (30, 40), 40),
            b3=unif(ks[7], (30,), 40),
            w4=unif(ks[8], (1, 30), 30),
            b4=unif(ks[9], (1,), 30),
        )

    k1, k2 = jax.random.split(key)
    p1, p2 = branch(k1), branch(k2)
    stack = lambda name: jnp.stack([p1[name], p2[name]], 0)

    # Conv weight: torch (Co,Ci,KH,KW) -> (KH,KW,Ci,Co) to match the NHWC
    # im2col's (kh, kw, ci) reduction ordering.
    conv_w = stack("conv_w").transpose(0, 3, 4, 2, 1).reshape(2, 48, 16)

    # w1: torch (512, flat) with (c,h,w) flatten -> (flat, 512) with (h,w,c)
    # flatten (one-time offline row permutation; removes NCHW transposes).
    w1 = (stack("w1").reshape(2, 512, 16, Ho, Wo)
          .transpose(0, 3, 4, 2, 1).reshape(2, flat_dim, 512))

    w2 = stack("w2")                                           # (2, 40, 512+A)
    return dict(
        conv_w=conv_w.astype(jnp.bfloat16),
        conv_b=stack("conv_b"),
        w1=w1.astype(jnp.bfloat16),
        b1=stack("b1"),
        w2h=w2[:, :, :512].transpose(0, 2, 1),                 # (2, 512, 40)
        w2u=w2[:, :, 512:].transpose(0, 2, 1),                 # (2, A, 40)
        b2=stack("b2").reshape(2, 1, 40),
        w3=stack("w3").transpose(0, 2, 1),                     # (2, 40, 30)
        b3=stack("b3").reshape(2, 1, 30),
        w4=stack("w4").transpose(0, 2, 1),                     # (2, 30, 1)
        b4=stack("b4").reshape(2, 1, 1),
    )


if __name__ == "__main__":
    B, C, H, W = 2, 3, 16, 16      # small image (module's full size is 3x224x224)
    action_dim = 4
    Ho, Wo = H // 2, W // 2

    root = jax.random.PRNGKey(0)
    kx, ku, kp = jax.random.split(root, 3)

    x = jax.random.normal(kx, (B, C, H, W), jnp.float32)        # NCHW image state
    u = jax.random.normal(ku, (B, action_dim), jnp.float32)     # action

    params = init_params(kp, Ho, Wo, action_dim)

    q1, q2 = jax.jit(critic_forward)(x, u, params)
    jax.block_until_ready((q1, q2))

    assert q1.shape == (B, 1) and q2.shape == (B, 1)
    assert q1.dtype == jnp.float32 and q2.dtype == jnp.float32
    print("KERNEL_OK")
</pallas_src>

<mosaic_0001>
module attributes {stable_mosaic.version = 11 : i64} {
  func.func @_conv_kernel(%arg0: i32, %arg1: memref<128x48xbf16, #tpu.memory_space<vmem>>, %arg2: memref<2x48x16xbf16, #tpu.memory_space<vmem>>, %arg3: memref<2x1x16xf32, #tpu.memory_space<vmem>>, %arg4: memref<2x128x16xbf16, #tpu.memory_space<vmem>>) attributes {dimension_semantics = [#tpu.dimension_semantics<parallel>], iteration_bounds = array<i64: 1>, scalar_prefetch = 0 : i64, scratch_operands = 0 : i64, tpu.core_type = #tpu.core_type<tc>, window_params = [{transform_indices = @transform_0, window_bounds = array<i64: 128, 48>}, {pipeline_mode = #tpu.pipeline_mode<synchronous>, transform_indices = @transform_1, window_bounds = array<i64: 2, 48, 16>}, {pipeline_mode = #tpu.pipeline_mode<synchronous>, transform_indices = @transform_2, window_bounds = array<i64: 2, 1, 16>}, {transform_indices = @transform_3, window_bounds = array<i64: 2, 128, 16>}]} {
    %c0 = arith.constant 0 : index
    %c0_0 = arith.constant 0 : index
    %0 = vector.load %arg1[%c0, %c0_0] : memref<128x48xbf16, #tpu.memory_space<vmem>>, vector<128x48xbf16>
    %c0_1 = arith.constant 0 : index
    %c0_2 = arith.constant 0 : index
    %c0_3 = arith.constant 0 : index
    %1 = vector.load %arg2[%c0_1, %c0_2, %c0_3] : memref<2x48x16xbf16, #tpu.memory_space<vmem>>, vector<1x48x16xbf16>
    %2 = vector.shape_cast %1 : vector<1x48x16xbf16> to vector<48x16xbf16>
    %cst = arith.constant dense<0.000000e+00> : vector<128x16xf32>
    %3 = tpu.matmul %0, %2, %cst {dimension_numbers = #tpu.dot_dimension_numbers<[1], [0], [0], [1], [0, 0, 1, 1], [], []>} : vector<128x48xbf16>, vector<48x16xbf16>, vector<128x16xf32> -> vector<128x16xf32>
    %c0_4 = arith.constant 0 : index
    %c0_5 = arith.constant 0 : index
    %c0_6 = arith.constant 0 : index
    %4 = vector.load %arg3[%c0_4, %c0_5, %c0_6] : memref<2x1x16xf32, #tpu.memory_space<vmem>>, vector<1x1x16xf32>
    %5 = vector.shape_cast %4 : vector<1x1x16xf32> to vector<1x16xf32>
    %6 = vector.broadcast %5 : vector<1x16xf32> to vector<128x16xf32>
    %7 = arith.addf %3, %6 : vector<128x16xf32>
    %cst_7 = arith.constant 0.000000e+00 : f32
    %8 = vector.broadcast %cst_7 : f32 to vector<128x16xf32>
    %9 = arith.cmpf ogt, %7, %8 : vector<128x16xf32>
    %cst_8 = arith.constant 0.00999999977 : f32
    %10 = vector.broadcast %cst_8 : f32 to vector<128x16xf32>
    %11 = arith.mulf %10, %7 : vector<128x16xf32>
    %12 = arith.select %9, %7, %11 : vector<128x16xi1>, vector<128x16xf32>
    %13 = arith.truncf %12 : vector<128x16xf32> to vector<128x16xbf16>
    %c0_9 = arith.constant 0 : index
    %c0_10 = arith.constant 0 : index
    %c0_11 = arith.constant 0 : index
    %14 = vector.load %arg4[%c0_9, %c0_10, %c0_11] : memref<2x128x16xbf16, #tpu.memory_space<vmem>>, vector<1x128x16xbf16>
    %15 = vector.shape_cast %14 : vector<1x128x16xbf16> to vector<128x16xbf16>
    %16 = vector.shape_cast %13 : vector<128x16xbf16> to vector<1x128x16xbf16>
    tpu.vector_store %arg4[%c0_9, %c0_10, %c0_11], %16 {strides = array<i32>} : memref<2x128x16xbf16, #tpu.memory_space<vmem>>, vector<1x128x16xbf16>,
    %c1 = arith.constant 1 : index
    %c0_12 = arith.constant 0 : index
    %c0_13 = arith.constant 0 : index
    %17 = vector.load %arg2[%c1, %c0_12, %c0_13] : memref<2x48x16xbf16, #tpu.memory_space<vmem>>, vector<1x48x16xbf16>
    %18 = vector.shape_cast %17 : vector<1x48x16xbf16> to vector<48x16xbf16>
    %cst_14 = arith.constant dense<0.000000e+00> : vector<128x16xf32>
    %19 = tpu.matmul %0, %18, %cst_14 {dimension_numbers = #tpu.dot_dimension_numbers<[1], [0], [0], [1], [0, 0, 1, 1], [], []>} : vector<128x48xbf16>, vector<48x16xbf16>, vector<128x16xf32> -> vector<128x16xf32>
    %c1_15 = arith.constant 1 : index
    %c0_16 = arith.constant 0 : index
    %c0_17 = arith.constant 0 : index
    %20 = vector.load %arg3[%c1_15, %c0_16, %c0_17] : memref<2x1x16xf32, #tpu.memory_space<vmem>>, vector<1x1x16xf32>
    %21 = vector.shape_cast %20 : vector<1x1x16xf32> to vector<1x16xf32>
    %22 = vector.broadcast %21 : vector<1x16xf32> to vector<128x16xf32>
    %23 = arith.addf %19, %22 : vector<128x16xf32>
    %cst_18 = arith.constant 0.000000e+00 : f32
    %24 = vector.broadcast %cst_18 : f32 to vector<128x16xf32>
    %25 = arith.cmpf ogt, %23, %24 : vector<128x16xf32>
    %cst_19 = arith.constant 0.00999999977 : f32
    %26 = vector.broadcast %cst_19 : f32 to vector<128x16xf32>
    %27 = arith.mulf %26, %23 : vector<128x16xf32>
    %28 = arith.select %25, %23, %27 : vector<128x16xi1>, vector<128x16xf32>
    %29 = arith.truncf %28 : vector<128x16xf32> to vector<128x16xbf16>
    %c1_20 = arith.constant 1 : index
    %c0_21 = arith.constant 0 : index
    %c0_22 = arith.constant 0 : index
    %30 = vector.load %arg4[%c1_20, %c0_21, %c0_22] : memref<2x128x16xbf16, #tpu.memory_space<vmem>>, vector<1x128x16xbf16>
    %31 = vector.shape_cast %30 : vector<1x128x16xbf16> to vector<128x16xbf16>
    %32 = vector.shape_cast %29 : vector<128x16xbf16> to vector<1x128x16xbf16>
    tpu.vector_store %arg4[%c1_20, %c0_21, %c0_22], %32 {strides = array<i32>} : memref<2x128x16xbf16, #tpu.memory_space<vmem>>, vector<1x128x16xbf16>,
    return
  }
  func.func @transform_0(%arg0: i32) -> (i32, i32) {
    %c0_i32 = arith.constant 0 : i32
    %c0_i32_0 = arith.constant 0 : i32
    return %arg0, %c0_i32 : i32, i32
  }
  func.func @transform_1(%arg0: i32) -> (i32, i32, i32) {
    %c0_i32 = arith.constant 0 : i32
    %c0_i32_0 = arith.constant 0 : i32
    %c0_i32_1 = arith.constant 0 : i32
    %c0_i32_2 = arith.constant 0 : i32
    return %c0_i32, %c0_i32_0, %c0_i32_1 : i32, i32, i32
  }
  func.func @transform_2(%arg0: i32) -> (i32, i32, i32) {
    %c0_i32 = arith.constant 0 : i32
    %c0_i32_0 = arith.constant 0 : i32
    %c0_i32_1 = arith.constant 0 : i32
    %c0_i32_2 = arith.constant 0 : i32
    return %c0_i32, %c0_i32_0, %c0_i32_1 : i32, i32, i32
  }
  func.func @transform_3(%arg0: i32) -> (i32, i32, i32) {
    %c0_i32 = arith.constant 0 : i32
    %c0_i32_0 = arith.constant 0 : i32
    %c0_i32_1 = arith.constant 0 : i32
    return %c0_i32, %arg0, %c0_i32_0 : i32, i32, i32
  }
}

module attributes {stable_mosaic.version = 11 : i64} {
  func.func @_bmm_single_kernel(%arg0: i32, %arg1: i32, %arg2: i32, %arg3: memref<1x2x1024xbf16, #tpu.memory_space<vmem>>, %arg4: memref<1x1024x512xbf16, #tpu.memory_space<vmem>>, %arg5: memref<1x1x512xf32, #tpu.memory_space<vmem>>, %arg6: memref<1x2x512xbf16, #tpu.memory_space<vmem>>) attributes {dimension_semantics = [#tpu.dimension_semantics<parallel>, #tpu.dimension_semantics<parallel>, #tpu.dimension_semantics<parallel>], iteration_bounds = array<i64: 2, 1, 1>, scalar_prefetch = 0 : i64, scratch_operands = 0 : i64, tpu.core_type = #tpu.core_type<tc>, window_params = [{transform_indices = @transform_0, window_bounds = array<i64: 1, 2, 1024>}, {transform_indices = @transform_1, window_bounds = array<i64: 1, 1024, 512>}, {transform_indices = @transform_2, window_bounds = array<i64: 1, 1, 512>}, {transform_indices = @transform_3, window_bounds = array<i64: 1, 2, 512>}]} {
    %c0 = arith.constant 0 : index
    %c0_0 = arith.constant 0 : index
    %c0_1 = arith.constant 0 : index
    %0 = vector.load %arg3[%c0, %c0_0, %c0_1] : memref<1x2x1024xbf16, #tpu.memory_space<vmem>>, vector<1x2x1024xbf16>
    %1 = vector.shape_cast %0 : vector<1x2x1024xbf16> to vector<2x1024xbf16>
    %c0_2 = arith.constant 0 : index
    %c0_3 = arith.constant 0 : index
    %c0_4 = arith.constant 0 : index
    %2 = vector.load %arg4[%c0_2, %c0_3, %c0_4] : memref<1x1024x512xbf16, #tpu.memory_space<vmem>>, vector<1x1024x512xbf16>
    %3 = vector.shape_cast %2 : vector<1x1024x512xbf16> to vector<1024x512xbf16>
    %cst = arith.constant dense<0.000000e+00> : vector<2x512xf32>
    %4 = tpu.matmul %1, %3, %cst {dimension_numbers = #tpu.dot_dimension_numbers<[1], [0], [0], [1], [0, 0, 1, 1], [], []>} : vector<2x1024xbf16>, vector<1024x512xbf16>, vector<2x512xf32> -> vector<2x512xf32>
    %c0_5 = arith.constant 0 : index
    %c0_6 = arith.constant 0 : index
    %c0_7 = arith.constant 0 : index
    %5 = vector.load %arg5[%c0_5, %c0_6, %c0_7] : memref<1x1x512xf32, #tpu.memory_space<vmem>>, vector<1x1x512xf32>
    %6 = vector.shape_cast %5 : vector<1x1x512xf32> to vector<1x512xf32>
    %7 = vector.broadcast %6 : vector<1x512xf32> to vector<2x512xf32>
    %8 = arith.addf %4, %7 : vector<2x512xf32>
    %cst_8 = arith.constant 0.000000e+00 : f32
    %9 = vector.broadcast %cst_8 : f32 to vector<2x512xf32>
    %10 = arith.cmpf ogt, %8, %9 : vector<2x512xf32>
    %cst_9 = arith.constant 0.00999999977 : f32
    %11 = vector.broadcast %cst_9 : f32 to vector<2x512xf32>
    %12 = arith.mulf %11, %8 : vector<2x512xf32>
    %13 = arith.select %10, %8, %12 : vector<2x512xi1>, vector<2x512xf32>
    %14 = arith.truncf %13 : vector<2x512xf32> to vector<2x512xbf16>
    %c0_10 = arith.constant 0 : index
    %c0_11 = arith.constant 0 : index
    %c0_12 = arith.constant 0 : index
    %15 = vector.load %arg6[%c0_10, %c0_11, %c0_12] : memref<1x2x512xbf16, #tpu.memory_space<vmem>>, vector<1x2x512xbf16>
    %16 = vector.shape_cast %15 : vector<1x2x512xbf16> to vector<2x512xbf16>
    %17 = vector.shape_cast %14 : vector<2x512xbf16> to vector<1x2x512xbf16>
    tpu.vector_store %arg6[%c0_10, %c0_11, %c0_12], %17 {strides = array<i32>} : memref<1x2x512xbf16, #tpu.memory_space<vmem>>, vector<1x2x512xbf16>,
    return
  }
  func.func @transform_0(%arg0: i32, %arg1: i32, %arg2: i32) -> (i32, i32, i32) {
    %c0_i32 = arith.constant 0 : i32
    %c0_i32_0 = arith.constant 0 : i32
    return %arg0, %arg1, %c0_i32 : i32, i32, i32
  }
  func.func @transform_1(%arg0: i32, %arg1: i32, %arg2: i32) -> (i32, i32, i32) {
    %c0_i32 = arith.constant 0 : i32
    %c0_i32_0 = arith.constant 0 : i32
    return %arg0, %c0_i32, %arg2 : i32, i32, i32
  }
  func.func @transform_2(%arg0: i32, %arg1: i32, %arg2: i32) -> (i32, i32, i32) {
    %c0_i32 = arith.constant 0 : i32
    %c0_i32_0 = arith.constant 0 : i32
    return %arg0, %c0_i32, %arg2 : i32, i32, i32
  }
  func.func @transform_3(%arg0: i32, %arg1: i32, %arg2: i32) -> (i32, i32, i32) {
    %c0_i32 = arith.constant 0 : i32
    return %arg0, %arg1, %arg2 : i32, i32, i32
  }
}

module attributes {stable_mosaic.version = 11 : i64} {
  func.func @_tail_kernel(%arg0: i32, %arg1: memref<1x2x512xbf16, #tpu.memory_space<vmem>>, %arg2: memref<2x4xf32, #tpu.memory_space<vmem>>, %arg3: memref<1x512x40xf32, #tpu.memory_space<vmem>>, %arg4: memref<1x4x40xf32, #tpu.memory_space<vmem>>, %arg5: memref<1x1x40xf32, #tpu.memory_space<vmem>>, %arg6: memref<1x40x30xf32, #tpu.memory_space<vmem>>, %arg7: memref<1x1x30xf32, #tpu.memory_space<vmem>>, %arg8: memref<1x30x1xf32, #tpu.memory_space<vmem>>, %arg9: memref<1x1x1xf32, #tpu.memory_space<vmem>>, %arg10: memref<1x2x1xf32, #tpu.memory_space<vmem>>) attributes {dimension_semantics = [#tpu.dimension_semantics<parallel>], iteration_bounds = array<i64: 2>, scalar_prefetch = 0 : i64, scratch_operands = 0 : i64, tpu.core_type = #tpu.core_type<tc>, window_params = [{transform_indices = @transform_0, window_bounds = array<i64: 1, 2, 512>}, {pipeline_mode = #tpu.pipeline_mode<synchronous>, transform_indices = @transform_1, window_bounds = array<i64: 2, 4>}, {transform_indices = @transform_2, window_bounds = array<i64: 1, 512, 40>}, {transform_indices = @transform_3, window_bounds = array<i64: 1, 4, 40>}, {transform_indices = @transform_4, window_bounds = array<i64: 1, 1, 40>}, {transform_indices = @transform_5, window_bounds = array<i64: 1, 40, 30>}, {transform_indices = @transform_6, window_bounds = array<i64: 1, 1, 30>}, {transform_indices = @transform_7, window_bounds = array<i64: 1, 30, 1>}, {transform_indices = @transform_8, window_bounds = array<i64: 1, 1, 1>}, {transform_indices = @transform_9, window_bounds = array<i64: 1, 2, 1>}]} {
    %c0 = arith.constant 0 : index
    %c0_0 = arith.constant 0 : index
    %c0_1 = arith.constant 0 : index
    %0 = vector.load %arg1[%c0, %c0_0, %c0_1] : memref<1x2x512xbf16, #tpu.memory_space<vmem>>, vector<1x2x512xbf16>
    %1 = vector.shape_cast %0 : vector<1x2x512xbf16> to vector<2x512xbf16>
    %2 = arith.extf %1 : vector<2x512xbf16> to vector<2x512xf32>
    %c0_2 = arith.constant 0 : index
    %c0_3 = arith.constant 0 : index
    %3 = vector.load %arg2[%c0_2, %c0_3] : memref<2x4xf32, #tpu.memory_space<vmem>>, vector<2x4xf32>
    %c0_4 = arith.constant 0 : index
    %c0_5 = arith.constant 0 : index
    %c0_6 = arith.constant 0 : index
    %4 = vector.load %arg3[%c0_4, %c0_5, %c0_6] : memref<1x512x40xf32, #tpu.memory_space<vmem>>, vector<1x512x40xf32>
    %5 = vector.shape_cast %4 : vector<1x512x40xf32> to vector<512x40xf32>
    %cst = arith.constant dense<0.000000e+00> : vector<2x40xf32>
    %6 = tpu.matmul %2, %5, %cst {dimension_numbers = #tpu.dot_dimension_numbers<[1], [0], [0], [1], [0, 0, 1, 1], [], []>} : vector<2x512xf32>, vector<512x40xf32>, vector<2x40xf32> -> vector<2x40xf32>
    %c0_7 = arith.constant 0 : index
    %c0_8 = arith.constant 0 : index
    %c0_9 = arith.constant 0 : index
    %7 = vector.load %arg4[%c0_7, %c0_8, %c0_9] : memref<1x4x40xf32, #tpu.memory_space<vmem>>, vector<1x4x40xf32>
    %8 = vector.shape_cast %7 : vector<1x4x40xf32> to vector<4x40xf32>
    %cst_10 = arith.constant dense<0.000000e+00> : vector<2x40xf32>
    %9 = tpu.matmul %3, %8, %cst_10 {dimension_numbers = #tpu.dot_dimension_numbers<[1], [0], [0], [1], [0, 0, 1, 1], [], []>} : vector<2x4xf32>, vector<4x40xf32>, vector<2x40xf32> -> vector<2x40xf32>
    %10 = arith.addf %6, %9 : vector<2x40xf32>
    %c0_11 = arith.constant 0 : index
    %c0_12 = arith.constant 0 : index
    %c0_13 = arith.constant 0 : index
    %11 = vector.load %arg5[%c0_11, %c0_12, %c0_13] : memref<1x1x40xf32, #tpu.memory_space<vmem>>, vector<1x1x40xf32>
    %12 = vector.shape_cast %11 : vector<1x1x40xf32> to vector<1x40xf32>
    %13 = vector.broadcast %12 : vector<1x40xf32> to vector<2x40xf32>
    %14 = arith.addf %10, %13 : vector<2x40xf32>
    %cst_14 = arith.constant 0.000000e+00 : f32
    %15 = vector.broadcast %cst_14 : f32 to vector<2x40xf32>
    %16 = arith.cmpf ogt, %14, %15 : vector<2x40xf32>
    %cst_15 = arith.constant 0.00999999977 : f32
    %17 = vector.broadcast %cst_15 : f32 to vector<2x40xf32>
    %18 = arith.mulf %17, %14 : vector<2x40xf32>
    %19 = arith.select %16, %14, %18 : vector<2x40xi1>, vector<2x40xf32>
    %c0_16 = arith.constant 0 : index
    %c0_17 = arith.constant 0 : index
    %c0_18 = arith.constant 0 : index
    %20 = vector.load %arg6[%c0_16, %c0_17, %c0_18] : memref<1x40x30xf32, #tpu.memory_space<vmem>>, vector<1x40x30xf32>
    %21 = vector.shape_cast %20 : vector<1x40x30xf32> to vector<40x30xf32>
    %cst_19 = arith.constant dense<0.000000e+00> : vector<2x30xf32>
    %22 = tpu.matmul %19, %21, %cst_19 {dimension_numbers = #tpu.dot_dimension_numbers<[1], [0], [0], [1], [0, 0, 1, 1], [], []>} : vector<2x40xf32>, vector<40x30xf32>, vector<2x30xf32> -> vector<2x30xf32>
    %c0_20 = arith.constant 0 : index
    %c0_21 = arith.constant 0 : index
    %c0_22 = arith.constant 0 : index
    %23 = vector.load %arg7[%c0_20, %c0_21, %c0_22] : memref<1x1x30xf32, #tpu.memory_space<vmem>>, vector<1x1x30xf32>
    %24 = vector.shape_cast %23 : vector<1x1x30xf32> to vector<1x30xf32>
    %25 = vector.broadcast %24 : vector<1x30xf32> to vector<2x30xf32>
    %26 = arith.addf %22, %25 : vector<2x30xf32>
    %cst_23 = arith.constant 0.000000e+00 : f32
    %27 = vector.broadcast %cst_23 : f32 to vector<2x30xf32>
    %28 = arith.cmpf ogt, %26, %27 : vector<2x30xf32>
    %cst_24 = arith.constant 0.00999999977 : f32
    %29 = vector.broadcast %cst_24 : f32 to vector<2x30xf32>
    %30 = arith.mulf %29, %26 : vector<2x30xf32>
    %31 = arith.select %28, %26, %30 : vector<2x30xi1>, vector<2x30xf32>
    %c0_25 = arith.constant 0 : index
    %c0_26 = arith.constant 0 : index
    %c0_27 = arith.constant 0 : index
    %32 = vector.load %arg8[%c0_25, %c0_26, %c0_27] : memref<1x30x1xf32, #tpu.memory_space<vmem>>, vector<1x30x1xf32>
    %33 = vector.shape_cast %32 : vector<1x30x1xf32> to vector<30x1xf32>
    %cst_28 = arith.constant dense<0.000000e+00> : vector<2x1xf32>
    %34 = tpu.matmul %31, %33, %cst_28 {dimension_numbers = #tpu.dot_dimension_numbers<[1], [0], [0], [1], [0, 0, 1, 1], [], []>} : vector<2x30xf32>, vector<30x1xf32>, vector<2x1xf32> -> vector<2x1xf32>
    %c0_29 = arith.constant 0 : index
    %c0_30 = arith.constant 0 : index
    %c0_31 = arith.constant 0 : index
    %35 = vector.load %arg9[%c0_29, %c0_30, %c0_31] : memref<1x1x1xf32, #tpu.memory_space<vmem>>, vector<1x1x1xf32>
    %36 = vector.shape_cast %35 : vector<1x1x1xf32> to vector<1x1xf32>
    %37 = vector.broadcast %36 : vector<1x1xf32> to vector<2x1xf32>
    %38 = arith.addf %34, %37 : vector<2x1xf32>
    %c0_32 = arith.constant 0 : index
    %c0_33 = arith.constant 0 : index
    %c0_34 = arith.constant 0 : index
    %39 = vector.load %arg10[%c0_32, %c0_33, %c0_34] : memref<1x2x1xf32, #tpu.memory_space<vmem>>, vector<1x2x1xf32>
    %40 = vector.shape_cast %39 : vector<1x2x1xf32> to vector<2x1xf32>
    %41 = vector.shape_cast %38 : vector<2x1xf32> to vector<1x2x1xf32>
    tpu.vector_store %arg10[%c0_32, %c0_33, %c0_34], %41 {strides = array<i32>} : memref<1x2x1xf32, #tpu.memory_space<vmem>>, vector<1x2x1xf32>,
    return
  }
  func.func @transform_0(%arg0: i32) -> (i32, i32, i32) {
    %c0_i32 = arith.constant 0 : i32
    %c0_i32_0 = arith.constant 0 : i32
    %c0_i32_1 = arith.constant 0 : i32
    return %arg0, %c0_i32, %c0_i32_0 : i32, i32, i32
  }
  func.func @transform_1(%arg0: i32) -> (i32, i32) {
    %c0_i32 = arith.constant 0 : i32
    %c0_i32_0 = arith.constant 0 : i32
    %c0_i32_1 = arith.constant 0 : i32
    return %c0_i32, %c0_i32_0 : i32, i32
  }
  func.func @transform_2(%arg0: i32) -> (i32, i32, i32) {
    %c0_i32 = arith.constant 0 : i32
    %c0_i32_0 = arith.constant 0 : i32
    %c0_i32_1 = arith.constant 0 : i32
    return %arg0, %c0_i32, %c0_i32_0 : i32, i32, i32
  }
  func.func @transform_3(%arg0: i32) -> (i32, i32, i32) {
    %c0_i32 = arith.constant 0 : i32
    %c0_i32_0 = arith.constant 0 : i32
    %c0_i32_1 = arith.constant 0 : i32
    return %arg0, %c0_i32, %c0_i32_0 : i32, i32, i32
  }
  func.func @transform_4(%arg0: i32) -> (i32, i32, i32) {
    %c0_i32 = arith.constant 0 : i32
    %c0_i32_0 = arith.constant 0 : i32
    %c0_i32_1 = arith.constant 0 : i32
    return %arg0, %c0_i32, %c0_i32_0 : i32, i32, i32
  }
  func.func @transform_5(%arg0: i32) -> (i32, i32, i32) {
    %c0_i32 = arith.constant 0 : i32
    %c0_i32_0 = arith.constant 0 : i32
    %c0_i32_1 = arith.constant 0 : i32
    return %arg0, %c0_i32, %c0_i32_0 : i32, i32, i32
  }
  func.func @transform_6(%arg0: i32) -> (i32, i32, i32) {
    %c0_i32 = arith.constant 0 : i32
    %c0_i32_0 = arith.constant 0 : i32
    %c0_i32_1 = arith.constant 0 : i32
    return %arg0, %c0_i32, %c0_i32_0 : i32, i32, i32
  }
  func.func @transform_7(%arg0: i32) -> (i32, i32, i32) {
    %c0_i32 = arith.constant 0 : i32
    %c0_i32_0 = arith.constant 0 : i32
    %c0_i32_1 = arith.constant 0 : i32
    return %arg0, %c0_i32, %c0_i32_0 : i32, i32, i32
  }
  func.func @transform_8(%arg0: i32) -> (i32, i32, i32) {
    %c0_i32 = arith.constant 0 : i32
    %c0_i32_0 = arith.constant 0 : i32
    %c0_i32_1 = arith.constant 0 : i32
    return %arg0, %c0_i32, %c0_i32_0 : i32, i32, i32
  }
  func.func @transform_9(%arg0: i32) -> (i32, i32, i32) {
    %c0_i32 = arith.constant 0 : i32
    %c0_i32_0 = arith.constant 0 : i32
    %c0_i32_1 = arith.constant 0 : i32
    return %arg0, %c0_i32, %c0_i32_0 : i32, i32, i32
  }
}

</mosaic_0001>

<llo_original>
// kernel: critic_forward.3
$region0: #{critic_forward.3}
  #allocation0 [shape = 'u32[]', space=smem, size = 0x4, offset = 0x4, fixed_abs, tag = 'smem constant byte address 0x4 - core index']
  #allocation1 [shape = 'u32[144,128]{1,0:T(1,128)}', space=vmem, size = 0x12000, scoped, tag = 'internal scratch']
  %s0 = inlined_call_operand.hbm [shape: bf16[128,48], index: 0, kind: input, shape index: {}]
  %s1 = inlined_call_operand.hbm [shape: bf16[2,48,16], index: 1, kind: input, shape index: {}]
  %s2 = inlined_call_operand.hbm [shape: f32[2,1,16], index: 2, kind: input, shape index: {}]
  %s3 = inlined_call_operand.hbm [shape: bf16[2,128,16], index: 3, kind: output, shape index: {}]
  %s4 = sld [smem:[#allocation0]]
  $region34: #{critic_forward.3} parent=0
    _
  %s6 = ssub.s32 1, %s4
  %s7 = scalar_select 0, %s6, %s4
  $region1: #{critic_forward.3} parent=0
    #allocation2 [shape = 'u8[32768]{0}', space=vmem, size = 0x8000, scoped, tag = 'input window, operand 0, single buffered']
    #allocation3 [shape = 's32[1]{0}', space=sflag, size = 0x4, scoped, tag = 'scoped memory for critic_forward.3']
    #allocation4 [shape = 's32[1]{0}', space=sflag, size = 0x4, scoped, tag = 'scoped memory for critic_forward.3']
    #allocation5 [shape = 'u8[24576]{0}', space=vmem, size = 0x6000, scoped, tag = 'input window, operand 1, single buffered']
    #allocation6 [shape = 's32[1]{0}', space=sflag, size = 0x4, scoped, tag = 'scoped memory for critic_forward.3']
    #allocation7 [shape = 'u8[1024]{0}', space=vmem, size = 0x400, scoped, tag = 'input window, operand 2, single buffered']
    #allocation8 [shape = 'u8[65536]{0}', space=vmem, size = 0x10000, scoped, tag = 'output window, operand 0, single buffered']
    %8 = vsyncpa [#allocation3], 0
    %9 = vsyncpa [#allocation6], 0
    %10 = vsyncpa [#allocation4], 0
    // Predicated region
    $region2: #{critic_forward.3} parent=1 // pred_check
      _
    $region3: #{critic_forward.3} parent=1 // pred_check_branch
      %12 = sbr.rel (0) target = $region5
    $region4: #{critic_forward.3} parent=1 // pred_region
      %s14 = ssub.s32 1024, 1024
      %15 = vsyncadd [#allocation3], %s14
      %s16 = sshll.u32 [#allocation2], 4
      %s17 = int_to_ptr.vmem [resolvable:$true] %s16
      %22 = dma.hbm_to_vmem [thread:$0]  %s0, 1024, %s17, [#allocation3], 64, 64, 4
    $region5: #{critic_forward.3} parent=1 // pred_fallthru
      _
    // Predicated region
    $region6: #{critic_forward.3} parent=1 // pred_check
      _
    $region7: #{critic_forward.3} parent=1 // pred_check_branch
      %24 = sbr.rel (0) target = $region9
    $region8: #{critic_forward.3} parent=1 // pred_region
      %s26 = ssub.s32 768, 768
      %27 = vsyncadd [#allocation6], %s26
      %s28 = sshll.u32 [#allocation5], 4
      %s29 = int_to_ptr.vmem [resolvable:$true] %s28
      %34 = dma.hbm_to_vmem [thread:$0]  %s1, 768, %s29, [#allocation6], 64, 64, 4
    $region9: #{critic_forward.3} parent=1 // pred_fallthru
      _
    // Predicated region
    $region10: #{critic_forward.3} parent=1 // pred_check
      _
    $region11: #{critic_forward.3} parent=1 // pred_check_branch
      %36 = sbr.rel (0) target = $region13
    $region12: #{critic_forward.3} parent=1 // pred_region
      %s38 = ssub.s32 32, 32
      %39 = vsyncadd [#allocation6], %s38
      %s40 = sshll.u32 [#allocation7], 4
      %s41 = int_to_ptr.vmem [resolvable:$true] %s40
      %46 = dma.hbm_to_vmem [thread:$0]  %s2, 32, %s41, [#allocation6], 16, 16, 1
    $region13: #{critic_forward.3} parent=1 // pred_fallthru
      _
    // Predicated region
    $region14: #{critic_forward.3} parent=1 // pred_check
      _
    $region15: #{critic_forward.3} parent=1 // pred_check_branch
      %48 = sbr.rel (0) target = $region17
    $region16: #{critic_forward.3} parent=1 // pred_region
      %49 = dma.done [#allocation3], 1024
    $region17: #{critic_forward.3} parent=1 // pred_fallthru
      _
    // Predicated region
    $region18: #{critic_forward.3} parent=1 // pred_check
      _
    $region19: #{critic_forward.3} parent=1 // pred_check_branch
      %51 = sbr.rel (0) target = $region21
    $region20: #{critic_forward.3} parent=1 // pred_region
      %52 = dma.done [#allocation6], 768
    $region21: #{critic_forward.3} parent=1 // pred_fallthru
      _
    // Predicated region
    $region22: #{critic_forward.3} parent=1 // pred_check
      _
    $region23: #{critic_forward.3} parent=1 // pred_check_branch
      %54 = sbr.rel (0) target = $region25
    $region24: #{critic_forward.3} parent=1 // pred_region
      %55 = dma.done [#allocation6], 32
    $region25: #{critic_forward.3} parent=1 // pred_fallthru
      _
    %v57 = vld [vmem:[#allocation2] sm:$0xf]
    %v58 = vld [vmem:[#allocation2 + $0x4] sm:$0xf]
    %v59 = vld [vmem:[#allocation2 + $0x8] sm:$0xf]
    %v60 = vld [vmem:[#allocation2 + $0xc] sm:$0xf]
    %v61 = vld [vmem:[#allocation2 + $0x10] sm:$0xf]
    %v62 = vld [vmem:[#allocation2 + $0x14] sm:$0xf]
    %v63 = vld [vmem:[#allocation2 + $0x18] sm:$0xf]
    %v64 = vld [vmem:[#allocation2 + $0x1c] sm:$0xf]
    %v65 = vld [vmem:[#allocation2 + $0x20] sm:$0xf]
    %v66 = vld [vmem:[#allocation2 + $0x24] sm:$0xf]
    %v67 = vld [vmem:[#allocation2 + $0x28] sm:$0xf]
    %v68 = vld [vmem:[#allocation2 + $0x2c] sm:$0xf]
    %v69 = vld [vmem:[#allocation2 + $0x30] sm:$0xf]
    %v70 = vld [vmem:[#allocation2 + $0x34] sm:$0xf]
    %v71 = vld [vmem:[#allocation2 + $0x38] sm:$0xf]
    %v72 = vld [vmem:[#allocation2 + $0x3c] sm:$0xf]
    %v73 = vld [vmem:[#allocation5] sm:$0xf]
    %v74 = vld [vmem:[#allocation5 + $0x4] sm:$0xf]
    %v75 = vld [vmem:[#allocation5 + $0x8] sm:$0xf]
    %v76 = vld [vmem:[#allocation5 + $0xc] sm:$0xf]
    %v77 = vld [vmem:[#allocation5 + $0x10] sm:$0xf]
    %v78 = vld [vmem:[#allocation5 + $0x14] sm:$0xf]
    %v79 = vld [vmem:[#allocation7] sm:$0x1]
    %v81 = vlaneseq
    %v82 = vshrl.u32 %v81, 7
    %v83 = vsub.s32 0, %v82
    %v84 = vrot.slane %v79, %v83
    %v102 = vunpack.c.l.b16 %v57
    %v103 = vunpack.c.l.b16 %v58
    %v104 = vunpack.c.l.b16 %v59
    %v105 = vunpack.c.l.b16 %v60
    %v106 = vunpack.c.l.b16 %v61
    %v107 = vunpack.c.l.b16 %v62
    %v108 = vunpack.c.l.b16 %v63
    %v109 = vunpack.c.l.b16 %v64
    %v110 = vunpack.c.l.b16 %v65
    %v111 = vunpack.c.l.b16 %v66
    %v112 = vunpack.c.l.b16 %v67
    %v113 = vunpack.c.l.b16 %v68
    %v114 = vunpack.c.l.b16 %v69
    %v115 = vunpack.c.l.b16 %v70
    %v116 = vunpack.c.l.b16 %v71
    %v117 = vunpack.c.l.b16 %v72
    %v118 = vpack.c.b16 %v103, %v102
    %v119 = vpack.c.b16 %v105, %v104
    %v120 = vpack.c.b16 %v107, %v106
    %v121 = vpack.c.b16 %v109, %v108
    %v122 = vpack.c.b16 %v111, %v110
    %v123 = vpack.c.b16 %v113, %v112
    %v124 = vpack.c.b16 %v115, %v114
    %v125 = vpack.c.b16 %v117, %v116
    %v132 = vunpack.c.l.b16 %v73
    %v133 = vunpack.c.l.b16 %v74
    %v134 = vunpack.c.l.b16 %v75
    %v135 = vunpack.c.l.b16 %v76
    %v136 = vunpack.c.l.b16 %v77
    %v137 = vunpack.c.l.b16 %v78
    %v138 = vpack.c.b16 %v133, %v132
    %v139 = vpack.c.b16 %v135, %v134
    %v140 = vpack.c.b16 %v137, %v136
    %vm144 = vcmask 392192
    %v146 = vsel %vm144, %v118, 0
    %v149 = vsel %vm144, %v119, 0
    %v152 = vsel %vm144, %v120, 0
    %v155 = vsel %vm144, %v121, 0
    %v158 = vsel %vm144, %v122, 0
    %v161 = vsel %vm144, %v123, 0
    %v164 = vsel %vm144, %v124, 0
    %v167 = vsel %vm144, %v125, 0
    %169 = vmatprep.subr.bf16.mxu0 0
    %170 = vmatpush1.bf16.msra.mxu0 %v138
    %171 = vmatprep.subr.bf16.mxu0 0
    %172 = vmatpush1.bf16.msra.mxu0 %v139
    %173 = vmatprep.subr.bf16.mxu0 0
    %174 = vmatpush1.bf16.msra.mxu0 %v140
    %175 = vmatprep.subr.bf16.mxu0 0
    %176 = vmatpush1.bf16.msra.mxu0 0
    %177 = vmatprep.subr.bf16.mxu0 0
    %178 = vmatpush1.bf16.msra.mxu0 0
    %179 = vmatprep.subr.bf16.mxu0 0
    %180 = vmatpush1.bf16.msra.mxu0 0
    %181 = vmatprep.subr.bf16.mxu0 0
    %182 = vmatpush1.bf16.msra.mxu0 0
    %183 = vmatprep.subr.bf16.mxu0 0
    %184 = vmatpush1.bf16.msra.mxu0 0
    %185 = vmatprep.subr.bf16.mxu0 0
    %186 = vmatpush1.bf16.msra.mxu0 0
    %187 = vmatprep.subr.bf16.mxu0 0
    %188 = vmatpush1.bf16.msra.mxu0 0
    %189 = vmatprep.subr.bf16.mxu0 0
    %190 = vmatpush1.bf16.msra.mxu0 0
    %191 = vmatprep.subr.bf16.mxu0 0
    %192 = vmatpush1.bf16.msra.mxu0 0
    %193 = vmatprep.subr.bf16.mxu0 0
    %194 = vmatpush1.bf16.msra.mxu0 0
    %195 = vmatprep.subr.bf16.mxu0 0
    %196 = vmatpush1.bf16.msra.mxu0 0
    %197 = vmatprep.subr.bf16.mxu0 0
    %198 = vmatpush1.bf16.msra.mxu0 0
    %199 = vmatprep.subr.bf16.mxu0 0
    %200 = vmatpush1.bf16.msra.mxu0 0
    %201 = vmatprep.mubr.bf16.mxu0 0
    %202 = vmatmul.mubr.bf16.gmra.mrb[0].mxu0 %v146
    %v203 = vpop.f32.mrb[0].mxu0
    %v204 = vadd.f32 %v84, %v203
    %v205 = vpop.f32.mrb[0].mxu0
    %v206 = vpop.f32.mrb[0].mxu0
    %v207 = vadd.f32 %v84, %v206
    %v208 = vpop.f32.mrb[0].mxu0
    %209 = vmatprep.mubr.bf16.mxu0 0
    %210 = vmatmul.mubr.bf16.gmra.mrb[0].mxu0 %v149
    %v211 = vpop.f32.mrb[0].mxu0
    %v212 = vadd.f32 %v84, %v211
    %v213 = vpop.f32.mrb[0].mxu0
    %v214 = vpop.f32.mrb[0].mxu0
    %v215 = vadd.f32 %v84, %v214
    %v216 = vpop.f32.mrb[0].mxu0
    %217 = vmatprep.mubr.bf16.mxu0 0
    %218 = vmatmul.mubr.bf16.gmra.mrb[0].mxu0 %v152
    %v219 = vpop.f32.mrb[0].mxu0
    %v220 = vadd.f32 %v84, %v219
    %v221 = vpop.f32.mrb[0].mxu0
    %v222 = vpop.f32.mrb[0].mxu0
    %v223 = vadd.f32 %v84, %v222
    %v224 = vpop.f32.mrb[0].mxu0
    %225 = vmatprep.mubr.bf16.mxu0 0
    %226 = vmatmul.mubr.bf16.gmra.mrb[0].mxu0 %v155
    %v227 = vpop.f32.mrb[0].mxu0
    %v228 = vadd.f32 %v84, %v227
    %v229 = vpop.f32.mrb[0].mxu0
    %v230 = vpop.f32.mrb[0].mxu0
    %v231 = vadd.f32 %v84, %v230
    %v232 = vpop.f32.mrb[0].mxu0
    %233 = vmatprep.mubr.bf16.mxu0 0
    %234 = vmatmul.mubr.bf16.gmra.mrb[0].mxu0 %v158
    %v235 = vpop.f32.mrb[0].mxu0
    %v236 = vadd.f32 %v84, %v235
    %v237 = vpop.f32.mrb[0].mxu0
    %v238 = vpop.f32.mrb[0].mxu0
    %v239 = vadd.f32 %v84, %v238
    %v240 = vpop.f32.mrb[0].mxu0
    %241 = vmatprep.mubr.bf16.mxu0 0
    %242 = vmatmul.mubr.bf16.gmra.mrb[0].mxu0 %v161
    %v243 = vpop.f32.mrb[0].mxu0
    %v244 = vadd.f32 %v84, %v243
    %v245 = vpop.f32.mrb[0].mxu0
    %v246 = vpop.f32.mrb[0].mxu0
    %v247 = vadd.f32 %v84, %v246
    %v248 = vpop.f32.mrb[0].mxu0
    %249 = vmatprep.mubr.bf16.mxu0 0
    %250 = vmatmul.mubr.bf16.gmra.mrb[0].mxu0 %v164
    %v251 = vpop.f32.mrb[0].mxu0
    %v252 = vadd.f32 %v84, %v251
    %v253 = vpop.f32.mrb[0].mxu0
    %v254 = vpop.f32.mrb[0].mxu0
    %v255 = vadd.f32 %v84, %v254
    %v256 = vpop.f32.mrb[0].mxu0
    %257 = vmatprep.mubr.bf16.mxu0 0
    %258 = vmatmul.mubr.bf16.gmra.mrb[0].mxu0 %v167
    %v259 = vpop.f32.mrb[0].mxu0
    %v260 = vadd.f32 %v84, %v259
    %v261 = vpop.f32.mrb[0].mxu0
    %v262 = vpop.f32.mrb[0].mxu0
    %v263 = vadd.f32 %v84, %v262
    %v264 = vpop.f32.mrb[0].mxu0
    %265 = vdwg.mxu0
    %vm266 = vcmp.gt.f32.partialorder %v204, 0.0
    %vm267 = vcmp.gt.f32.partialorder %v207, 0.0
    %vm268 = vcmp.gt.f32.partialorder %v212, 0.0
    %vm269 = vcmp.gt.f32.partialorder %v215, 0.0
    %vm270 = vcmp.gt.f32.partialorder %v220, 0.0
    %vm271 = vcmp.gt.f32.partialorder %v223, 0.0
    %vm272 = vcmp.gt.f32.partialorder %v228, 0.0
    %vm273 = vcmp.gt.f32.partialorder %v231, 0.0
    %vm274 = vcmp.gt.f32.partialorder %v236, 0.0
    %vm275 = vcmp.gt.f32.partialorder %v239, 0.0
    %vm276 = vcmp.gt.f32.partialorder %v244, 0.0
    %vm277 = vcmp.gt.f32.partialorder %v247, 0.0
    %vm278 = vcmp.gt.f32.partialorder %v252, 0.0
    %vm279 = vcmp.gt.f32.partialorder %v255, 0.0
    %vm280 = vcmp.gt.f32.partialorder %v260, 0.0
    %vm281 = vcmp.gt.f32.partialorder %v263, 0.0
    %v282 = vmul.f32 %v204, 0.01
    %v283 = vmul.f32 %v207, 0.01
    %v284 = vmul.f32 %v212, 0.01
    %v285 = vmul.f32 %v215, 0.01
    %v286 = vmul.f32 %v220, 0.01
    %v287 = vmul.f32 %v223, 0.01
    %v288 = vmul.f32 %v228, 0.01
    %v289 = vmul.f32 %v231, 0.01
    %v290 = vmul.f32 %v236, 0.01
    %v291 = vmul.f32 %v239, 0.01
    %v292 = vmul.f32 %v244, 0.01
    %v293 = vmul.f32 %v247, 0.01
    %v294 = vmul.f32 %v252, 0.01
    %v295 = vmul.f32 %v255, 0.01
    %v296 = vmul.f32 %v260, 0.01
    %v297 = vmul.f32 %v263, 0.01
    %v298 = vsel %vm266, %v204, %v282
    %v299 = vsel %vm267, %v207, %v283
    %v300 = vsel %vm268, %v212, %v284
    %v301 = vsel %vm269, %v215, %v285
    %v302 = vsel %vm270, %v220, %v286
    %v303 = vsel %vm271, %v223, %v287
    %v304 = vsel %vm272, %v228, %v288
    %v305 = vsel %vm273, %v231, %v289
    %v306 = vsel %vm274, %v236, %v290
    %v307 = vsel %vm275, %v239, %v291
    %v308 = vsel %vm276, %v244, %v292
    %v309 = vsel %vm277, %v247, %v293
    %v310 = vsel %vm278, %v252, %v294
    %v311 = vsel %vm279, %v255, %v295
    %v312 = vsel %vm280, %v260, %v296
    %v313 = vsel %vm281, %v263, %v297
    %v314 = vpack.c.bf16 %v299, %v298
    %v315 = vpack.c.bf16 %v301, %v300
    %v316 = vpack.c.bf16 %v303, %v302
    %v317 = vpack.c.bf16 %v305, %v304
    %v318 = vpack.c.bf16 %v307, %v306
    %v319 = vpack.c.bf16 %v309, %v308
    %v320 = vpack.c.bf16 %v311, %v310
    %v321 = vpack.c.bf16 %v313, %v312
    %v330 = vunpack.c.l.b16 %v314
    %v331 = vunpack.c.h.b16 %v314
    %v332 = vunpack.c.l.b16 %v315
    %v333 = vunpack.c.h.b16 %v315
    %v334 = vunpack.c.l.b16 %v316
    %v335 = vunpack.c.h.b16 %v316
    %v336 = vunpack.c.l.b16 %v317
    %v337 = vunpack.c.h.b16 %v317
    %v338 = vunpack.c.l.b16 %v318
    %v339 = vunpack.c.h.b16 %v318
    %v340 = vunpack.c.l.b16 %v319
    %v341 = vunpack.c.h.b16 %v319
    %v342 = vunpack.c.l.b16 %v320
    %v343 = vunpack.c.h.b16 %v320
    %v344 = vunpack.c.l.b16 %v321
    %v345 = vunpack.c.h.b16 %v321
    %v346 = vpack.c.b16 %v330, %v330
    %v347 = vpack.c.b16 %v331, %v331
    %v348 = vpack.c.b16 %v332, %v332
    %v349 = vpack.c.b16 %v333, %v333
    %v350 = vpack.c.b16 %v334, %v334
    %v351 = vpack.c.b16 %v335, %v335
    %v352 = vpack.c.b16 %v336, %v336
    %v353 = vpack.c.b16 %v337, %v337
    %v354 = vpack.c.b16 %v338, %v338
    %v355 = vpack.c.b16 %v339, %v339
    %v356 = vpack.c.b16 %v340, %v340
    %v357 = vpack.c.b16 %v341, %v341
    %v358 = vpack.c.b16 %v342, %v342
    %v359 = vpack.c.b16 %v343, %v343
    %v360 = vpack.c.b16 %v344, %v344
    %v361 = vpack.c.b16 %v345, %v345
    %vm378 = vcmask 125952
    %379 = vst.msk [vmem:[#allocation8] sm:$0xf] %vm378, %v346
    %380 = vst.msk [vmem:[#allocation8 + $0x4] sm:$0xf] %vm378, %v347
    %381 = vst.msk [vmem:[#allocation8 + $0x8] sm:$0xf] %vm378, %v348
    %382 = vst.msk [vmem:[#allocation8 + $0xc] sm:$0xf] %vm378, %v349
    %383 = vst.msk [vmem:[#allocation8 + $0x10] sm:$0xf] %vm378, %v350
    %384 = vst.msk [vmem:[#allocation8 + $0x14] sm:$0xf] %vm378, %v351
    %385 = vst.msk [vmem:[#allocation8 + $0x18] sm:$0xf] %vm378, %v352
    %386 = vst.msk [vmem:[#allocation8 + $0x1c] sm:$0xf] %vm378, %v353
    %387 = vst.msk [vmem:[#allocation8 + $0x20] sm:$0xf] %vm378, %v354
    %388 = vst.msk [vmem:[#allocation8 + $0x24] sm:$0xf] %vm378, %v355
    %389 = vst.msk [vmem:[#allocation8 + $0x28] sm:$0xf] %vm378, %v356
    %390 = vst.msk [vmem:[#allocation8 + $0x2c] sm:$0xf] %vm378, %v357
    %391 = vst.msk [vmem:[#allocation8 + $0x30] sm:$0xf] %vm378, %v358
    %392 = vst.msk [vmem:[#allocation8 + $0x34] sm:$0xf] %vm378, %v359
    %393 = vst.msk [vmem:[#allocation8 + $0x38] sm:$0xf] %vm378, %v360
    %394 = vst.msk [vmem:[#allocation8 + $0x3c] sm:$0xf] %vm378, %v361
    %s395 = scalar_lea.vmem [#allocation5], 24
    %v396 = vld [vmem:[%s395] sm:$0xf]
    %v397 = vld [vmem:[%s395 + $0x4] sm:$0xf]
    %v398 = vld [vmem:[%s395 + $0x8] sm:$0xf]
    %v399 = vld [vmem:[%s395 + $0xc] sm:$0xf]
    %v400 = vld [vmem:[%s395 + $0x10] sm:$0xf]
    %v401 = vld [vmem:[%s395 + $0x14] sm:$0xf]
    %s402 = scalar_lea.vmem [#allocation7], 1
    %v403 = vld [vmem:[%s402] sm:$0x1]
    %v405 = vlaneseq
    %v406 = vshrl.u32 %v405, 7
    %v407 = vsub.s32 0, %v406
    %v408 = vrot.slane %v403, %v407
    %v416 = vunpack.c.l.b16 %v396
    %v417 = vunpack.c.l.b16 %v397
    %v418 = vunpack.c.l.b16 %v398
    %v419 = vunpack.c.l.b16 %v399
    %v420 = vunpack.c.l.b16 %v400
    %v421 = vunpack.c.l.b16 %v401
    %v422 = vpack.c.b16 %v417, %v416
    %v423 = vpack.c.b16 %v419, %v418
    %v424 = vpack.c.b16 %v421, %v420
    %428 = vmatprep.subr.bf16.mxu0 0
    %429 = vmatpush1.bf16.msra.mxu0 %v422
    %430 = vmatprep.subr.bf16.mxu0 0
    %431 = vmatpush1.bf16.msra.mxu0 %v423
    %432 = vmatprep.subr.bf16.mxu0 0
    %433 = vmatpush1.bf16.msra.mxu0 %v424
    %434 = vmatprep.subr.bf16.mxu0 0
    %435 = vmatpush1.bf16.msra.mxu0 0
    %436 = vmatprep.subr.bf16.mxu0 0
    %437 = vmatpush1.bf16.msra.mxu0 0
    %438 = vmatprep.subr.bf16.mxu0 0
    %439 = vmatpush1.bf16.msra.mxu0 0
    %440 = vmatprep.subr.bf16.mxu0 0
    %441 = vmatpush1.bf16.msra.mxu0 0
    %442 = vmatprep.subr.bf16.mxu0 0
    %443 = vmatpush1.bf16.msra.mxu0 0
    %444 = vmatprep.subr.bf16.mxu0 0
    %445 = vmatpush1.bf16.msra.mxu0 0
    %446 = vmatprep.subr.bf16.mxu0 0
    %447 = vmatpush1.bf16.msra.mxu0 0
    %448 = vmatprep.subr.bf16.mxu0 0
    %449 = vmatpush1.bf16.msra.mxu0 0
    %450 = vmatprep.subr.bf16.mxu0 0
    %451 = vmatpush1.bf16.msra.mxu0 0
    %452 = vmatprep.subr.bf16.mxu0 0
    %453 = vmatpush1.bf16.msra.mxu0 0
    %454 = vmatprep.subr.bf16.mxu0 0
    %455 = vmatpush1.bf16.msra.mxu0 0
    %456 = vmatprep.subr.bf16.mxu0 0
    %457 = vmatpush1.bf16.msra.mxu0 0
    %458 = vmatprep.subr.bf16.mxu0 0
    %459 = vmatpush1.bf16.msra.mxu0 0
    %460 = vmatprep.mubr.bf16.mxu0 0
    %461 = vmatmul.mubr.bf16.gmra.mrb[0].mxu0 %v146
    %v462 = vpop.f32.mrb[0].mxu0
    %v463 = vadd.f32 %v408, %v462
    %v464 = vpop.f32.mrb[0].mxu0
    %v465 = vpop.f32.mrb[0].mxu0
    %v466 = vadd.f32 %v408, %v465
    %v467 = vpop.f32.mrb[0].mxu0
    %468 = vmatprep.mubr.bf16.mxu0 0
    %469 = vmatmul.mubr.bf16.gmra.mrb[0].mxu0 %v149
    %v470 = vpop.f32.mrb[0].mxu0
    %v471 = vadd.f32 %v408, %v470
    %v472 = vpop.f32.mrb[0].mxu0
    %v473 = vpop.f32.mrb[0].mxu0
    %v474 = vadd.f32 %v408, %v473
    %v475 = vpop.f32.mrb[0].mxu0
    %476 = vmatprep.mubr.bf16.mxu0 0
    %477 = vmatmul.mubr.bf16.gmra.mrb[0].mxu0 %v152
    %v478 = vpop.f32.mrb[0].mxu0
    %v479 = vadd.f32 %v408, %v478
    %v480 = vpop.f32.mrb[0].mxu0
    %v481 = vpop.f32.mrb[0].mxu0
    %v482 = vadd.f32 %v408, %v481
    %v483 = vpop.f32.mrb[0].mxu0
    %484 = vmatprep.mubr.bf16.mxu0 0
    %485 = vmatmul.mubr.bf16.gmra.mrb[0].mxu0 %v155
    %v486 = vpop.f32.mrb[0].mxu0
    %v487 = vadd.f32 %v408, %v486
    %v488 = vpop.f32.mrb[0].mxu0
    %v489 = vpop.f32.mrb[0].mxu0
    %v490 = vadd.f32 %v408, %v489
    %v491 = vpop.f32.mrb[0].mxu0
    %492 = vmatprep.mubr.bf16.mxu0 0
    %493 = vmatmul.mubr.bf16.gmra.mrb[0].mxu0 %v158
    %v494 = vpop.f32.mrb[0].mxu0
    %v495 = vadd.f32 %v408, %v494
    %v496 = vpop.f32.mrb[0].mxu0
    %v497 = vpop.f32.mrb[0].mxu0
    %v498 = vadd.f32 %v408, %v497
    %v499 = vpop.f32.mrb[0].mxu0
    %500 = vmatprep.mubr.bf16.mxu0 0
    %501 = vmatmul.mubr.bf16.gmra.mrb[0].mxu0 %v161
    %v502 = vpop.f32.mrb[0].mxu0
    %v503 = vadd.f32 %v408, %v502
    %v504 = vpop.f32.mrb[0].mxu0
    %v505 = vpop.f32.mrb[0].mxu0
    %v506 = vadd.f32 %v408, %v505
    %v507 = vpop.f32.mrb[0].mxu0
    %508 = vmatprep.mubr.bf16.mxu0 0
    %509 = vmatmul.mubr.bf16.gmra.mrb[0].mxu0 %v164
    %v510 = vpop.f32.mrb[0].mxu0
    %v511 = vadd.f32 %v408, %v510
    %v512 = vpop.f32.mrb[0].mxu0
    %v513 = vpop.f32.mrb[0].mxu0
    %v514 = vadd.f32 %v408, %v513
    %v515 = vpop.f32.mrb[0].mxu0
    %516 = vmatprep.mubr.bf16.mxu0 0
    %517 = vmatmul.mubr.bf16.gmra.mrb[0].mxu0 %v167
    %v518 = vpop.f32.mrb[0].mxu0
    %v519 = vadd.f32 %v408, %v518
    %v520 = vpop.f32.mrb[0].mxu0
    %v521 = vpop.f32.mrb[0].mxu0
    %v522 = vadd.f32 %v408, %v521
    %v523 = vpop.f32.mrb[0].mxu0
    %524 = vdwg.mxu0
    %vm525 = vcmp.gt.f32.partialorder %v463, 0.0
    %vm526 = vcmp.gt.f32.partialorder %v466, 0.0
    %vm527 = vcmp.gt.f32.partialorder %v471, 0.0
    %vm528 = vcmp.gt.f32.partialorder %v474, 0.0
    %vm529 = vcmp.gt.f32.partialorder %v479, 0.0
    %vm530 = vcmp.gt.f32.partialorder %v482, 0.0
    %vm531 = vcmp.gt.f32.partialorder %v487, 0.0
    %vm532 = vcmp.gt.f32.partialorder %v490, 0.0
    %vm533 = vcmp.gt.f32.partialorder %v495, 0.0
    %vm534 = vcmp.gt.f32.partialorder %v498, 0.0
    %vm535 = vcmp.gt.f32.partialorder %v503, 0.0
    %vm536 = vcmp.gt.f32.partialorder %v506, 0.0
    %vm537 = vcmp.gt.f32.partialorder %v511, 0.0
    %vm538 = vcmp.gt.f32.partialorder %v514, 0.0
    %vm539 = vcmp.gt.f32.partialorder %v519, 0.0
    %vm540 = vcmp.gt.f32.partialorder %v522, 0.0
    %v541 = vmul.f32 %v463, 0.01
    %v542 = vmul.f32 %v466, 0.01
    %v543 = vmul.f32 %v471, 0.01
    %v544 = vmul.f32 %v474, 0.01
    %v545 = vmul.f32 %v479, 0.01
    %v546 = vmul.f32 %v482, 0.01
    %v547 = vmul.f32 %v487, 0.01
    %v548 = vmul.f32 %v490, 0.01
    %v549 = vmul.f32 %v495, 0.01
    %v550 = vmul.f32 %v498, 0.01
    %v551 = vmul.f32 %v503, 0.01
    %v552 = vmul.f32 %v506, 0.01
    %v553 = vmul.f32 %v511, 0.01
    %v554 = vmul.f32 %v514, 0.01
    %v555 = vmul.f32 %v519, 0.01
    %v556 = vmul.f32 %v522, 0.01
    %v557 = vsel %vm525, %v463, %v541
    %v558 = vsel %vm526, %v466, %v542
    %v559 = vsel %vm527, %v471, %v543
    %v560 = vsel %vm528, %v474, %v544
    %v561 = vsel %vm529, %v479, %v545
    %v562 = vsel %vm530, %v482, %v546
    %v563 = vsel %vm531, %v487, %v547
    %v564 = vsel %vm532, %v490, %v548
    %v565 = vsel %vm533, %v495, %v549
    %v566 = vsel %vm534, %v498, %v550
    %v567 = vsel %vm535, %v503, %v551
    %v568 = vsel %vm536, %v506, %v552
    %v569 = vsel %vm537, %v511, %v553
    %v570 = vsel %vm538, %v514, %v554
    %v571 = vsel %vm539, %v519, %v555
    %v572 = vsel %vm540, %v522, %v556
    %v573 = vpack.c.bf16 %v558, %v557
    %v574 = vpack.c.bf16 %v560, %v559
    %v575 = vpack.c.bf16 %v562, %v561
    %v576 = vpack.c.bf16 %v564, %v563
    %v577 = vpack.c.bf16 %v566, %v565
    %v578 = vpack.c.bf16 %v568, %v567
    %v579 = vpack.c.bf16 %v570, %v569
    %v580 = vpack.c.bf16 %v572, %v571
    %v589 = vunpack.c.l.b16 %v573
    %v590 = vunpack.c.h.b16 %v573
    %v591 = vunpack.c.l.b16 %v574
    %v592 = vunpack.c.h.b16 %v574
    %v593 = vunpack.c.l.b16 %v575
    %v594 = vunpack.c.h.b16 %v575
    %v595 = vunpack.c.l.b16 %v576
    %v596 = vunpack.c.h.b16 %v576
    %v597 = vunpack.c.l.b16 %v577
    %v598 = vunpack.c.h.b16 %v577
    %v599 = vunpack.c.l.b16 %v578
    %v600 = vunpack.c.h.b16 %v578
    %v601 = vunpack.c.l.b16 %v579
    %v602 = vunpack.c.h.b16 %v579
    %v603 = vunpack.c.l.b16 %v580
    %v604 = vunpack.c.h.b16 %v580
    %v605 = vpack.c.b16 %v589, %v589
    %v606 = vpack.c.b16 %v590, %v590
    %v607 = vpack.c.b16 %v591, %v591
    %v608 = vpack.c.b16 %v592, %v592
    %v609 = vpack.c.b16 %v593, %v593
    %v610 = vpack.c.b16 %v594, %v594
    %v611 = vpack.c.b16 %v595, %v595
    %v612 = vpack.c.b16 %v596, %v596
    %v613 = vpack.c.b16 %v597, %v597
    %v614 = vpack.c.b16 %v598, %v598
    %v615 = vpack.c.b16 %v599, %v599
    %v616 = vpack.c.b16 %v600, %v600
    %v617 = vpack.c.b16 %v601, %v601
    %v618 = vpack.c.b16 %v602, %v602
    %v619 = vpack.c.b16 %v603, %v603
    %v620 = vpack.c.b16 %v604, %v604
    %s637 = scalar_lea.vmem [#allocation8], 64
    %638 = vst.msk [vmem:[%s637] sm:$0xf] %vm378, %v605
    %639 = vst.msk [vmem:[%s637 + $0x4] sm:$0xf] %vm378, %v606
    %640 = vst.msk [vmem:[%s637 + $0x8] sm:$0xf] %vm378, %v607
    %641 = vst.msk [vmem:[%s637 + $0xc] sm:$0xf] %vm378, %v608
    %642 = vst.msk [vmem:[%s637 + $0x10] sm:$0xf] %vm378, %v609
    %643 = vst.msk [vmem:[%s637 + $0x14] sm:$0xf] %vm378, %v610
    %644 = vst.msk [vmem:[%s637 + $0x18] sm:$0xf] %vm378, %v611
    %645 = vst.msk [vmem:[%s637 + $0x1c] sm:$0xf] %vm378, %v612
    %646 = vst.msk [vmem:[%s637 + $0x20] sm:$0xf] %vm378, %v613
    %647 = vst.msk [vmem:[%s637 + $0x24] sm:$0xf] %vm378, %v614
    %648 = vst.msk [vmem:[%s637 + $0x28] sm:$0xf] %vm378, %v615
    %649 = vst.msk [vmem:[%s637 + $0x2c] sm:$0xf] %vm378, %v616
    %650 = vst.msk [vmem:[%s637 + $0x30] sm:$0xf] %vm378, %v617
    %651 = vst.msk [vmem:[%s637 + $0x34] sm:$0xf] %vm378, %v618
    %652 = vst.msk [vmem:[%s637 + $0x38] sm:$0xf] %vm378, %v619
    %653 = vst.msk [vmem:[%s637 + $0x3c] sm:$0xf] %vm378, %v620
    // Predicated region
    $region26: #{critic_forward.3} parent=1 // pred_check
      _
    $region27: #{critic_forward.3} parent=1 // pred_check_branch
      %655 = sbr.rel (0) target = $region29
    $region28: #{critic_forward.3} parent=1 // pred_region
      %s657 = ssub.s32 2048, 2048
      %658 = vsyncadd [#allocation4], %s657
      %s659 = sshll.u32 [#allocation8], 4
      %s660 = int_to_ptr.vmem [resolvable:$true] %s659
      %665 = dma.vmem_to_hbm [thread:$0]  %s660, 2048, %s3, [#allocation4], 64, 64, 4
    $region29: #{critic_forward.3} parent=1 // pred_fallthru
      _
    // Predicated region
    $region30: #{critic_forward.3} parent=1 // pred_check
      _
    $region31: #{critic_forward.3} parent=1 // pred_check_branch
      %667 = sbr.rel (0) target = $region33
    $region32: #{critic_forward.3} parent=1 // pred_region
      %668 = dma.done [#allocation4], 2048
    $region33: #{critic_forward.3} parent=1 // pred_fallthru
      _
    %669 = vsyncpa [#allocation3], 1
    %670 = vsyncpa [#allocation6], 1
    %671 = vsyncpa [#allocation4], 1

// kernel: critic_forward.5
$region0: #{critic_forward.5}
  #allocation0 [shape = 'u32[]', space=smem, size = 0x4, offset = 0x4, fixed_abs, tag = 'smem constant byte address 0x4 - core index']
  #allocation1 [shape = 'u32[144,128]{1,0:T(1,128)}', space=vmem, size = 0x12000, scoped, tag = 'internal scratch']
  %s0 = inlined_call_operand.hbm [shape: bf16[2,2,512], index: 0, kind: input, shape index: {}]
  %s1 = inlined_call_operand.hbm [shape: f32[2,4], index: 1, kind: input, shape index: {}]
  %s2 = inlined_call_operand.vmem [shape: f32[2,512,40], index: 2, kind: input, shape index: {}]
  %s3 = inlined_call_operand.hbm [shape: f32[2,4,40], index: 3, kind: input, shape index: {}]
  %s4 = inlined_call_operand.hbm [shape: f32[2,1,40], index: 4, kind: input, shape index: {}]
  %s5 = inlined_call_operand.vmem [shape: f32[2,40,30], index: 5, kind: input, shape index: {}]
  %s6 = inlined_call_operand.hbm [shape: f32[2,1,30], index: 6, kind: input, shape index: {}]
  %s7 = inlined_call_operand.vmem [shape: f32[2,30,1], index: 7, kind: input, shape index: {}]
  %s8 = inlined_call_operand.hbm [shape: f32[2,1,1], index: 8, kind: input, shape index: {}]
  %s9 = inlined_call_operand.vmem [shape: f32[2,2,1], index: 9, kind: output, shape index: {}]
  %s10 = sld [smem:[#allocation0]]
  $region93: #{critic_forward.5} parent=0
    _
  %s12 = ssub.s32 1, %s10
  %s13 = scalar_select 0, %s12, %s10
  $region1: #{critic_forward.5} parent=0
    #allocation2 [shape = 'u8[4096]{0}', space=vmem, size = 0x1000, scoped, tag = 'input window, operand 0']
    #allocation3 [shape = 's32[2]{0}', space=sflag, size = 0x8, scoped, tag = 'scoped memory for critic_forward.5']
    #allocation4 [shape = 'u8[1024]{0}', space=vmem, size = 0x400, scoped, tag = 'input window, operand 1, single buffered']
    #allocation5 [shape = 's32[1]{0}', space=sflag, size = 0x4, scoped, tag = 'scoped memory for critic_forward.5']
    #allocation6 [shape = 'u8[4096]{0}', space=vmem, size = 0x1000, scoped, tag = 'input window, operand 3']
    #allocation7 [shape = 'u8[1024]{0}', space=vmem, size = 0x400, scoped, tag = 'input window, operand 4']
    #allocation8 [shape = 'u8[1024]{0}', space=vmem, size = 0x400, scoped, tag = 'input window, operand 6']
    #allocation9 [shape = 'u8[1024]{0}', space=vmem, size = 0x400, scoped, tag = 'input window, operand 8']
    %14 = vsyncpa [#allocation3], 0
    %s15 = scalar_lea.sflag [#allocation3], 1
    %16 = vsyncpa %s15, 0
    %17 = vsyncpa [#allocation5], 0
    loop: start=0, step=1, limit=4
    $region2: #{critic_forward.5} parent=1 // loop_pre_header
      _
    $region3: #{critic_forward.5} parent=1 // loop_header
      %s19 = sphi 0, %s23
      %p20 = scmp.ge.s32.totalorder %s19, 4
      %s29 = sphi 0, %s31
      %s32 = sphi 0, %s29
      %s33 = sphi 0, %s32
      %s49 = sphi 0, %s33
      %s53 = sphi 0, %s53
      %s55 = sphi 0, %s53
      %s56 = sphi 0, %s55
      %s70 = sphi 0, %s56
      %s76 = sphi 0, %s78
      %s79 = sphi 0, %s76
      %s80 = sphi 0, %s79
      %s96 = sphi 0, %s80
      %s102 = sphi 0, %s104
      %s105 = sphi 0, %s102
      %s106 = sphi 0, %s105
      %s122 = sphi 0, %s106
      %s128 = sphi 0, %s130
      %s131 = sphi 0, %s128
      %s132 = sphi 0, %s131
      %s148 = sphi 0, %s132
      %s154 = sphi 0, %s156
      %s157 = sphi 0, %s154
      %s158 = sphi 0, %s157
      %s174 = sphi 0, %s158
      %s180 = sphi 0, %s182
      %s183 = sphi 0, %s180
      %s184 = sphi 0, %s183
      %s200 = sphi 0, %s184
      %s206 = sphi 0, %s208
      %s209 = sphi 0, %s206
      %s210 = sphi 0, %s209
      %s226 = sphi 0, %s210
      %s232 = sphi 0, %s234
      %s235 = sphi 0, %s232
      %s236 = sphi 0, %s235
      %s252 = sphi 0, %s236
      %s258 = sphi 0, %s260
      %s261 = sphi 0, %s258
      %s262 = sphi 0, %s261
      %s278 = sphi 0, %s262
    $region4: #{critic_forward.5} parent=1 // loop_header_branch
      %22 = sbr.rel (%p20) target = $region8
    $region5: #{critic_forward.5} parent=1 // loop_body
      %s24 = ssub.s32 %s19, 1
      %s25 = ssub.s32 %s19, 2
      %s26 = sadd.s32 %s19, 1
      %s27 = ssub.s32 %s19, %s26
      %p28 = scmp.eq.s32.totalorder %s27, 0
      %s30 = sadd.s32 %s29, 1
      %s31 = scalar_select %p28, %s29, %s30
      %p34 = pneg %p28
      %p35 = scmp.eq.s32.totalorder %s19, 1
      %p36 = por %p34, %p35
      %p37 = scmp.ne.s32.totalorder %s29, %s32
      %p38 = scmp.eq.s32.totalorder %s19, 0
      %p39 = por %p37, %p38
      %p40 = scmp.ne.s32.totalorder %s29, %s32
      %p41 = scmp.eq.s32.totalorder %s24, 1
      %p42 = por %p40, %p41
      %p43 = scmp.ne.s32.totalorder %s32, %s33
      %p44 = scmp.eq.s32.totalorder %s24, 0
      %p45 = por %p43, %p44
      %p46 = scmp.ne.s32.totalorder %s32, %s33
      %p47 = scmp.eq.s32.totalorder %s25, 1
      %p48 = por %p46, %p47
      %p50 = scmp.ne.s32.totalorder %s33, %s49
      %p51 = scmp.eq.s32.totalorder %s25, 0
      %p52 = por %p50, %p51
      %s54 = sadd.s32 %s53, 1
      %p57 = scmp.eq.s32.totalorder %s19, 1
      %p58 = scmp.ne.s32.totalorder %s53, %s55
      %p59 = scmp.eq.s32.totalorder %s19, 0
      %p60 = por %p58, %p59
      %p61 = scmp.ne.s32.totalorder %s53, %s55
      %p62 = scmp.eq.s32.totalorder %s24, 1
      %p63 = por %p61, %p62
      %p64 = scmp.ne.s32.totalorder %s55, %s56
      %p65 = scmp.eq.s32.totalorder %s24, 0
      %p66 = por %p64, %p65
      %p67 = scmp.ne.s32.totalorder %s55, %s56
      %p68 = scmp.eq.s32.totalorder %s25, 1
      %p69 = por %p67, %p68
      %p71 = scmp.ne.s32.totalorder %s56, %s70
      %p72 = scmp.eq.s32.totalorder %s25, 0
      %p73 = por %p71, %p72
      %s74 = ssub.s32 %s19, %s26
      %p75 = scmp.eq.s32.totalorder %s74, 0
      %s77 = sadd.s32 %s76, 1
      %s78 = scalar_select %p75, %s76, %s77
      %p81 = pneg %p75
      %p82 = scmp.eq.s32.totalorder %s19, 1
      %p83 = por %p81, %p82
      %p84 = scmp.ne.s32.totalorder %s76, %s79
      %p85 = scmp.eq.s32.totalorder %s19, 0
      %p86 = por %p84, %p85
      %p87 = scmp.ne.s32.totalorder %s76, %s79
      %p88 = scmp.eq.s32.totalorder %s24, 1
      %p89 = por %p87, %p88
      %p90 = scmp.ne.s32.totalorder %s79, %s80
      %p91 = scmp.eq.s32.totalorder %s24, 0
      %p92 = por %p90, %p91
      %p93 = scmp.ne.s32.totalorder %s79, %s80
      %p94 = scmp.eq.s32.totalorder %s25, 1
      %p95 = por %p93, %p94
      %p97 = scmp.ne.s32.totalorder %s80, %s96
      %p98 = scmp.eq.s32.totalorder %s25, 0
      %p99 = por %p97, %p98
      %s100 = ssub.s32 %s19, %s26
      %p101 = scmp.eq.s32.totalorder %s100, 0
      %s103 = sadd.s32 %s102, 1
      %s104 = scalar_select %p101, %s102, %s103
      %p107 = pneg %p101
      %p108 = scmp.eq.s32.totalorder %s19, 1
      %p109 = por %p107, %p108
      %p110 = scmp.ne.s32.totalorder %s102, %s105
      %p111 = scmp.eq.s32.totalorder %s19, 0
      %p112 = por %p110, %p111
      %p113 = scmp.ne.s32.totalorder %s102, %s105
      %p114 = scmp.eq.s32.totalorder %s24, 1
      %p115 = por %p113, %p114
      %p116 = scmp.ne.s32.totalorder %s105, %s106
      %p117 = scmp.eq.s32.totalorder %s24, 0
      %p118 = por %p116, %p117
      %p119 = scmp.ne.s32.totalorder %s105, %s106
      %p120 = scmp.eq.s32.totalorder %s25, 1
      %p121 = por %p119, %p120
      %p123 = scmp.ne.s32.totalorder %s106, %s122
      %p124 = scmp.eq.s32.totalorder %s25, 0
      %p125 = por %p123, %p124
      %s126 = ssub.s32 %s19, %s26
      %p127 = scmp.eq.s32.totalorder %s126, 0
      %s129 = sadd.s32 %s128, 1
      %s130 = scalar_select %p127, %s128, %s129
      %p133 = pneg %p127
      %p134 = scmp.eq.s32.totalorder %s19, 1
      %p135 = por %p133, %p134
      %p136 = scmp.ne.s32.totalorder %s128, %s131
      %p137 = scmp.eq.s32.totalorder %s19, 0
      %p138 = por %p136, %p137
      %p139 = scmp.ne.s32.totalorder %s128, %s131
      %p140 = scmp.eq.s32.totalorder %s24, 1
      %p141 = por %p139, %p140
      %p142 = scmp.ne.s32.totalorder %s131, %s132
      %p143 = scmp.eq.s32.totalorder %s24, 0
      %p144 = por %p142, %p143
      %p145 = scmp.ne.s32.totalorder %s131, %s132
      %p146 = scmp.eq.s32.totalorder %s25, 1
      %p147 = por %p145, %p146
      %p149 = scmp.ne.s32.totalorder %s132, %s148
      %p150 = scmp.eq.s32.totalorder %s25, 0
      %p151 = por %p149, %p150
      %s152 = ssub.s32 %s19, %s26
      %p153 = scmp.eq.s32.totalorder %s152, 0
      %s155 = sadd.s32 %s154, 1
      %s156 = scalar_select %p153, %s154, %s155
      %p159 = pneg %p153
      %p160 = scmp.eq.s32.totalorder %s19, 1
      %p161 = por %p159, %p160
      %p162 = scmp.ne.s32.totalorder %s154, %s157
      %p163 = scmp.eq.s32.totalorder %s19, 0
      %p164 = por %p162, %p163
      %p165 = scmp.ne.s32.totalorder %s154, %s157
      %p166 = scmp.eq.s32.totalorder %s24, 1
      %p167 = por %p165, %p166
      %p168 = scmp.ne.s32.totalorder %s157, %s158
      %p169 = scmp.eq.s32.totalorder %s24, 0
      %p170 = por %p168, %p169
      %p171 = scmp.ne.s32.totalorder %s157, %s158
      %p172 = scmp.eq.s32.totalorder %s25, 1
      %p173 = por %p171, %p172
      %p175 = scmp.ne.s32.totalorder %s158, %s174
      %p176 = scmp.eq.s32.totalorder %s25, 0
      %p177 = por %p175, %p176
      %s178 = ssub.s32 %s19, %s26
      %p179 = scmp.eq.s32.totalorder %s178, 0
      %s181 = sadd.s32 %s180, 1
      %s182 = scalar_select %p179, %s180, %s181
      %p185 = pneg %p179
      %p186 = scmp.eq.s32.totalorder %s19, 1
      %p187 = por %p185, %p186
      %p188 = scmp.ne.s32.totalorder %s180, %s183
      %p189 = scmp.eq.s32.totalorder %s19, 0
      %p190 = por %p188, %p189
      %p191 = scmp.ne.s32.totalorder %s180, %s183
      %p192 = scmp.eq.s32.totalorder %s24, 1
      %p193 = por %p191, %p192
      %p194 = scmp.ne.s32.totalorder %s183, %s184
      %p195 = scmp.eq.s32.totalorder %s24, 0
      %p196 = por %p194, %p195
      %p197 = scmp.ne.s32.totalorder %s183, %s184
      %p198 = scmp.eq.s32.totalorder %s25, 1
      %p199 = por %p197, %p198
      %p201 = scmp.ne.s32.totalorder %s184, %s200
      %p202 = scmp.eq.s32.totalorder %s25, 0
      %p203 = por %p201, %p202
      %s204 = ssub.s32 %s19, %s26
      %p205 = scmp.eq.s32.totalorder %s204, 0
      %s207 = sadd.s32 %s206, 1
      %s208 = scalar_select %p205, %s206, %s207
      %p211 = pneg %p205
      %p212 = scmp.eq.s32.totalorder %s19, 1
      %p213 = por %p211, %p212
      %p214 = scmp.ne.s32.totalorder %s206, %s209
      %p215 = scmp.eq.s32.totalorder %s19, 0
      %p216 = por %p214, %p215
      %p217 = scmp.ne.s32.totalorder %s206, %s209
      %p218 = scmp.eq.s32.totalorder %s24, 1
      %p219 = por %p217, %p218
      %p220 = scmp.ne.s32.totalorder %s209, %s210
      %p221 = scmp.eq.s32.totalorder %s24, 0
      %p222 = por %p220, %p221
      %p223 = scmp.ne.s32.totalorder %s209, %s210
      %p224 = scmp.eq.s32.totalorder %s25, 1
      %p225 = por %p223, %p224
      %p227 = scmp.ne.s32.totalorder %s210, %s226
      %p228 = scmp.eq.s32.totalorder %s25, 0
      %p229 = por %p227, %p228
      %s230 = ssub.s32 %s19, %s26
      %p231 = scmp.eq.s32.totalorder %s230, 0
      %s233 = sadd.s32 %s232, 1
      %s234 = scalar_select %p231, %s232, %s233
      %p237 = pneg %p231
      %p238 = scmp.eq.s32.totalorder %s19, 1
      %p239 = por %p237, %p238
      %p240 = scmp.ne.s32.totalorder %s232, %s235
      %p241 = scmp.eq.s32.totalorder %s19, 0
      %p242 = por %p240, %p241
      %p243 = scmp.ne.s32.totalorder %s232, %s235
      %p244 = scmp.eq.s32.totalorder %s24, 1
      %p245 = por %p243, %p244
      %p246 = scmp.ne.s32.totalorder %s235, %s236
      %p247 = scmp.eq.s32.totalorder %s24, 0
      %p248 = por %p246, %p247
      %p249 = scmp.ne.s32.totalorder %s235, %s236
      %p250 = scmp.eq.s32.totalorder %s25, 1
      %p251 = por %p249, %p250
      %p253 = scmp.ne.s32.totalorder %s236, %s252
      %p254 = scmp.eq.s32.totalorder %s25, 0
      %p255 = por %p253, %p254
      %s256 = ssub.s32 %s19, %s26
      %p257 = scmp.eq.s32.totalorder %s256, 0
      %s259 = sadd.s32 %s258, 1
      %s260 = scalar_select %p257, %s258, %s259
      %p263 = pneg %p257
      %p264 = scmp.eq.s32.totalorder %s19, 1
      %p265 = por %p263, %p264
      %p266 = scmp.ne.s32.totalorder %s258, %s261
      %p267 = scmp.eq.s32.totalorder %s19, 0
      %p268 = por %p266, %p267
      %p269 = scmp.ne.s32.totalorder %s258, %s261
      %p270 = scmp.eq.s32.totalorder %s24, 1
      %p271 = por %p269, %p270
      %p272 = scmp.ne.s32.totalorder %s261, %s262
      %p273 = scmp.eq.s32.totalorder %s24, 0
      %p274 = por %p272, %p273
      %p275 = scmp.ne.s32.totalorder %s261, %s262
      %p276 = scmp.eq.s32.totalorder %s25, 1
      %p277 = por %p275, %p276
      %p279 = scmp.ne.s32.totalorder %s262, %s278
      %p280 = scmp.eq.s32.totalorder %s25, 0
      %p281 = por %p279, %p280
      %p282 = scmp.le.s32.totalorder 1, %s19
      %p283 = scmp.lt.s32.totalorder %s19, 3
      %p284 = pnand %p282, %p283
      %p285 = pneg %p284
      // Predicated region
      $region9: #{critic_forward.5} parent=5 // pred_check
        _
      $region10: #{critic_forward.5} parent=5 // pred_check_branch
        %287 = sbr.rel (%p284) target = $region12
      $region11: #{critic_forward.5} parent=5 // pred_region
        %s288 = ssub.s32 %s19, 1
        // Predicated region
        $region13: #{critic_forward.5} parent=11 // pred_check
          %p289 = pneg %p66
        $region14: #{critic_forward.5} parent=11 // pred_check_branch
          %291 = sbr.rel (%p289) target = $region16
        $region15: #{critic_forward.5} parent=11 // pred_region
          %s293 = ssub.s32 32, 32
          %294 = vsyncadd [#allocation5], %s293
          %s296 = sshll.u32 [#allocation4], 4
          %s297 = int_to_ptr.vmem [resolvable:$true] %s296
          %299 = dma.hbm_to_vmem [thread:$0]  %s1, 32, %s297, [#allocation5]
        $region16: #{critic_forward.5} parent=11 // pred_fallthru
          _
      $region12: #{critic_forward.5} parent=5 // pred_fallthru
        _
      %p300 = scmp.lt.s32.totalorder %s19, 2
      // Predicated region
      $region17: #{critic_forward.5} parent=5 // pred_check
        %p301 = pneg %p300
      $region18: #{critic_forward.5} parent=5 // pred_check_branch
        %303 = sbr.rel (%p301) target = $region20
      $region19: #{critic_forward.5} parent=5 // pred_region
        // Predicated region
        $region21: #{critic_forward.5} parent=19 // pred_check
          %p304 = pneg %p39
        $region22: #{critic_forward.5} parent=19 // pred_check_branch
          %306 = sbr.rel (%p304) target = $region24
        $region23: #{critic_forward.5} parent=19 // pred_region
          %s307 = sand.u32 %s19, 1
          %s308 = scalar_lea.sflag [#allocation3], %s307
          %s309 = sand.u32 %s29, 1
          %s310 = smul.addr %s309, 4
          %s311 = scalar_lea.vmem [#allocation2], %s310
          %s313 = ssub.s32 64, 64
          %314 = vsyncadd %s308, %s313
          %s315 = smul.addr %s19, 4
          %s316 = smul.addr %s315, 16
          %s317 = scalar_lea.hbm %s0, %s316
          %s319 = sshll.u32 %s311, 4
          %s320 = int_to_ptr.vmem [resolvable:$true] %s319
          %322 = dma.hbm_to_vmem [thread:$0]  %s317, 64, %s320, %s308
        $region24: #{critic_forward.5} parent=19 // pred_fallthru
          _
        // Predicated region
        $region25: #{critic_forward.5} parent=19 // pred_check
          %p323 = pneg %p86
        $region26: #{critic_forward.5} parent=19 // pred_check_branch
          %325 = sbr.rel (%p323) target = $region28
        $region27: #{critic_forward.5} parent=19 // pred_region
          %p326 = scmp.lt.s32.totalorder %s19, 1
          %s327 = scalar_select %p326, %s19, 1
          %s328 = smul.addr %s327, 64
          %s329 = smul.addr %s328, 8
          %s330 = scalar_lea.vmem %s2, %s329
        $region28: #{critic_forward.5} parent=19 // pred_fallthru
          _
        // Predicated region
        $region29: #{critic_forward.5} parent=19 // pred_check
          %p331 = pneg %p112
        $region30: #{critic_forward.5} parent=19 // pred_check_branch
          %333 = sbr.rel (%p331) target = $region32
        $region31: #{critic_forward.5} parent=19 // pred_region
          %s334 = sand.u32 %s19, 1
          %s335 = scalar_lea.sflag [#allocation3], %s334
          %s336 = sand.u32 %s102, 1
          %s337 = smul.addr %s336, 4
          %s338 = scalar_lea.vmem [#allocation6], %s337
          %s340 = ssub.s32 64, 64
          %341 = vsyncadd %s335, %s340
          %s342 = smul.addr %s19, 64
          %s343 = scalar_lea.hbm %s3, %s342
          %s345 = sshll.u32 %s338, 4
          %s346 = int_to_ptr.vmem [resolvable:$true] %s345
          %348 = dma.hbm_to_vmem [thread:$0]  %s343, 64, %s346, %s335
        $region32: #{critic_forward.5} parent=19 // pred_fallthru
          _
        // Predicated region
        $region33: #{critic_forward.5} parent=19 // pred_check
          %p349 = pneg %p138
        $region34: #{critic_forward.5} parent=19 // pred_check_branch
          %351 = sbr.rel (%p349) target = $region36
        $region35: #{critic_forward.5} parent=19 // pred_region
          %s352 = sand.u32 %s19, 1
          %s353 = scalar_lea.sflag [#allocation3], %s352
          %s354 = sand.u32 %s128, 1
          %s355 = scalar_lea.vmem [#allocation7], %s354
          %s357 = ssub.s32 16, 16
          %358 = vsyncadd %s353, %s357
          %s359 = smul.addr %s19, 16
          %s360 = scalar_lea.hbm %s4, %s359
          %s362 = sshll.u32 %s355, 4
          %s363 = int_to_ptr.vmem [resolvable:$true] %s362
          %365 = dma.hbm_to_vmem [thread:$0]  %s360, 16, %s363, %s353
        $region36: #{critic_forward.5} parent=19 // pred_fallthru
          _
        // Predicated region
        $region37: #{critic_forward.5} parent=19 // pred_check
          %p366 = pneg %p164
        $region38: #{critic_forward.5} parent=19 // pred_check_branch
          %368 = sbr.rel (%p366) target = $region40
        $region39: #{critic_forward.5} parent=19 // pred_region
          %p369 = scmp.lt.s32.totalorder %s19, 1
          %s370 = scalar_select %p369, %s19, 1
          %s371 = smul.addr %s370, 5
          %s372 = smul.addr %s371, 8
          %s373 = scalar_lea.vmem %s5, %s372
        $region40: #{critic_forward.5} parent=19 // pred_fallthru
          _
        // Predicated region
        $region41: #{critic_forward.5} parent=19 // pred_check
          %p374 = pneg %p190
        $region42: #{critic_forward.5} parent=19 // pred_check_branch
          %376 = sbr.rel (%p374) target = $region44
        $region43: #{critic_forward.5} parent=19 // pred_region
          %s377 = sand.u32 %s19, 1
          %s378 = scalar_lea.sflag [#allocation3], %s377
          %s379 = sand.u32 %s180, 1
          %s380 = scalar_lea.vmem [#allocation8], %s379
          %s382 = ssub.s32 16, 16
          %383 = vsyncadd %s378, %s382
          %s384 = smul.addr %s19, 16
          %s385 = scalar_lea.hbm %s6, %s384
          %s387 = sshll.u32 %s380, 4
          %s388 = int_to_ptr.vmem [resolvable:$true] %s387
          %390 = dma.hbm_to_vmem [thread:$0]  %s385, 16, %s388, %s378
        $region44: #{critic_forward.5} parent=19 // pred_fallthru
          _
        // Predicated region
        $region45: #{critic_forward.5} parent=19 // pred_check
          %p391 = pneg %p216
        $region46: #{critic_forward.5} parent=19 // pred_check_branch
          %393 = sbr.rel (%p391) target = $region48
        $region47: #{critic_forward.5} parent=19 // pred_region
          %p394 = scmp.lt.s32.totalorder %s19, 1
          %s395 = scalar_select %p394, %s19, 1
          %s396 = smul.addr %s395, 4
          %s397 = smul.addr %s396, 8
          %s398 = scalar_lea.vmem %s7, %s397
        $region48: #{critic_forward.5} parent=19 // pred_fallthru
          _
        // Predicated region
        $region49: #{critic_forward.5} parent=19 // pred_check
          %p399 = pneg %p242
        $region50: #{critic_forward.5} parent=19 // pred_check_branch
          %401 = sbr.rel (%p399) target = $region52
        $region51: #{critic_forward.5} parent=19 // pred_region
          %s402 = sand.u32 %s19, 1
          %s403 = scalar_lea.sflag [#allocation3], %s402
          %s404 = sand.u32 %s232, 1
          %s405 = scalar_lea.vmem [#allocation9], %s404
          %s407 = ssub.s32 16, 16
          %408 = vsyncadd %s403, %s407
          %s409 = smul.addr %s19, 16
          %s410 = scalar_lea.hbm %s8, %s409
          %s412 = sshll.u32 %s405, 4
          %s413 = int_to_ptr.vmem [resolvable:$true] %s412
          %415 = dma.hbm_to_vmem [thread:$0]  %s410, 16, %s413, %s403
        $region52: #{critic_forward.5} parent=19 // pred_fallthru
          _
      $region20: #{critic_forward.5} parent=5 // pred_fallthru
        _
      %p416 = scmp.le.s32.totalorder 1, %s19
      %p417 = scmp.lt.s32.totalorder %s19, 3
      %p418 = pnand %p416, %p417
      %p419 = pneg %p418
      // Predicated region
      $region53: #{critic_forward.5} parent=5 // pred_check
        _
      $region54: #{critic_forward.5} parent=5 // pred_check_branch
        %421 = sbr.rel (%p418) target = $region56
      $region55: #{critic_forward.5} parent=5 // pred_region
        %s422 = ssub.s32 %s19, 1
        %s423 = sand.u32 %s24, 1
        %s424 = scalar_lea.sflag [#allocation3], %s423
        %s425 = sand.u32 %s32, 1
        %s426 = smul.addr %s425, 4
        %s427 = scalar_lea.vmem [#allocation2], %s426
        // Predicated region
        $region57: #{critic_forward.5} parent=55 // pred_check
          %p428 = pneg %p45
        $region58: #{critic_forward.5} parent=55 // pred_check_branch
          %430 = sbr.rel (%p428) target = $region60
        $region59: #{critic_forward.5} parent=55 // pred_region
          %431 = dma.done %s424, 64
        $region60: #{critic_forward.5} parent=55 // pred_fallthru
          _
        // Predicated region
        $region61: #{critic_forward.5} parent=55 // pred_check
          %p432 = pneg %p66
        $region62: #{critic_forward.5} parent=55 // pred_check_branch
          %434 = sbr.rel (%p432) target = $region64
        $region63: #{critic_forward.5} parent=55 // pred_region
          %435 = dma.done [#allocation5], 32
        $region64: #{critic_forward.5} parent=55 // pred_fallthru
          _
        %s436 = sand.u32 %s24, 1
        %s437 = scalar_lea.sflag [#allocation3], %s436
        %s438 = sand.u32 %s105, 1
        %s439 = smul.addr %s438, 4
        %s440 = scalar_lea.vmem [#allocation6], %s439
        // Predicated region
        $region65: #{critic_forward.5} parent=55 // pred_check
          %p441 = pneg %p118
        $region66: #{critic_forward.5} parent=55 // pred_check_branch
          %443 = sbr.rel (%p441) target = $region68
        $region67: #{critic_forward.5} parent=55 // pred_region
          %444 = dma.done %s437, 64
        $region68: #{critic_forward.5} parent=55 // pred_fallthru
          _
        %s445 = sand.u32 %s24, 1
        %s446 = scalar_lea.sflag [#allocation3], %s445
        %s447 = sand.u32 %s131, 1
        %s448 = scalar_lea.vmem [#allocation7], %s447
        // Predicated region
        $region69: #{critic_forward.5} parent=55 // pred_check
          %p449 = pneg %p144
        $region70: #{critic_forward.5} parent=55 // pred_check_branch
          %451 = sbr.rel (%p449) target = $region72
        $region71: #{critic_forward.5} parent=55 // pred_region
          %452 = dma.done %s446, 16
        $region72: #{critic_forward.5} parent=55 // pred_fallthru
          _
        %s453 = sand.u32 %s24, 1
        %s454 = scalar_lea.sflag [#allocation3], %s453
        %s455 = sand.u32 %s183, 1
        %s456 = scalar_lea.vmem [#allocation8], %s455
        // Predicated region
        $region73: #{critic_forward.5} parent=55 // pred_check
          %p457 = pneg %p196
        $region74: #{critic_forward.5} parent=55 // pred_check_branch
          %459 = sbr.rel (%p457) target = $region76
        $region75: #{critic_forward.5} parent=55 // pred_region
          %460 = dma.done %s454, 16
        $region76: #{critic_forward.5} parent=55 // pred_fallthru
          _
        %s461 = sand.u32 %s24, 1
        %s462 = scalar_lea.sflag [#allocation3], %s461
        %s463 = sand.u32 %s235, 1
        %s464 = scalar_lea.vmem [#allocation9], %s463
        // Predicated region
        $region77: #{critic_forward.5} parent=55 // pred_check
          %p465 = pneg %p248
        $region78: #{critic_forward.5} parent=55 // pred_check_branch
          %467 = sbr.rel (%p465) target = $region80
        $region79: #{critic_forward.5} parent=55 // pred_region
          %468 = dma.done %s462, 16
        $region80: #{critic_forward.5} parent=55 // pred_fallthru
          _
        %s469 = sand.u32 %s24, 1
        %s470 = scalar_lea.sflag [#allocation3], %s469
        %s471 = sand.u32 %s32, 1
        %s472 = smul.addr %s471, 4
        %s473 = scalar_lea.vmem [#allocation2], %s472
        %p474 = pneg %p45
        %p475 = pneg %p42
        %p476 = pneg %p66
        %p477 = pneg %p63
        %p478 = scmp.lt.s32.totalorder %s24, 1
        %s479 = scalar_select %p478, %s24, 1
        %s480 = smul.addr %s479, 64
        %s481 = smul.addr %s480, 8
        %s482 = scalar_lea.vmem %s2, %s481
        %p483 = pneg %p92
        %p484 = pneg %p89
        %s485 = sand.u32 %s24, 1
        %s486 = scalar_lea.sflag [#allocation3], %s485
        %s487 = sand.u32 %s105, 1
        %s488 = smul.addr %s487, 4
        %s489 = scalar_lea.vmem [#allocation6], %s488
        %p490 = pneg %p118
        %p491 = pneg %p115
        %s492 = sand.u32 %s24, 1
        %s493 = scalar_lea.sflag [#allocation3], %s492
        %s494 = sand.u32 %s131, 1
        %s495 = scalar_lea.vmem [#allocation7], %s494
        %p496 = pneg %p144
        %p497 = pneg %p141
        %p498 = scmp.lt.s32.totalorder %s24, 1
        %s499 = scalar_select %p498, %s24, 1
        %s500 = smul.addr %s499, 5
        %s501 = smul.addr %s500, 8
        %s502 = scalar_lea.vmem %s5, %s501
        %p503 = pneg %p170
        %p504 = pneg %p167
        %s505 = sand.u32 %s24, 1
        %s506 = scalar_lea.sflag [#allocation3], %s505
        %s507 = sand.u32 %s183, 1
        %s508 = scalar_lea.vmem [#allocation8], %s507
        %p509 = pneg %p196
        %p510 = pneg %p193
        %p511 = scmp.lt.s32.totalorder %s24, 1
        %s512 = scalar_select %p511, %s24, 1
        %s513 = smul.addr %s512, 4
        %s514 = smul.addr %s513, 8
        %s515 = scalar_lea.vmem %s7, %s514
        %p516 = pneg %p222
        %p517 = pneg %p219
        %s518 = sand.u32 %s24, 1
        %s519 = scalar_lea.sflag [#allocation3], %s518
        %s520 = sand.u32 %s235, 1
        %s521 = scalar_lea.vmem [#allocation9], %s520
        %p522 = pneg %p248
        %p523 = pneg %p245
        %p524 = pneg %p274
        %p525 = pneg %p271
        %p526 = scmp.lt.s32.totalorder %s24, 1
        %s527 = scalar_select %p526, %s24, 1
        %s528 = smul.addr %s527, 2
        %s529 = scalar_lea.vmem %s9, %s528
        %p530 = scmp.lt.s32.totalorder %s24, 1
        %s531 = scalar_select %p530, %s24, 1
        %s532 = smul.addr %s531, 64
        %s533 = smul.addr %s532, 8
        %s534 = scalar_lea.vmem %s2, %s533
        %p535 = scmp.lt.s32.totalorder %s24, 1
        %s536 = scalar_select %p535, %s24, 1
        %s537 = smul.addr %s536, 5
        %s538 = smul.addr %s537, 8
        %s539 = scalar_lea.vmem %s5, %s538
        %p540 = scmp.lt.s32.totalorder %s24, 1
        %s541 = scalar_select %p540, %s24, 1
        %s542 = smul.addr %s541, 4
        %s543 = smul.addr %s542, 8
        %s544 = scalar_lea.vmem %s7, %s543
        %p545 = scmp.lt.s32.totalorder %s24, 1
        %s546 = scalar_select %p545, %s24, 1
        %s547 = smul.addr %s546, 2
        %s548 = scalar_lea.vmem %s9, %s547
        %v549 = vld [vmem:[%s427] sm:$0xf]
        %v550 = vunpack.c.l.bf16 %v549
        %v551 = vld [vmem:[#allocation4] sm:$0x3]
        %v552 = vld [vmem:[%s534] sm:$0xff]
        %v553 = vld [vmem:[%s534 + $0x8] sm:$0xff]
        %v554 = vld [vmem:[%s534 + $0x10] sm:$0xff]
        %v555 = vld [vmem:[%s534 + $0x18] sm:$0xff]
        %v556 = vld [vmem:[%s534 + $0x20] sm:$0xff]
        %v557 = vld [vmem:[%s534 + $0x28] sm:$0xff]
        %v558 = vld [vmem:[%s534 + $0x30] sm:$0xff]
        %v559 = vld [vmem:[%s534 + $0x38] sm:$0xff]
        %v560 = vld [vmem:[%s534 + $0x40] sm:$0xff]
        %v561 = vld [vmem:[%s534 + $0x48] sm:$0xff]
        %v562 = vld [vmem:[%s534 + $0x50] sm:$0xff]
        %v563 = vld [vmem:[%s534 + $0x58] sm:$0xff]
        %v564 = vld [vmem:[%s534 + $0x60] sm:$0xff]
        %v565 = vld [vmem:[%s534 + $0x68] sm:$0xff]
        %v566 = vld [vmem:[%s534 + $0x70] sm:$0xff]
        %v567 = vld [vmem:[%s534 + $0x78] sm:$0xff]
        %v568 = vld [vmem:[%s534 + $0x80] sm:$0xff]
        %v569 = vld [vmem:[%s534 + $0x88] sm:$0xff]
        %v570 = vld [vmem:[%s534 + $0x90] sm:$0xff]
        %v571 = vld [vmem:[%s534 + $0x98] sm:$0xff]
        %v572 = vld [vmem:[%s534 + $0xa0] sm:$0xff]
        %v573 = vld [vmem:[%s534 + $0xa8] sm:$0xff]
        %v574 = vld [vmem:[%s534 + $0xb0] sm:$0xff]
        %v575 = vld [vmem:[%s534 + $0xb8] sm:$0xff]
        %v576 = vld [vmem:[%s534 + $0xc0] sm:$0xff]
        %v577 = vld [vmem:[%s534 + $0xc8] sm:$0xff]
        %v578 = vld [vmem:[%s534 + $0xd0] sm:$0xff]
        %v579 = vld [vmem:[%s534 + $0xd8] sm:$0xff]
        %v580 = vld [vmem:[%s534 + $0xe0] sm:$0xff]
        %v581 = vld [vmem:[%s534 + $0xe8] sm:$0xff]
        %v582 = vld [vmem:[%s534 + $0xf0] sm:$0xff]
        %v583 = vld [vmem:[%s534 + $0xf8] sm:$0xff]
        %v584 = vld [vmem:[%s534 + $0x100] sm:$0xff]
        %v585 = vld [vmem:[%s534 + $0x108] sm:$0xff]
        %v586 = vld [vmem:[%s534 + $0x110] sm:$0xff]
        %v587 = vld [vmem:[%s534 + $0x118] sm:$0xff]
        %v588 = vld [vmem:[%s534 + $0x120] sm:$0xff]
        %v589 = vld [vmem:[%s534 + $0x128] sm:$0xff]
        %v590 = vld [vmem:[%s534 + $0x130] sm:$0xff]
        %v591 = vld [vmem:[%s534 + $0x138] sm:$0xff]
        %v592 = vld [vmem:[%s534 + $0x140] sm:$0xff]
        %v593 = vld [vmem:[%s534 + $0x148] sm:$0xff]
        %v594 = vld [vmem:[%s534 + $0x150] sm:$0xff]
        %v595 = vld [vmem:[%s534 + $0x158] sm:$0xff]
        %v596 = vld [vmem:[%s534 + $0x160] sm:$0xff]
        %v597 = vld [vmem:[%s534 + $0x168] sm:$0xff]
        %v598 = vld [vmem:[%s534 + $0x170] sm:$0xff]
        %v599 = vld [vmem:[%s534 + $0x178] sm:$0xff]
        %v600 = vld [vmem:[%s534 + $0x180] sm:$0xff]
        %v601 = vld [vmem:[%s534 + $0x188] sm:$0xff]
        %v602 = vld [vmem:[%s534 + $0x190] sm:$0xff]
        %v603 = vld [vmem:[%s534 + $0x198] sm:$0xff]
        %v604 = vld [vmem:[%s534 + $0x1a0] sm:$0xff]
        %v605 = vld [vmem:[%s534 + $0x1a8] sm:$0xff]
        %v606 = vld [vmem:[%s534 + $0x1b0] sm:$0xff]
        %v607 = vld [vmem:[%s534 + $0x1b8] sm:$0xff]
        %v608 = vld [vmem:[%s534 + $0x1c0] sm:$0xff]
        %v609 = vld [vmem:[%s534 + $0x1c8] sm:$0xff]
        %v610 = vld [vmem:[%s534 + $0x1d0] sm:$0xff]
        %v611 = vld [vmem:[%s534 + $0x1d8] sm:$0xff]
        %v612 = vld [vmem:[%s534 + $0x1e0] sm:$0xff]
        %v613 = vld [vmem:[%s534 + $0x1e8] sm:$0xff]
        %v614 = vld [vmem:[%s534 + $0x1f0] sm:$0xff]
        %v615 = vld [vmem:[%s534 + $0x1f8] sm:$0xff]
        %v616 = vld [vmem:[%s440] sm:$0xf]
        %vm617 = vcmask 31744
        %v619 = vsel %vm617, %v551, 0
        %vm621 = vcmask 1043456
        %v623 = vsel %vm621, %v616, 0
        %625 = vmatprep.subr.mxu0 0.0
        %626 = vmatpush1.msra.mxu0 %v623
        %627 = vmatprep.subr.mxu0 0.0
        %628 = vmatpush1.msra.mxu0 0.0
        %629 = vmatprep.subr.mxu0 0.0
        %630 = vmatpush1.msra.mxu0 0.0
        %631 = vmatprep.subr.mxu0 0.0
        %632 = vmatpush1.msra.mxu0 0.0
        %633 = vmatprep.subr.mxu0 0.0
        %634 = vmatpush1.msra.mxu0 0.0
        %635 = vmatprep.subr.mxu0 0.0
        %636 = vmatpush1.msra.mxu0 0.0
        %637 = vmatprep.subr.mxu0 0.0
        %638 = vmatpush1.msra.mxu0 0.0
        %639 = vmatprep.subr.mxu0 0.0
        %640 = vmatpush1.msra.mxu0 0.0
        %641 = vmatprep.subr.mxu0 0.0
        %642 = vmatpush1.msra.mxu0 0.0
        %643 = vmatprep.subr.mxu0 0.0
        %644 = vmatpush1.msra.mxu0 0.0
        %645 = vmatprep.subr.mxu0 0.0
        %646 = vmatpush1.msra.mxu0 0.0
        %647 = vmatprep.subr.mxu0 0.0
        %648 = vmatpush1.msra.mxu0 0.0
        %649 = vmatprep.subr.mxu0 0.0
        %650 = vmatpush1.msra.mxu0 0.0
        %651 = vmatprep.subr.mxu0 0.0
        %652 = vmatpush1.msra.mxu0 0.0
        %653 = vmatprep.subr.mxu0 0.0
        %654 = vmatpush1.msra.mxu0 0.0
        %655 = vmatprep.subr.mxu0 0.0
        %656 = vmatpush1.msra.mxu0 0.0
        %657 = vmatprep.subr.mxu0 0.0
        %658 = vmatpush1.msra.mxu0 0.0
        %659 = vmatprep.subr.mxu0 0.0
        %660 = vmatpush1.msra.mxu0 0.0
        %661 = vmatprep.subr.mxu0 0.0
        %662 = vmatpush1.msra.mxu0 0.0
        %663 = vmatprep.subr.mxu0 0.0
        %664 = vmatpush1.msra.mxu0 0.0
        %665 = vmatprep.subr.mxu0 0.0
        %666 = vmatpush1.msra.mxu0 0.0
        %667 = vmatprep.subr.mxu0 0.0
        %668 = vmatpush1.msra.mxu0 0.0
        %669 = vmatprep.subr.mxu0 0.0
        %670 = vmatpush1.msra.mxu0 0.0
        %671 = vmatprep.subr.mxu0 0.0
        %672 = vmatpush1.msra.mxu0 0.0
        %673 = vmatprep.subr.mxu0 0.0
        %674 = vmatpush1.msra.mxu0 0.0
        %675 = vmatprep.subr.mxu0 0.0
        %676 = vmatpush1.msra.mxu0 0.0
        %677 = vmatprep.subr.mxu0 0.0
        %678 = vmatpush1.msra.mxu0 0.0
        %679 = vmatprep.subr.mxu0 0.0
        %680 = vmatpush1.msra.mxu0 0.0
        %681 = vmatprep.subr.mxu0 0.0
        %682 = vmatpush1.msra.mxu0 0.0
        %683 = vmatprep.subr.mxu0 0.0
        %684 = vmatpush1.msra.mxu0 0.0
        %685 = vmatprep.subr.mxu0 0.0
        %686 = vmatpush1.msra.mxu0 0.0
        %687 = vmatprep.subr.mxu0 0.0
        %688 = vmatpush1.msra.mxu0 0.0
        %689 = vmatprep.mubr.f32.mxu0 0.0
        %690 = vmatmul.mubr.f32.gmra.mrb[0].mxu0 %v619
        %v691 = vpop.f32.mrb[0].mxu0
        %v692 = vadd.f32 0.0, %v691
        %v693 = vpop.f32.mrb[0].mxu0
        %694 = vdwg.mxu0
        %v696 = vcombine.high %v550, %v550
        %v698 = vunpack.c.l.s4 1983009808
        %v699 = vunpack.c.0.s8 %v698
        %v700 = vlaneseq
        %v701 = vshrl.u32 %v700, 7
        %v702 = vsub.s32 %v699, %v701
        %v703 = vrot.slane %v550, %v702
        %v705 = vunpack.c.l.s4 1983009808
        %v706 = vunpack.c.0.s8 %v705
        %v707 = vlaneseq
        %v708 = vshrl.u32 %v707, 7
        %v709 = vsub.s32 %v706, %v708
        %v710 = vrot.slane %v696, %v709
        %v711 = vcombine.high %v703, %v703
        %v712 = vcombine.high %v710, %v710
        %717 = vmatprep.subr.mxu0 0.0
        %718 = vmatpush1.msra.mxu0 %v552
        %719 = vmatprep.subr.mxu0 0.0
        %720 = vmatpush1.msra.mxu0 %v553
        %721 = vmatprep.subr.mxu0 0.0
        %722 = vmatpush1.msra.mxu0 %v554
        %723 = vmatprep.subr.mxu0 0.0
        %724 = vmatpush1.msra.mxu0 %v555
        %725 = vmatprep.subr.mxu0 0.0
        %726 = vmatpush1.msra.mxu0 %v556
        %727 = vmatprep.subr.mxu0 0.0
        %728 = vmatpush1.msra.mxu0 %v557
        %729 = vmatprep.subr.mxu0 0.0
        %730 = vmatpush1.msra.mxu0 %v558
        %731 = vmatprep.subr.mxu0 0.0
        %732 = vmatpush1.msra.mxu0 %v559
        %733 = vmatprep.subr.mxu0 0.0
        %734 = vmatpush1.msra.mxu0 %v560
        %735 = vmatprep.subr.mxu0 0.0
        %736 = vmatpush1.msra.mxu0 %v561
        %737 = vmatprep.subr.mxu0 0.0
        %738 = vmatpush1.msra.mxu0 %v562
        %739 = vmatprep.subr.mxu0 0.0
        %740 = vmatpush1.msra.mxu0 %v563
        %741 = vmatprep.subr.mxu0 0.0
        %742 = vmatpush1.msra.mxu0 %v564
        %743 = vmatprep.subr.mxu0 0.0
        %744 = vmatpush1.msra.mxu0 %v565
        %745 = vmatprep.subr.mxu0 0.0
        %746 = vmatpush1.msra.mxu0 %v566
        %747 = vmatprep.subr.mxu0 0.0
        %748 = vmatpush1.msra.mxu0 %v567
        %749 = vmatprep.subr.mxu0 0.0
        %750 = vmatpush1.msra.mxu0 %v568
        %751 = vmatprep.subr.mxu0 0.0
        %752 = vmatpush1.msra.mxu0 %v569
        %753 = vmatprep.subr.mxu0 0.0
        %754 = vmatpush1.msra.mxu0 %v570
        %755 = vmatprep.subr.mxu0 0.0
        %756 = vmatpush1.msra.mxu0 %v571
        %757 = vmatprep.subr.mxu0 0.0
        %758 = vmatpush1.msra.mxu0 %v572
        %759 = vmatprep.subr.mxu0 0.0
        %760 = vmatpush1.msra.mxu0 %v573
        %761 = vmatprep.subr.mxu0 0.0
        %762 = vmatpush1.msra.mxu0 %v574
        %763 = vmatprep.subr.mxu0 0.0
        %764 = vmatpush1.msra.mxu0 %v575
        %765 = vmatprep.subr.mxu0 0.0
        %766 = vmatpush1.msra.mxu0 %v576
        %767 = vmatprep.subr.mxu0 0.0
        %768 = vmatpush1.msra.mxu0 %v577
        %769 = vmatprep.subr.mxu0 0.0
        %770 = vmatpush1.msra.mxu0 %v578
        %771 = vmatprep.subr.mxu0 0.0
        %772 = vmatpush1.msra.mxu0 %v579
        %773 = vmatprep.subr.mxu0 0.0
        %774 = vmatpush1.msra.mxu0 %v580
        %775 = vmatprep.subr.mxu0 0.0
        %776 = vmatpush1.msra.mxu0 %v581
        %777 = vmatprep.subr.mxu0 0.0
        %778 = vmatpush1.msra.mxu0 %v582
        %779 = vmatprep.subr.mxu0 0.0
        %780 = vmatpush1.msra.mxu0 %v583
        %781 = vmatprep.mubr.f32.mxu0 %v711
        %782 = vmatmul.mubr.f32.gmra.mrb[0].mxu0 %v703
        %v783 = vpop.f32.mrb[0].mxu0
        %v784 = vadd.f32 %v692, %v783
        %v785 = vpop.f32.mrb[0].mxu0
        %786 = vdwg.mxu0
        %787 = vmatprep.subr.mxu0 0.0
        %788 = vmatpush1.msra.mxu0 %v584
        %789 = vmatprep.subr.mxu0 0.0
        %790 = vmatpush1.msra.mxu0 %v585
        %791 = vmatprep.subr.mxu0 0.0
        %792 = vmatpush1.msra.mxu0 %v586
        %793 = vmatprep.subr.mxu0 0.0
        %794 = vmatpush1.msra.mxu0 %v587
        %795 = vmatprep.subr.mxu0 0.0
        %796 = vmatpush1.msra.mxu0 %v588
        %797 = vmatprep.subr.mxu0 0.0
        %798 = vmatpush1.msra.mxu0 %v589
        %799 = vmatprep.subr.mxu0 0.0
        %800 = vmatpush1.msra.mxu0 %v590
        %801 = vmatprep.subr.mxu0 0.0
        %802 = vmatpush1.msra.mxu0 %v591
        %803 = vmatprep.subr.mxu0 0.0
        %804 = vmatpush1.msra.mxu0 %v592
        %805 = vmatprep.subr.mxu0 0.0
        %806 = vmatpush1.msra.mxu0 %v593
        %807 = vmatprep.subr.mxu0 0.0
        %808 = vmatpush1.msra.mxu0 %v594
        %809 = vmatprep.subr.mxu0 0.0
        %810 = vmatpush1.msra.mxu0 %v595
        %811 = vmatprep.subr.mxu0 0.0
        %812 = vmatpush1.msra.mxu0 %v596
        %813 = vmatprep.subr.mxu0 0.0
        %814 = vmatpush1.msra.mxu0 %v597
        %815 = vmatprep.subr.mxu0 0.0
        %816 = vmatpush1.msra.mxu0 %v598
        %817 = vmatprep.subr.mxu0 0.0
        %818 = vmatpush1.msra.mxu0 %v599
        %819 = vmatprep.subr.mxu0 0.0
        %820 = vmatpush1.msra.mxu0 %v600
        %821 = vmatprep.subr.mxu0 0.0
        %822 = vmatpush1.msra.mxu0 %v601
        %823 = vmatprep.subr.mxu0 0.0
        %824 = vmatpush1.msra.mxu0 %v602
        %825 = vmatprep.subr.mxu0 0.0
        %826 = vmatpush1.msra.mxu0 %v603
        %827 = vmatprep.subr.mxu0 0.0
        %828 = vmatpush1.msra.mxu0 %v604
        %829 = vmatprep.subr.mxu0 0.0
        %830 = vmatpush1.msra.mxu0 %v605
        %831 = vmatprep.subr.mxu0 0.0
        %832 = vmatpush1.msra.mxu0 %v606
        %833 = vmatprep.subr.mxu0 0.0
        %834 = vmatpush1.msra.mxu0 %v607
        %835 = vmatprep.subr.mxu0 0.0
        %836 = vmatpush1.msra.mxu0 %v608
        %837 = vmatprep.subr.mxu0 0.0
        %838 = vmatpush1.msra.mxu0 %v609
        %839 = vmatprep.subr.mxu0 0.0
        %840 = vmatpush1.msra.mxu0 %v610
        %841 = vmatprep.subr.mxu0 0.0
        %842 = vmatpush1.msra.mxu0 %v611
        %843 = vmatprep.subr.mxu0 0.0
        %844 = vmatpush1.msra.mxu0 %v612
        %845 = vmatprep.subr.mxu0 0.0
        %846 = vmatpush1.msra.mxu0 %v613
        %847 = vmatprep.subr.mxu0 0.0
        %848 = vmatpush1.msra.mxu0 %v614
        %849 = vmatprep.subr.mxu0 0.0
        %850 = vmatpush1.msra.mxu0 %v615
        %851 = vmatprep.mubr.f32.mxu0 %v712
        %852 = vmatmul.mubr.f32.gmra.mrb[0].mxu0 %v710
        %v853 = vpop.f32.mrb[0].mxu0
        %v854 = vadd.f32 %v784, %v853
        %v855 = vpop.f32.mrb[0].mxu0
        %856 = vdwg.mxu0
        %v857 = vld [vmem:[%s448] sm:$0x1]
        %v859 = vlaneseq
        %v860 = vshrl.u32 %v859, 7
        %v861 = vsub.s32 0, %v860
        %v862 = vrot.slane %v857, %v861
        %v864 = vadd.f32 %v854, %v862
        %vm865 = vcmp.gt.f32.partialorder %v864, 0.0
        %v866 = vmul.f32 %v864, 0.01
        %v867 = vsel %vm865, %v864, %v866
        %v868 = vld [vmem:[%s539] sm:$0xff]
        %v869 = vld [vmem:[%s539 + $0x8] sm:$0xff]
        %v870 = vld [vmem:[%s539 + $0x10] sm:$0xff]
        %v871 = vld [vmem:[%s539 + $0x18] sm:$0xff]
        %v872 = vld [vmem:[%s539 + $0x20] sm:$0xff]
        %v873 = vld [vmem:[%s456] sm:$0x1]
        %v875 = vlaneseq
        %v876 = vshrl.u32 %v875, 7
        %v877 = vsub.s32 0, %v876
        %v878 = vrot.slane %v873, %v877
        %vm880 = vcmask 326656
        %v882 = vsel %vm880, %v867, 0
        %884 = vmatprep.subr.mxu0 0.0
        %885 = vmatpush1.msra.mxu0 %v868
        %886 = vmatprep.subr.mxu0 0.0
        %887 = vmatpush1.msra.mxu0 %v869
        %888 = vmatprep.subr.mxu0 0.0
        %889 = vmatpush1.msra.mxu0 %v870
        %890 = vmatprep.subr.mxu0 0.0
        %891 = vmatpush1.msra.mxu0 %v871
        %892 = vmatprep.subr.mxu0 0.0
        %893 = vmatpush1.msra.mxu0 %v872
        %894 = vmatprep.subr.mxu0 0.0
        %895 = vmatpush1.msra.mxu0 0.0
        %896 = vmatprep.subr.mxu0 0.0
        %897 = vmatpush1.msra.mxu0 0.0
        %898 = vmatprep.subr.mxu0 0.0
        %899 = vmatpush1.msra.mxu0 0.0
        %900 = vmatprep.subr.mxu0 0.0
        %901 = vmatpush1.msra.mxu0 0.0
        %902 = vmatprep.subr.mxu0 0.0
        %903 = vmatpush1.msra.mxu0 0.0
        %904 = vmatprep.subr.mxu0 0.0
        %905 = vmatpush1.msra.mxu0 0.0
        %906 = vmatprep.subr.mxu0 0.0
        %907 = vmatpush1.msra.mxu0 0.0
        %908 = vmatprep.subr.mxu0 0.0
        %909 = vmatpush1.msra.mxu0 0.0
        %910 = vmatprep.subr.mxu0 0.0
        %911 = vmatpush1.msra.mxu0 0.0
        %912 = vmatprep.subr.mxu0 0.0
        %913 = vmatpush1.msra.mxu0 0.0
        %914 = vmatprep.subr.mxu0 0.0
        %915 = vmatpush1.msra.mxu0 0.0
        %916 = vmatprep.subr.mxu0 0.0
        %917 = vmatpush1.msra.mxu0 0.0
        %918 = vmatprep.subr.mxu0 0.0
        %919 = vmatpush1.msra.mxu0 0.0
        %920 = vmatprep.subr.mxu0 0.0
        %921 = vmatpush1.msra.mxu0 0.0
        %922 = vmatprep.subr.mxu0 0.0
        %923 = vmatpush1.msra.mxu0 0.0
        %924 = vmatprep.subr.mxu0 0.0
        %925 = vmatpush1.msra.mxu0 0.0
        %926 = vmatprep.subr.mxu0 0.0
        %927 = vmatpush1.msra.mxu0 0.0
        %928 = vmatprep.subr.mxu0 0.0
        %929 = vmatpush1.msra.mxu0 0.0
        %930 = vmatprep.subr.mxu0 0.0
        %931 = vmatpush1.msra.mxu0 0.0
        %932 = vmatprep.subr.mxu0 0.0
        %933 = vmatpush1.msra.mxu0 0.0
        %934 = vmatprep.subr.mxu0 0.0
        %935 = vmatpush1.msra.mxu0 0.0
        %936 = vmatprep.subr.mxu0 0.0
        %937 = vmatpush1.msra.mxu0 0.0
        %938 = vmatprep.subr.mxu0 0.0
        %939 = vmatpush1.msra.mxu0 0.0
        %940 = vmatprep.subr.mxu0 0.0
        %941 = vmatpush1.msra.mxu0 0.0
        %942 = vmatprep.subr.mxu0 0.0
        %943 = vmatpush1.msra.mxu0 0.0
        %944 = vmatprep.subr.mxu0 0.0
        %945 = vmatpush1.msra.mxu0 0.0
        %946 = vmatprep.subr.mxu0 0.0
        %947 = vmatpush1.msra.mxu0 0.0
        %948 = vmatprep.mubr.f32.mxu0 0.0
        %949 = vmatmul.mubr.f32.gmra.mrb[0].mxu0 %v882
        %v950 = vpop.f32.mrb[0].mxu0
        %v951 = vadd.f32 %v878, %v950
        %v952 = vpop.f32.mrb[0].mxu0
        %953 = vdwg.mxu0
        %vm954 = vcmp.gt.f32.partialorder %v951, 0.0
        %v955 = vmul.f32 %v951, 0.01
        %v956 = vsel %vm954, %v951, %v955
        %v957 = vld [vmem:[%s544] sm:$0xff]
        %v958 = vld [vmem:[%s544 + $0x8] sm:$0xff]
        %v959 = vld [vmem:[%s544 + $0x10] sm:$0xff]
        %v960 = vld [vmem:[%s544 + $0x18] sm:$0x3f]
        %v961 = vld [vmem:[%s464] sm:$0x1]
        %v963 = vlaneseq
        %v964 = vshrl.u32 %v963, 7
        %v965 = vsub.s32 0, %v964
        %v966 = vrot.slane %v961, %v965
        %vm968 = vcmask 244736
        %v970 = vsel %vm968, %v956, 0
        %vm972 = vcmask 1045504
        %v974 = vsel %vm972, %v960, 0
        %976 = vmatprep.subr.mxu0 0.0
        %977 = vmatpush1.msra.mxu0 %v957
        %978 = vmatprep.subr.mxu0 0.0
        %979 = vmatpush1.msra.mxu0 %v958
        %980 = vmatprep.subr.mxu0 0.0
        %981 = vmatpush1.msra.mxu0 %v959
        %982 = vmatprep.subr.mxu0 0.0
        %983 = vmatpush1.msra.mxu0 %v974
        %984 = vmatprep.subr.mxu0 0.0
        %985 = vmatpush1.msra.mxu0 0.0
        %986 = vmatprep.subr.mxu0 0.0
        %987 = vmatpush1.msra.mxu0 0.0
        %988 = vmatprep.subr.mxu0 0.0
        %989 = vmatpush1.msra.mxu0 0.0
        %990 = vmatprep.subr.mxu0 0.0
        %991 = vmatpush1.msra.mxu0 0.0
        %992 = vmatprep.subr.mxu0 0.0
        %993 = vmatpush1.msra.mxu0 0.0
        %994 = vmatprep.subr.mxu0 0.0
        %995 = vmatpush1.msra.mxu0 0.0
        %996 = vmatprep.subr.mxu0 0.0
        %997 = vmatpush1.msra.mxu0 0.0
        %998 = vmatprep.subr.mxu0 0.0
        %999 = vmatpush1.msra.mxu0 0.0
        %1000 = vmatprep.subr.mxu0 0.0
        %1001 = vmatpush1.msra.mxu0 0.0
        %1002 = vmatprep.subr.mxu0 0.0
        %1003 = vmatpush1.msra.mxu0 0.0
        %1004 = vmatprep.subr.mxu0 0.0
        %1005 = vmatpush1.msra.mxu0 0.0
        %1006 = vmatprep.subr.mxu0 0.0
        %1007 = vmatpush1.msra.mxu0 0.0
        %1008 = vmatprep.subr.mxu0 0.0
        %1009 = vmatpush1.msra.mxu0 0.0
        %1010 = vmatprep.subr.mxu0 0.0
        %1011 = vmatpush1.msra.mxu0 0.0
        %1012 = vmatprep.subr.mxu0 0.0
        %1013 = vmatpush1.msra.mxu0 0.0
        %1014 = vmatprep.subr.mxu0 0.0
        %1015 = vmatpush1.msra.mxu0 0.0
        %1016 = vmatprep.subr.mxu0 0.0
        %1017 = vmatpush1.msra.mxu0 0.0
        %1018 = vmatprep.subr.mxu0 0.0
        %1019 = vmatpush1.msra.mxu0 0.0
        %1020 = vmatprep.subr.mxu0 0.0
        %1021 = vmatpush1.msra.mxu0 0.0
        %1022 = vmatprep.subr.mxu0 0.0
        %1023 = vmatpush1.msra.mxu0 0.0
        %1024 = vmatprep.subr.mxu0 0.0
        %1025 = vmatpush1.msra.mxu0 0.0
        %1026 = vmatprep.subr.mxu0 0.0
        %1027 = vmatpush1.msra.mxu0 0.0
        %1028 = vmatprep.subr.mxu0 0.0
        %1029 = vmatpush1.msra.mxu0 0.0
        %1030 = vmatprep.subr.mxu0 0.0
        %1031 = vmatpush1.msra.mxu0 0.0
        %1032 = vmatprep.subr.mxu0 0.0
        %1033 = vmatpush1.msra.mxu0 0.0
        %1034 = vmatprep.subr.mxu0 0.0
        %1035 = vmatpush1.msra.mxu0 0.0
        %1036 = vmatprep.subr.mxu0 0.0
        %1037 = vmatpush1.msra.mxu0 0.0
        %1038 = vmatprep.subr.mxu0 0.0
        %1039 = vmatpush1.msra.mxu0 0.0
        %1040 = vmatprep.mubr.f32.mxu0 0.0
        %1041 = vmatmul.mubr.f32.gmra.mrb[0].mxu0 %v970
        %v1042 = vpop.f32.mrb[0].mxu0
        %v1043 = vadd.f32 %v966, %v1042
        %v1044 = vpop.f32.mrb[0].mxu0
        %1045 = vdwg.mxu0
        %vm1046 = vcmask 1024
        %1047 = vst.msk [vmem:[%s548] sm:$0x3] %vm1046, %v1043
        %p1048 = scmp.lt.s32.totalorder %s24, 1
        %s1049 = scalar_select %p1048, %s24, 1
        %s1050 = smul.addr %s1049, 2
        %s1051 = scalar_lea.vmem %s9, %s1050
        // Predicated region
        $region81: #{critic_forward.5} parent=55 // pred_check
          %p1052 = pneg %p271
        $region82: #{critic_forward.5} parent=55 // pred_check_branch
          %1054 = sbr.rel (%p1052) target = $region84
        $region83: #{critic_forward.5} parent=55 // pred_region
          _
        $region84: #{critic_forward.5} parent=55 // pred_fallthru
          _
      $region56: #{critic_forward.5} parent=5 // pred_fallthru
        _
      %p1055 = scmp.le.s32.totalorder 2, %s19
      // Predicated region
      $region85: #{critic_forward.5} parent=5 // pred_check
        %p1056 = pneg %p1055
      $region86: #{critic_forward.5} parent=5 // pred_check_branch
        %1058 = sbr.rel (%p1056) target = $region88
      $region87: #{critic_forward.5} parent=5 // pred_region
        %s1059 = ssub.s32 %s19, 2
        // Predicated region
        $region89: #{critic_forward.5} parent=87 // pred_check
          %p1060 = pneg %p277
        $region90: #{critic_forward.5} parent=87 // pred_check_branch
          %1062 = sbr.rel (%p1060) target = $region92
        $region91: #{critic_forward.5} parent=87 // pred_region
          %p1063 = scmp.lt.s32.totalorder %s25, 1
          %s1064 = scalar_select %p1063, %s25, 1
          %s1065 = smul.addr %s1064, 2
          %s1066 = scalar_lea.vmem %s9, %s1065
        $region92: #{critic_forward.5} parent=87 // pred_fallthru
          _
      $region88: #{critic_forward.5} parent=5 // pred_fallthru
        _
    $region6: #{critic_forward.5} parent=1 // loop_footer
      %s23 = sadd.s32 1, %s19
    $region7: #{critic_forward.5} parent=1 // loop_footer_branch
      %18 = sbr.rel target = $region3
    $region8: #{critic_forward.5} parent=1 // loop_exit
      _
    %1067 = vsyncpa [#allocation3], 1
    %s1068 = scalar_lea.sflag [#allocation3], 1
    %1069 = vsyncpa %s1068, 1
    %1070 = vsyncpa [#allocation5], 1

// kernel: critic_forward.4
$region0: #{critic_forward.4}
  #allocation0 [shape = 'u32[]', space=smem, size = 0x4, offset = 0x4, fixed_abs, tag = 'smem constant byte address 0x4 - core index']
  #allocation1 [shape = 'u32[144,128]{1,0:T(1,128)}', space=vmem, size = 0x12000, scoped, tag = 'internal scratch']
  %s0 = inlined_call_operand.hbm [shape: bf16[2,2,1024], index: 0, kind: input, shape index: {}]
  %s1 = inlined_call_operand.hbm [shape: bf16[2,1024,512], index: 1, kind: input, shape index: {}]
  %s2 = inlined_call_operand.hbm [shape: f32[2,1,512], index: 2, kind: input, shape index: {}]
  %s3 = inlined_call_operand.hbm [shape: bf16[2,2,512], index: 3, kind: output, shape index: {}]
  %s4 = sld [smem:[#allocation0]]
  $region57: #{critic_forward.4} parent=0
    _
  %s6 = ssub.s32 1, %s4
  %s7 = scalar_select 0, %s6, %s4
  $region1: #{critic_forward.4} parent=0
    #allocation2 [shape = 'u8[8192]{0}', space=vmem, size = 0x2000, scoped, tag = 'input window, operand 0']
    #allocation3 [shape = 's32[2]{0}', space=sflag, size = 0x8, scoped, tag = 'scoped memory for critic_forward.4']
    #allocation4 [shape = 's32[2]{0}', space=sflag, size = 0x8, scoped, tag = 'scoped memory for critic_forward.4']
    #allocation5 [shape = 'u8[2097152]{0}', space=vmem, size = 0x200000, scoped, tag = 'input window, operand 1']
    #allocation6 [shape = 's32[2]{0}', space=sflag, size = 0x8, scoped, tag = 'scoped memory for critic_forward.4']
    #allocation7 [shape = 'u8[4096]{0}', space=vmem, size = 0x1000, scoped, tag = 'input window, operand 2']
    #allocation8 [shape = 'u8[4096]{0}', space=vmem, size = 0x1000, scoped, tag = 'output window, operand 0']
    %8 = vsyncpa [#allocation3], 0
    %s9 = scalar_lea.sflag [#allocation3], 1
    %10 = vsyncpa %s9, 0
    %11 = vsyncpa [#allocation6], 0
    %s12 = scalar_lea.sflag [#allocation6], 1
    %13 = vsyncpa %s12, 0
    %14 = vsyncpa [#allocation4], 0
    %s15 = scalar_lea.sflag [#allocation4], 1
    %16 = vsyncpa %s15, 0
    loop: start=0, step=1, limit=4
    $region2: #{critic_forward.4} parent=1 // loop_pre_header
      _
    $region3: #{critic_forward.4} parent=1 // loop_header
      %s18 = sphi 0, %s22
      %p19 = scmp.ge.s32.totalorder %s18, 4
      %s25 = sphi 0, %s44
      %s26 = sphi 0, %s40
      %s27 = sphi 0, %s36
      %s28 = sphi 0, %s25
      %s29 = sphi 0, %s26
      %s30 = sphi 0, %s27
      %s31 = sphi 0, %s28
      %s32 = sphi 0, %s29
      %s33 = sphi 0, %s30
      %s49 = sphi 0, %s51
      %s52 = sphi 0, %s49
      %s53 = sphi 0, %s52
      %s69 = sphi 0, %s53
      %s77 = sphi 0, %s79
      %s80 = sphi 0, %s77
      %s81 = sphi 0, %s80
      %s97 = sphi 0, %s81
      %s105 = sphi 0, %s107
      %s108 = sphi 0, %s105
      %s109 = sphi 0, %s108
      %s125 = sphi 0, %s109
      %s135 = sphi 0, %s137
      %s138 = sphi 0, %s135
      %s139 = sphi 0, %s138
      %s155 = sphi 0, %s139
    $region4: #{critic_forward.4} parent=1 // loop_header_branch
      %21 = sbr.rel (%p19) target = $region8
    $region5: #{critic_forward.4} parent=1 // loop_body
      %s23 = ssub.s32 %s18, 1
      %s24 = ssub.s32 %s18, 2
      %s34 = sadd.s32 1, %s27
      %p35 = scmp.ge.s32.totalorder %s34, 1
      %s36 = scalar_select %p35, 0, %s34
      %s37 = sadd.s32 1, %s26
      %s38 = scalar_select %p35, %s37, %s26
      %p39 = scmp.ge.s32.totalorder %s38, 1
      %s40 = scalar_select %p39, 0, %s38
      %s41 = sadd.s32 1, %s25
      %s42 = scalar_select %p39, %s41, %s25
      %p43 = scmp.ge.s32.totalorder %s42, 2
      %s44 = scalar_select %p43, 0, %s42
      %s45 = ssub.s32 %s25, %s44
      %s46 = ssub.s32 %s26, %s40
      %s47 = sor.u32 %s45, %s46
      %p48 = scmp.eq.s32.totalorder %s47, 0
      %s50 = sadd.s32 %s49, 1
      %s51 = scalar_select %p48, %s49, %s50
      %p54 = pneg %p48
      %p55 = scmp.eq.s32.totalorder %s18, 1
      %p56 = por %p54, %p55
      %p57 = scmp.ne.s32.totalorder %s49, %s52
      %p58 = scmp.eq.s32.totalorder %s18, 0
      %p59 = por %p57, %p58
      %p60 = scmp.ne.s32.totalorder %s49, %s52
      %p61 = scmp.eq.s32.totalorder %s23, 1
      %p62 = por %p60, %p61
      %p63 = scmp.ne.s32.totalorder %s52, %s53
      %p64 = scmp.eq.s32.totalorder %s23, 0
      %p65 = por %p63, %p64
      %p66 = scmp.ne.s32.totalorder %s52, %s53
      %p67 = scmp.eq.s32.totalorder %s24, 1
      %p68 = por %p66, %p67
      %p70 = scmp.ne.s32.totalorder %s53, %s69
      %p71 = scmp.eq.s32.totalorder %s24, 0
      %p72 = por %p70, %p71
      %s73 = ssub.s32 %s25, %s44
      %s74 = ssub.s32 %s27, %s36
      %s75 = sor.u32 %s73, %s74
      %p76 = scmp.eq.s32.totalorder %s75, 0
      %s78 = sadd.s32 %s77, 1
      %s79 = scalar_select %p76, %s77, %s78
      %p82 = pneg %p76
      %p83 = scmp.eq.s32.totalorder %s18, 1
      %p84 = por %p82, %p83
      %p85 = scmp.ne.s32.totalorder %s77, %s80
      %p86 = scmp.eq.s32.totalorder %s18, 0
      %p87 = por %p85, %p86
      %p88 = scmp.ne.s32.totalorder %s77, %s80
      %p89 = scmp.eq.s32.totalorder %s23, 1
      %p90 = por %p88, %p89
      %p91 = scmp.ne.s32.totalorder %s80, %s81
      %p92 = scmp.eq.s32.totalorder %s23, 0
      %p93 = por %p91, %p92
      %p94 = scmp.ne.s32.totalorder %s80, %s81
      %p95 = scmp.eq.s32.totalorder %s24, 1
      %p96 = por %p94, %p95
      %p98 = scmp.ne.s32.totalorder %s81, %s97
      %p99 = scmp.eq.s32.totalorder %s24, 0
      %p100 = por %p98, %p99
      %s101 = ssub.s32 %s25, %s44
      %s102 = ssub.s32 %s27, %s36
      %s103 = sor.u32 %s101, %s102
      %p104 = scmp.eq.s32.totalorder %s103, 0
      %s106 = sadd.s32 %s105, 1
      %s107 = scalar_select %p104, %s105, %s106
      %p110 = pneg %p104
      %p111 = scmp.eq.s32.totalorder %s18, 1
      %p112 = por %p110, %p111
      %p113 = scmp.ne.s32.totalorder %s105, %s108
      %p114 = scmp.eq.s32.totalorder %s18, 0
      %p115 = por %p113, %p114
      %p116 = scmp.ne.s32.totalorder %s105, %s108
      %p117 = scmp.eq.s32.totalorder %s23, 1
      %p118 = por %p116, %p117
      %p119 = scmp.ne.s32.totalorder %s108, %s109
      %p120 = scmp.eq.s32.totalorder %s23, 0
      %p121 = por %p119, %p120
      %p122 = scmp.ne.s32.totalorder %s108, %s109
      %p123 = scmp.eq.s32.totalorder %s24, 1
      %p124 = por %p122, %p123
      %p126 = scmp.ne.s32.totalorder %s109, %s125
      %p127 = scmp.eq.s32.totalorder %s24, 0
      %p128 = por %p126, %p127
      %s129 = ssub.s32 %s25, %s44
      %s130 = ssub.s32 %s26, %s40
      %s131 = sor.u32 %s129, %s130
      %s132 = ssub.s32 %s27, %s36
      %s133 = sor.u32 %s131, %s132
      %p134 = scmp.eq.s32.totalorder %s133, 0
      %s136 = sadd.s32 %s135, 1
      %s137 = scalar_select %p134, %s135, %s136
      %p140 = pneg %p134
      %p141 = scmp.eq.s32.totalorder %s18, 1
      %p142 = por %p140, %p141
      %p143 = scmp.ne.s32.totalorder %s135, %s138
      %p144 = scmp.eq.s32.totalorder %s18, 0
      %p145 = por %p143, %p144
      %p146 = scmp.ne.s32.totalorder %s135, %s138
      %p147 = scmp.eq.s32.totalorder %s23, 1
      %p148 = por %p146, %p147
      %p149 = scmp.ne.s32.totalorder %s138, %s139
      %p150 = scmp.eq.s32.totalorder %s23, 0
      %p151 = por %p149, %p150
      %p152 = scmp.ne.s32.totalorder %s138, %s139
      %p153 = scmp.eq.s32.totalorder %s24, 1
      %p154 = por %p152, %p153
      %p156 = scmp.ne.s32.totalorder %s139, %s155
      %p157 = scmp.eq.s32.totalorder %s24, 0
      %p158 = por %p156, %p157
      %p159 = scmp.le.s32.totalorder 1, %s18
      %p160 = scmp.lt.s32.totalorder %s18, 3
      %p161 = pnand %p159, %p160
      %p162 = pneg %p161
      // Predicated region
      $region9: #{critic_forward.4} parent=5 // pred_check
        _
      $region10: #{critic_forward.4} parent=5 // pred_check_branch
        %164 = sbr.rel (%p161) target = $region12
      $region11: #{critic_forward.4} parent=5 // pred_region
        %s165 = ssub.s32 %s18, 1
      $region12: #{critic_forward.4} parent=5 // pred_fallthru
        _
      %p166 = scmp.lt.s32.totalorder %s18, 2
      // Predicated region
      $region13: #{critic_forward.4} parent=5 // pred_check
        %p167 = pneg %p166
      $region14: #{critic_forward.4} parent=5 // pred_check_branch
        %169 = sbr.rel (%p167) target = $region16
      $region15: #{critic_forward.4} parent=5 // pred_region
        // Predicated region
        $region17: #{critic_forward.4} parent=15 // pred_check
          %p170 = pneg %p59
        $region18: #{critic_forward.4} parent=15 // pred_check_branch
          %172 = sbr.rel (%p170) target = $region20
        $region19: #{critic_forward.4} parent=15 // pred_region
          %s173 = sand.u32 %s49, 1
          %s174 = scalar_lea.sflag [#allocation3], %s173
          %s175 = sand.u32 %s49, 1
          %s176 = smul.addr %s175, 8
          %s177 = scalar_lea.vmem [#allocation2], %s176
          %s179 = ssub.s32 128, 128
          %180 = vsyncadd %s174, %s179
          %s181 = smul.addr %s26, 8
          %s182 = smul.addr %s25, 8
          %s183 = sadd.s32 %s181, %s182
          %s184 = smul.addr %s183, 16
          %s185 = scalar_lea.hbm %s0, %s184
          %s187 = sshll.u32 %s177, 4
          %s188 = int_to_ptr.vmem [resolvable:$true] %s187
          %190 = dma.hbm_to_vmem [thread:$0]  %s185, 128, %s188, %s174
        $region20: #{critic_forward.4} parent=15 // pred_fallthru
          _
        // Predicated region
        $region21: #{critic_forward.4} parent=15 // pred_check
          %p191 = pneg %p87
        $region22: #{critic_forward.4} parent=15 // pred_check_branch
          %193 = sbr.rel (%p191) target = $region24
        $region23: #{critic_forward.4} parent=15 // pred_region
          %s194 = sand.u32 %s18, 1
          %s195 = scalar_lea.sflag [#allocation6], %s194
          %s196 = sand.u32 %s77, 1
          %s197 = smul.addr %s196, 2048
          %s198 = scalar_lea.vmem [#allocation5], %s197
          %s199 = smul.u32 4, %s27
          %s201 = ssub.s32 32768, 32768
          %202 = vsyncadd %s195, %s201
          %s203 = smul.addr %s25, 512
          %s204 = sadd.s32 %s199, %s203
          %s205 = smul.addr %s204, 64
          %s206 = scalar_lea.hbm %s1, %s205
          %s207 = sshll.u32 %s198, 4
          %s208 = int_to_ptr.vmem [resolvable:$true] %s207
          %213 = dma.hbm_to_vmem [thread:$0]  %s206, 32768, %s208, %s195, 256, 256, 16
        $region24: #{critic_forward.4} parent=15 // pred_fallthru
          _
        // Predicated region
        $region25: #{critic_forward.4} parent=15 // pred_check
          %p214 = pneg %p115
        $region26: #{critic_forward.4} parent=15 // pred_check_branch
          %216 = sbr.rel (%p214) target = $region28
        $region27: #{critic_forward.4} parent=15 // pred_region
          %s217 = sand.u32 %s18, 1
          %s218 = scalar_lea.sflag [#allocation6], %s217
          %s219 = sand.u32 %s105, 1
          %s220 = smul.addr %s219, 4
          %s221 = scalar_lea.vmem [#allocation7], %s220
          %s222 = smul.u32 4, %s27
          %s224 = ssub.s32 64, 64
          %225 = vsyncadd %s218, %s224
          %s226 = smul.addr %s25, 4
          %s227 = sadd.s32 %s222, %s226
          %s228 = smul.addr %s227, 16
          %s229 = scalar_lea.hbm %s2, %s228
          %s231 = sshll.u32 %s221, 4
          %s232 = int_to_ptr.vmem [resolvable:$true] %s231
          %234 = dma.hbm_to_vmem [thread:$0]  %s229, 64, %s232, %s218
        $region28: #{critic_forward.4} parent=15 // pred_fallthru
          _
      $region16: #{critic_forward.4} parent=5 // pred_fallthru
        _
      %p235 = scmp.le.s32.totalorder 1, %s18
      %p236 = scmp.lt.s32.totalorder %s18, 3
      %p237 = pnand %p235, %p236
      %p238 = pneg %p237
      // Predicated region
      $region29: #{critic_forward.4} parent=5 // pred_check
        _
      $region30: #{critic_forward.4} parent=5 // pred_check_branch
        %240 = sbr.rel (%p237) target = $region32
      $region31: #{critic_forward.4} parent=5 // pred_region
        %s241 = ssub.s32 %s18, 1
        %s242 = sand.u32 %s52, 1
        %s243 = scalar_lea.sflag [#allocation3], %s242
        %s244 = sand.u32 %s52, 1
        %s245 = smul.addr %s244, 8
        %s246 = scalar_lea.vmem [#allocation2], %s245
        // Predicated region
        $region33: #{critic_forward.4} parent=31 // pred_check
          %p247 = pneg %p65
        $region34: #{critic_forward.4} parent=31 // pred_check_branch
          %249 = sbr.rel (%p247) target = $region36
        $region35: #{critic_forward.4} parent=31 // pred_region
          %250 = dma.done %s243, 128
        $region36: #{critic_forward.4} parent=31 // pred_fallthru
          _
        %s251 = sand.u32 %s23, 1
        %s252 = scalar_lea.sflag [#allocation6], %s251
        %s253 = sand.u32 %s80, 1
        %s254 = smul.addr %s253, 2048
        %s255 = scalar_lea.vmem [#allocation5], %s254
        // Predicated region
        $region37: #{critic_forward.4} parent=31 // pred_check
          %p256 = pneg %p93
        $region38: #{critic_forward.4} parent=31 // pred_check_branch
          %258 = sbr.rel (%p256) target = $region40
        $region39: #{critic_forward.4} parent=31 // pred_region
          %259 = dma.done %s252, 32768
        $region40: #{critic_forward.4} parent=31 // pred_fallthru
          _
        %s260 = sand.u32 %s23, 1
        %s261 = scalar_lea.sflag [#allocation6], %s260
        %s262 = sand.u32 %s108, 1
        %s263 = smul.addr %s262, 4
        %s264 = scalar_lea.vmem [#allocation7], %s263
        // Predicated region
        $region41: #{critic_forward.4} parent=31 // pred_check
          %p265 = pneg %p121
        $region42: #{critic_forward.4} parent=31 // pred_check_branch
          %267 = sbr.rel (%p265) target = $region44
        $region43: #{critic_forward.4} parent=31 // pred_region
          %268 = dma.done %s261, 64
        $region44: #{critic_forward.4} parent=31 // pred_fallthru
          _
        %s269 = sand.u32 %s52, 1
        %s270 = scalar_lea.sflag [#allocation3], %s269
        %s271 = sand.u32 %s52, 1
        %s272 = smul.addr %s271, 8
        %s273 = scalar_lea.vmem [#allocation2], %s272
        %p274 = pneg %p65
        %p275 = pneg %p62
        %s276 = sand.u32 %s23, 1
        %s277 = scalar_lea.sflag [#allocation6], %s276
        %s278 = sand.u32 %s80, 1
        %s279 = smul.addr %s278, 2048
        %s280 = scalar_lea.vmem [#allocation5], %s279
        %p281 = pneg %p93
        %p282 = pneg %p90
        %s283 = sand.u32 %s23, 1
        %s284 = scalar_lea.sflag [#allocation6], %s283
        %s285 = sand.u32 %s108, 1
        %s286 = smul.addr %s285, 4
        %s287 = scalar_lea.vmem [#allocation7], %s286
        %p288 = pneg %p121
        %p289 = pneg %p118
        %p290 = pneg %p151
        %p291 = pneg %p148
        %s292 = sand.u32 %s138, 1
        %s293 = scalar_lea.sflag [#allocation4], %s292
        %s294 = sand.u32 %s138, 1
        %s295 = smul.addr %s294, 4
        %s296 = scalar_lea.vmem [#allocation8], %s295
        %s297 = smul.u32 4, %s30
        %s298 = smul.u32 4, %s30
        %s299 = smul.u32 4, %s30
        %v300 = vld [vmem:[%s246] sm:$0xff]
        %v301 = vld [vmem:[%s255] sm:$0xff]
        %v302 = vld [vmem:[%s255 + $0x8] sm:$0xff]
        %v303 = vld [vmem:[%s255 + $0x10] sm:$0xff]
        %v304 = vld [vmem:[%s255 + $0x18] sm:$0xff]
        %v305 = vld [vmem:[%s255 + $0x20] sm:$0xff]
        %v306 = vld [vmem:[%s255 + $0x28] sm:$0xff]
        %v307 = vld [vmem:[%s255 + $0x30] sm:$0xff]
        %v308 = vld [vmem:[%s255 + $0x38] sm:$0xff]
        %v309 = vld [vmem:[%s255 + $0x40] sm:$0xff]
        %v310 = vld [vmem:[%s255 + $0x48] sm:$0xff]
        %v311 = vld [vmem:[%s255 + $0x50] sm:$0xff]
        %v312 = vld [vmem:[%s255 + $0x58] sm:$0xff]
        %v313 = vld [vmem:[%s255 + $0x60] sm:$0xff]
        %v314 = vld [vmem:[%s255 + $0x68] sm:$0xff]
        %v315 = vld [vmem:[%s255 + $0x70] sm:$0xff]
        %v316 = vld [vmem:[%s255 + $0x78] sm:$0xff]
        %v317 = vld [vmem:[%s255 + $0x80] sm:$0xff]
        %v318 = vld [vmem:[%s255 + $0x88] sm:$0xff]
        %v319 = vld [vmem:[%s255 + $0x90] sm:$0xff]
        %v320 = vld [vmem:[%s255 + $0x98] sm:$0xff]
        %v321 = vld [vmem:[%s255 + $0xa0] sm:$0xff]
        %v322 = vld [vmem:[%s255 + $0xa8] sm:$0xff]
        %v323 = vld [vmem:[%s255 + $0xb0] sm:$0xff]
        %v324 = vld [vmem:[%s255 + $0xb8] sm:$0xff]
        %v325 = vld [vmem:[%s255 + $0xc0] sm:$0xff]
        %v326 = vld [vmem:[%s255 + $0xc8] sm:$0xff]
        %v327 = vld [vmem:[%s255 + $0xd0] sm:$0xff]
        %v328 = vld [vmem:[%s255 + $0xd8] sm:$0xff]
        %v329 = vld [vmem:[%s255 + $0xe0] sm:$0xff]
        %v330 = vld [vmem:[%s255 + $0xe8] sm:$0xff]
        %v331 = vld [vmem:[%s255 + $0xf0] sm:$0xff]
        %v332 = vld [vmem:[%s255 + $0xf8] sm:$0xff]
        %v333 = vld [vmem:[%s255 + $0x100] sm:$0xff]
        %v334 = vld [vmem:[%s255 + $0x108] sm:$0xff]
        %v335 = vld [vmem:[%s255 + $0x110] sm:$0xff]
        %v336 = vld [vmem:[%s255 + $0x118] sm:$0xff]
        %v337 = vld [vmem:[%s255 + $0x120] sm:$0xff]
        %v338 = vld [vmem:[%s255 + $0x128] sm:$0xff]
        %v339 = vld [vmem:[%s255 + $0x130] sm:$0xff]
        %v340 = vld [vmem:[%s255 + $0x138] sm:$0xff]
        %v341 = vld [vmem:[%s255 + $0x140] sm:$0xff]
        %v342 = vld [vmem:[%s255 + $0x148] sm:$0xff]
        %v343 = vld [vmem:[%s255 + $0x150] sm:$0xff]
        %v344 = vld [vmem:[%s255 + $0x158] sm:$0xff]
        %v345 = vld [vmem:[%s255 + $0x160] sm:$0xff]
        %v346 = vld [vmem:[%s255 + $0x168] sm:$0xff]
        %v347 = vld [vmem:[%s255 + $0x170] sm:$0xff]
        %v348 = vld [vmem:[%s255 + $0x178] sm:$0xff]
        %v349 = vld [vmem:[%s255 + $0x180] sm:$0xff]
        %v350 = vld [vmem:[%s255 + $0x188] sm:$0xff]
        %v351 = vld [vmem:[%s255 + $0x190] sm:$0xff]
        %v352 = vld [vmem:[%s255 + $0x198] sm:$0xff]
        %v353 = vld [vmem:[%s255 + $0x1a0] sm:$0xff]
        %v354 = vld [vmem:[%s255 + $0x1a8] sm:$0xff]
        %v355 = vld [vmem:[%s255 + $0x1b0] sm:$0xff]
        %v356 = vld [vmem:[%s255 + $0x1b8] sm:$0xff]
        %v357 = vld [vmem:[%s255 + $0x1c0] sm:$0xff]
        %v358 = vld [vmem:[%s255 + $0x1c8] sm:$0xff]
        %v359 = vld [vmem:[%s255 + $0x1d0] sm:$0xff]
        %v360 = vld [vmem:[%s255 + $0x1d8] sm:$0xff]
        %v361 = vld [vmem:[%s255 + $0x1e0] sm:$0xff]
        %v362 = vld [vmem:[%s255 + $0x1e8] sm:$0xff]
        %v363 = vld [vmem:[%s255 + $0x1f0] sm:$0xff]
        %v364 = vld [vmem:[%s255 + $0x1f8] sm:$0xff]
        %v365 = vld [vmem:[%s255 + $0x200] sm:$0xff]
        %v366 = vld [vmem:[%s255 + $0x208] sm:$0xff]
        %v367 = vld [vmem:[%s255 + $0x210] sm:$0xff]
        %v368 = vld [vmem:[%s255 + $0x218] sm:$0xff]
        %v369 = vld [vmem:[%s255 + $0x220] sm:$0xff]
        %v370 = vld [vmem:[%s255 + $0x228] sm:$0xff]
        %v371 = vld [vmem:[%s255 + $0x230] sm:$0xff]
        %v372 = vld [vmem:[%s255 + $0x238] sm:$0xff]
        %v373 = vld [vmem:[%s255 + $0x240] sm:$0xff]
        %v374 = vld [vmem:[%s255 + $0x248] sm:$0xff]
        %v375 = vld [vmem:[%s255 + $0x250] sm:$0xff]
        %v376 = vld [vmem:[%s255 + $0x258] sm:$0xff]
        %v377 = vld [vmem:[%s255 + $0x260] sm:$0xff]
        %v378 = vld [vmem:[%s255 + $0x268] sm:$0xff]
        %v379 = vld [vmem:[%s255 + $0x270] sm:$0xff]
        %v380 = vld [vmem:[%s255 + $0x278] sm:$0xff]
        %v381 = vld [vmem:[%s255 + $0x280] sm:$0xff]
        %v382 = vld [vmem:[%s255 + $0x288] sm:$0xff]
        %v383 = vld [vmem:[%s255 + $0x290] sm:$0xff]
        %v384 = vld [vmem:[%s255 + $0x298] sm:$0xff]
        %v385 = vld [vmem:[%s255 + $0x2a0] sm:$0xff]
        %v386 = vld [vmem:[%s255 + $0x2a8] sm:$0xff]
        %v387 = vld [vmem:[%s255 + $0x2b0] sm:$0xff]
        %v388 = vld [vmem:[%s255 + $0x2b8] sm:$0xff]
        %v389 = vld [vmem:[%s255 + $0x2c0] sm:$0xff]
        %v390 = vld [vmem:[%s255 + $0x2c8] sm:$0xff]
        %v391 = vld [vmem:[%s255 + $0x2d0] sm:$0xff]
        %v392 = vld [vmem:[%s255 + $0x2d8] sm:$0xff]
        %v393 = vld [vmem:[%s255 + $0x2e0] sm:$0xff]
        %v394 = vld [vmem:[%s255 + $0x2e8] sm:$0xff]
        %v395 = vld [vmem:[%s255 + $0x2f0] sm:$0xff]
        %v396 = vld [vmem:[%s255 + $0x2f8] sm:$0xff]
        %v397 = vld [vmem:[%s255 + $0x300] sm:$0xff]
        %v398 = vld [vmem:[%s255 + $0x308] sm:$0xff]
        %v399 = vld [vmem:[%s255 + $0x310] sm:$0xff]
        %v400 = vld [vmem:[%s255 + $0x318] sm:$0xff]
        %v401 = vld [vmem:[%s255 + $0x320] sm:$0xff]
        %v402 = vld [vmem:[%s255 + $0x328] sm:$0xff]
        %v403 = vld [vmem:[%s255 + $0x330] sm:$0xff]
        %v404 = vld [vmem:[%s255 + $0x338] sm:$0xff]
        %v405 = vld [vmem:[%s255 + $0x340] sm:$0xff]
        %v406 = vld [vmem:[%s255 + $0x348] sm:$0xff]
        %v407 = vld [vmem:[%s255 + $0x350] sm:$0xff]
        %v408 = vld [vmem:[%s255 + $0x358] sm:$0xff]
        %v409 = vld [vmem:[%s255 + $0x360] sm:$0xff]
        %v410 = vld [vmem:[%s255 + $0x368] sm:$0xff]
        %v411 = vld [vmem:[%s255 + $0x370] sm:$0xff]
        %v412 = vld [vmem:[%s255 + $0x378] sm:$0xff]
        %v413 = vld [vmem:[%s255 + $0x380] sm:$0xff]
        %v414 = vld [vmem:[%s255 + $0x388] sm:$0xff]
        %v415 = vld [vmem:[%s255 + $0x390] sm:$0xff]
        %v416 = vld [vmem:[%s255 + $0x398] sm:$0xff]
        %v417 = vld [vmem:[%s255 + $0x3a0] sm:$0xff]
        %v418 = vld [vmem:[%s255 + $0x3a8] sm:$0xff]
        %v419 = vld [vmem:[%s255 + $0x3b0] sm:$0xff]
        %v420 = vld [vmem:[%s255 + $0x3b8] sm:$0xff]
        %v421 = vld [vmem:[%s255 + $0x3c0] sm:$0xff]
        %v422 = vld [vmem:[%s255 + $0x3c8] sm:$0xff]
        %v423 = vld [vmem:[%s255 + $0x3d0] sm:$0xff]
        %v424 = vld [vmem:[%s255 + $0x3d8] sm:$0xff]
        %v425 = vld [vmem:[%s255 + $0x3e0] sm:$0xff]
        %v426 = vld [vmem:[%s255 + $0x3e8] sm:$0xff]
        %v427 = vld [vmem:[%s255 + $0x3f0] sm:$0xff]
        %v428 = vld [vmem:[%s255 + $0x3f8] sm:$0xff]
        %v429 = vld [vmem:[%s255 + $0x400] sm:$0xff]
        %v430 = vld [vmem:[%s255 + $0x408] sm:$0xff]
        %v431 = vld [vmem:[%s255 + $0x410] sm:$0xff]
        %v432 = vld [vmem:[%s255 + $0x418] sm:$0xff]
        %v433 = vld [vmem:[%s255 + $0x420] sm:$0xff]
        %v434 = vld [vmem:[%s255 + $0x428] sm:$0xff]
        %v435 = vld [vmem:[%s255 + $0x430] sm:$0xff]
        %v436 = vld [vmem:[%s255 + $0x438] sm:$0xff]
        %v437 = vld [vmem:[%s255 + $0x440] sm:$0xff]
        %v438 = vld [vmem:[%s255 + $0x448] sm:$0xff]
        %v439 = vld [vmem:[%s255 + $0x450] sm:$0xff]
        %v440 = vld [vmem:[%s255 + $0x458] sm:$0xff]
        %v441 = vld [vmem:[%s255 + $0x460] sm:$0xff]
        %v442 = vld [vmem:[%s255 + $0x468] sm:$0xff]
        %v443 = vld [vmem:[%s255 + $0x470] sm:$0xff]
        %v444 = vld [vmem:[%s255 + $0x478] sm:$0xff]
        %v445 = vld [vmem:[%s255 + $0x480] sm:$0xff]
        %v446 = vld [vmem:[%s255 + $0x488] sm:$0xff]
        %v447 = vld [vmem:[%s255 + $0x490] sm:$0xff]
        %v448 = vld [vmem:[%s255 + $0x498] sm:$0xff]
        %v449 = vld [vmem:[%s255 + $0x4a0] sm:$0xff]
        %v450 = vld [vmem:[%s255 + $0x4a8] sm:$0xff]
        %v451 = vld [vmem:[%s255 + $0x4b0] sm:$0xff]
        %v452 = vld [vmem:[%s255 + $0x4b8] sm:$0xff]
        %v453 = vld [vmem:[%s255 + $0x4c0] sm:$0xff]
        %v454 = vld [vmem:[%s255 + $0x4c8] sm:$0xff]
        %v455 = vld [vmem:[%s255 + $0x4d0] sm:$0xff]
        %v456 = vld [vmem:[%s255 + $0x4d8] sm:$0xff]
        %v457 = vld [vmem:[%s255 + $0x4e0] sm:$0xff]
        %v458 = vld [vmem:[%s255 + $0x4e8] sm:$0xff]
        %v459 = vld [vmem:[%s255 + $0x4f0] sm:$0xff]
        %v460 = vld [vmem:[%s255 + $0x4f8] sm:$0xff]
        %v461 = vld [vmem:[%s255 + $0x500] sm:$0xff]
        %v462 = vld [vmem:[%s255 + $0x508] sm:$0xff]
        %v463 = vld [vmem:[%s255 + $0x510] sm:$0xff]
        %v464 = vld [vmem:[%s255 + $0x518] sm:$0xff]
        %v465 = vld [vmem:[%s255 + $0x520] sm:$0xff]
        %v466 = vld [vmem:[%s255 + $0x528] sm:$0xff]
        %v467 = vld [vmem:[%s255 + $0x530] sm:$0xff]
        %v468 = vld [vmem:[%s255 + $0x538] sm:$0xff]
        %v469 = vld [vmem:[%s255 + $0x540] sm:$0xff]
        %v470 = vld [vmem:[%s255 + $0x548] sm:$0xff]
        %v471 = vld [vmem:[%s255 + $0x550] sm:$0xff]
        %v472 = vld [vmem:[%s255 + $0x558] sm:$0xff]
        %v473 = vld [vmem:[%s255 + $0x560] sm:$0xff]
        %v474 = vld [vmem:[%s255 + $0x568] sm:$0xff]
        %v475 = vld [vmem:[%s255 + $0x570] sm:$0xff]
        %v476 = vld [vmem:[%s255 + $0x578] sm:$0xff]
        %v477 = vld [vmem:[%s255 + $0x580] sm:$0xff]
        %v478 = vld [vmem:[%s255 + $0x588] sm:$0xff]
        %v479 = vld [vmem:[%s255 + $0x590] sm:$0xff]
        %v480 = vld [vmem:[%s255 + $0x598] sm:$0xff]
        %v481 = vld [vmem:[%s255 + $0x5a0] sm:$0xff]
        %v482 = vld [vmem:[%s255 + $0x5a8] sm:$0xff]
        %v483 = vld [vmem:[%s255 + $0x5b0] sm:$0xff]
        %v484 = vld [vmem:[%s255 + $0x5b8] sm:$0xff]
        %v485 = vld [vmem:[%s255 + $0x5c0] sm:$0xff]
        %v486 = vld [vmem:[%s255 + $0x5c8] sm:$0xff]
        %v487 = vld [vmem:[%s255 + $0x5d0] sm:$0xff]
        %v488 = vld [vmem:[%s255 + $0x5d8] sm:$0xff]
        %v489 = vld [vmem:[%s255 + $0x5e0] sm:$0xff]
        %v490 = vld [vmem:[%s255 + $0x5e8] sm:$0xff]
        %v491 = vld [vmem:[%s255 + $0x5f0] sm:$0xff]
        %v492 = vld [vmem:[%s255 + $0x5f8] sm:$0xff]
        %v493 = vld [vmem:[%s255 + $0x600] sm:$0xff]
        %v494 = vld [vmem:[%s255 + $0x608] sm:$0xff]
        %v495 = vld [vmem:[%s255 + $0x610] sm:$0xff]
        %v496 = vld [vmem:[%s255 + $0x618] sm:$0xff]
        %v497 = vld [vmem:[%s255 + $0x620] sm:$0xff]
        %v498 = vld [vmem:[%s255 + $0x628] sm:$0xff]
        %v499 = vld [vmem:[%s255 + $0x630] sm:$0xff]
        %v500 = vld [vmem:[%s255 + $0x638] sm:$0xff]
        %v501 = vld [vmem:[%s255 + $0x640] sm:$0xff]
        %v502 = vld [vmem:[%s255 + $0x648] sm:$0xff]
        %v503 = vld [vmem:[%s255 + $0x650] sm:$0xff]
        %v504 = vld [vmem:[%s255 + $0x658] sm:$0xff]
        %v505 = vld [vmem:[%s255 + $0x660] sm:$0xff]
        %v506 = vld [vmem:[%s255 + $0x668] sm:$0xff]
        %v507 = vld [vmem:[%s255 + $0x670] sm:$0xff]
        %v508 = vld [vmem:[%s255 + $0x678] sm:$0xff]
        %v509 = vld [vmem:[%s255 + $0x680] sm:$0xff]
        %v510 = vld [vmem:[%s255 + $0x688] sm:$0xff]
        %v511 = vld [vmem:[%s255 + $0x690] sm:$0xff]
        %v512 = vld [vmem:[%s255 + $0x698] sm:$0xff]
        %v513 = vld [vmem:[%s255 + $0x6a0] sm:$0xff]
        %v514 = vld [vmem:[%s255 + $0x6a8] sm:$0xff]
        %v515 = vld [vmem:[%s255 + $0x6b0] sm:$0xff]
        %v516 = vld [vmem:[%s255 + $0x6b8] sm:$0xff]
        %v517 = vld [vmem:[%s255 + $0x6c0] sm:$0xff]
        %v518 = vld [vmem:[%s255 + $0x6c8] sm:$0xff]
        %v519 = vld [vmem:[%s255 + $0x6d0] sm:$0xff]
        %v520 = vld [vmem:[%s255 + $0x6d8] sm:$0xff]
        %v521 = vld [vmem:[%s255 + $0x6e0] sm:$0xff]
        %v522 = vld [vmem:[%s255 + $0x6e8] sm:$0xff]
        %v523 = vld [vmem:[%s255 + $0x6f0] sm:$0xff]
        %v524 = vld [vmem:[%s255 + $0x6f8] sm:$0xff]
        %v525 = vld [vmem:[%s255 + $0x700] sm:$0xff]
        %v526 = vld [vmem:[%s255 + $0x708] sm:$0xff]
        %v527 = vld [vmem:[%s255 + $0x710] sm:$0xff]
        %v528 = vld [vmem:[%s255 + $0x718] sm:$0xff]
        %v529 = vld [vmem:[%s255 + $0x720] sm:$0xff]
        %v530 = vld [vmem:[%s255 + $0x728] sm:$0xff]
        %v531 = vld [vmem:[%s255 + $0x730] sm:$0xff]
        %v532 = vld [vmem:[%s255 + $0x738] sm:$0xff]
        %v533 = vld [vmem:[%s255 + $0x740] sm:$0xff]
        %v534 = vld [vmem:[%s255 + $0x748] sm:$0xff]
        %v535 = vld [vmem:[%s255 + $0x750] sm:$0xff]
        %v536 = vld [vmem:[%s255 + $0x758] sm:$0xff]
        %v537 = vld [vmem:[%s255 + $0x760] sm:$0xff]
        %v538 = vld [vmem:[%s255 + $0x768] sm:$0xff]
        %v539 = vld [vmem:[%s255 + $0x770] sm:$0xff]
        %v540 = vld [vmem:[%s255 + $0x778] sm:$0xff]
        %v541 = vld [vmem:[%s255 + $0x780] sm:$0xff]
        %v542 = vld [vmem:[%s255 + $0x788] sm:$0xff]
        %v543 = vld [vmem:[%s255 + $0x790] sm:$0xff]
        %v544 = vld [vmem:[%s255 + $0x798] sm:$0xff]
        %v545 = vld [vmem:[%s255 + $0x7a0] sm:$0xff]
        %v546 = vld [vmem:[%s255 + $0x7a8] sm:$0xff]
        %v547 = vld [vmem:[%s255 + $0x7b0] sm:$0xff]
        %v548 = vld [vmem:[%s255 + $0x7b8] sm:$0xff]
        %v549 = vld [vmem:[%s255 + $0x7c0] sm:$0xff]
        %v550 = vld [vmem:[%s255 + $0x7c8] sm:$0xff]
        %v551 = vld [vmem:[%s255 + $0x7d0] sm:$0xff]
        %v552 = vld [vmem:[%s255 + $0x7d8] sm:$0xff]
        %v553 = vld [vmem:[%s255 + $0x7e0] sm:$0xff]
        %v554 = vld [vmem:[%s255 + $0x7e8] sm:$0xff]
        %v555 = vld [vmem:[%s255 + $0x7f0] sm:$0xff]
        %v556 = vld [vmem:[%s255 + $0x7f8] sm:$0xff]
        %v557 = vld [vmem:[%s264] sm:$0xf]
        %v559 = vlaneseq
        %v560 = vshrl.u32 %v559, 7
        %v561 = vsub.s32 0, %v560
        %v562 = vrot.slane %v557, %v561
        %v563 = vlaneseq
        %v564 = vshrl.u32 %v563, 7
        %v565 = vsub.s32 1, %v564
        %v566 = vrot.slane %v557, %v565
        %v567 = vlaneseq
        %v568 = vshrl.u32 %v567, 7
        %v569 = vsub.s32 2, %v568
        %v570 = vrot.slane %v557, %v569
        %v571 = vlaneseq
        %v572 = vshrl.u32 %v571, 7
        %v573 = vsub.s32 3, %v572
        %v574 = vrot.slane %v557, %v573
        %v580 = vcombine.high %v300, %v300
        %v582 = vunpack.c.l.s4 1966171168
        %v583 = vunpack.c.0.s8 %v582
        %v584 = vlaneseq
        %v585 = vshrl.u32 %v584, 7
        %v586 = vsub.s32 %v583, %v585
        %v587 = vrot.slane %v300, %v586
        %v589 = vunpack.c.l.s4 1966171168
        %v590 = vunpack.c.0.s8 %v589
        %v591 = vlaneseq
        %v592 = vshrl.u32 %v591, 7
        %v593 = vsub.s32 %v590, %v592
        %v594 = vrot.slane %v580, %v593
        %v595 = vcombine.high %v587, %v587
        %v596 = vcombine.high %v594, %v594
        %v598 = vunpack.c.l.s4 1966171168
        %v599 = vunpack.c.0.s8 %v598
        %v600 = vlaneseq
        %v601 = vshrl.u32 %v600, 7
        %v602 = vsub.s32 %v599, %v601
        %v603 = vrot.slane %v587, %v602
        %v605 = vunpack.c.l.s4 1966171168
        %v606 = vunpack.c.0.s8 %v605
        %v607 = vlaneseq
        %v608 = vshrl.u32 %v607, 7
        %v609 = vsub.s32 %v606, %v608
        %v610 = vrot.slane %v594, %v609
        %v612 = vunpack.c.l.s4 1966171168
        %v613 = vunpack.c.0.s8 %v612
        %v614 = vlaneseq
        %v615 = vshrl.u32 %v614, 7
        %v616 = vsub.s32 %v613, %v615
        %v617 = vrot.slane %v595, %v616
        %v619 = vunpack.c.l.s4 1966171168
        %v620 = vunpack.c.0.s8 %v619
        %v621 = vlaneseq
        %v622 = vshrl.u32 %v621, 7
        %v623 = vsub.s32 %v620, %v622
        %v624 = vrot.slane %v596, %v623
        %v625 = vcombine.high %v603, %v603
        %v626 = vcombine.high %v610, %v610
        %v627 = vcombine.high %v617, %v617
        %v628 = vcombine.high %v624, %v624
        %v893 = vunpack.c.l.b16 %v301
        %v894 = vunpack.c.h.b16 %v301
        %v895 = vunpack.c.l.b16 %v302
        %v896 = vunpack.c.h.b16 %v302
        %v897 = vunpack.c.l.b16 %v303
        %v898 = vunpack.c.h.b16 %v303
        %v899 = vunpack.c.l.b16 %v304
        %v900 = vunpack.c.h.b16 %v304
        %v901 = vunpack.c.l.b16 %v305
        %v902 = vunpack.c.h.b16 %v305
        %v903 = vunpack.c.l.b16 %v306
        %v904 = vunpack.c.h.b16 %v306
        %v905 = vunpack.c.l.b16 %v307
        %v906 = vunpack.c.h.b16 %v307
        %v907 = vunpack.c.l.b16 %v308
        %v908 = vunpack.c.h.b16 %v308
        %v909 = vunpack.c.l.b16 %v309
        %v910 = vunpack.c.h.b16 %v309
        %v911 = vunpack.c.l.b16 %v310
        %v912 = vunpack.c.h.b16 %v310
        %v913 = vunpack.c.l.b16 %v311
        %v914 = vunpack.c.h.b16 %v311
        %v915 = vunpack.c.l.b16 %v312
        %v916 = vunpack.c.h.b16 %v312
        %v917 = vunpack.c.l.b16 %v313
        %v918 = vunpack.c.h.b16 %v313
        %v919 = vunpack.c.l.b16 %v314
        %v920 = vunpack.c.h.b16 %v314
        %v921 = vunpack.c.l.b16 %v315
        %v922 = vunpack.c.h.b16 %v315
        %v923 = vunpack.c.l.b16 %v316
        %v924 = vunpack.c.h.b16 %v316
        %v925 = vunpack.c.l.b16 %v317
        %v926 = vunpack.c.h.b16 %v317
        %v927 = vunpack.c.l.b16 %v318
        %v928 = vunpack.c.h.b16 %v318
        %v929 = vunpack.c.l.b16 %v319
        %v930 = vunpack.c.h.b16 %v319
        %v931 = vunpack.c.l.b16 %v320
        %v932 = vunpack.c.h.b16 %v320
        %v933 = vunpack.c.l.b16 %v321
        %v934 = vunpack.c.h.b16 %v321
        %v935 = vunpack.c.l.b16 %v322
        %v936 = vunpack.c.h.b16 %v322
        %v937 = vunpack.c.l.b16 %v323
        %v938 = vunpack.c.h.b16 %v323
        %v939 = vunpack.c.l.b16 %v324
        %v940 = vunpack.c.h.b16 %v324
        %v941 = vunpack.c.l.b16 %v325
        %v942 = vunpack.c.h.b16 %v325
        %v943 = vunpack.c.l.b16 %v326
        %v944 = vunpack.c.h.b16 %v326
        %v945 = vunpack.c.l.b16 %v327
        %v946 = vunpack.c.h.b16 %v327
        %v947 = vunpack.c.l.b16 %v328
        %v948 = vunpack.c.h.b16 %v328
        %v949 = vunpack.c.l.b16 %v329
        %v950 = vunpack.c.h.b16 %v329
        %v951 = vunpack.c.l.b16 %v330
        %v952 = vunpack.c.h.b16 %v330
        %v953 = vunpack.c.l.b16 %v331
        %v954 = vunpack.c.h.b16 %v331
        %v955 = vunpack.c.l.b16 %v332
        %v956 = vunpack.c.h.b16 %v332
        %v957 = vunpack.c.l.b16 %v333
        %v958 = vunpack.c.h.b16 %v333
        %v959 = vunpack.c.l.b16 %v334
        %v960 = vunpack.c.h.b16 %v334
        %v961 = vunpack.c.l.b16 %v335
        %v962 = vunpack.c.h.b16 %v335
        %v963 = vunpack.c.l.b16 %v336
        %v964 = vunpack.c.h.b16 %v336
        %v965 = vunpack.c.l.b16 %v337
        %v966 = vunpack.c.h.b16 %v337
        %v967 = vunpack.c.l.b16 %v338
        %v968 = vunpack.c.h.b16 %v338
        %v969 = vunpack.c.l.b16 %v339
        %v970 = vunpack.c.h.b16 %v339
        %v971 = vunpack.c.l.b16 %v340
        %v972 = vunpack.c.h.b16 %v340
        %v973 = vunpack.c.l.b16 %v341
        %v974 = vunpack.c.h.b16 %v341
        %v975 = vunpack.c.l.b16 %v342
        %v976 = vunpack.c.h.b16 %v342
        %v977 = vunpack.c.l.b16 %v343
        %v978 = vunpack.c.h.b16 %v343
        %v979 = vunpack.c.l.b16 %v344
        %v980 = vunpack.c.h.b16 %v344
        %v981 = vunpack.c.l.b16 %v345
        %v982 = vunpack.c.h.b16 %v345
        %v983 = vunpack.c.l.b16 %v346
        %v984 = vunpack.c.h.b16 %v346
        %v985 = vunpack.c.l.b16 %v347
        %v986 = vunpack.c.h.b16 %v347
        %v987 = vunpack.c.l.b16 %v348
        %v988 = vunpack.c.h.b16 %v348
        %v989 = vunpack.c.l.b16 %v349
        %v990 = vunpack.c.h.b16 %v349
        %v991 = vunpack.c.l.b16 %v350
        %v992 = vunpack.c.h.b16 %v350
        %v993 = vunpack.c.l.b16 %v351
        %v994 = vunpack.c.h.b16 %v351
        %v995 = vunpack.c.l.b16 %v352
        %v996 = vunpack.c.h.b16 %v352
        %v997 = vunpack.c.l.b16 %v353
        %v998 = vunpack.c.h.b16 %v353
        %v999 = vunpack.c.l.b16 %v354
        %v1000 = vunpack.c.h.b16 %v354
        %v1001 = vunpack.c.l.b16 %v355
        %v1002 = vunpack.c.h.b16 %v355
        %v1003 = vunpack.c.l.b16 %v356
        %v1004 = vunpack.c.h.b16 %v356
        %v1005 = vunpack.c.l.b16 %v357
        %v1006 = vunpack.c.h.b16 %v357
        %v1007 = vunpack.c.l.b16 %v358
        %v1008 = vunpack.c.h.b16 %v358
        %v1009 = vunpack.c.l.b16 %v359
        %v1010 = vunpack.c.h.b16 %v359
        %v1011 = vunpack.c.l.b16 %v360
        %v1012 = vunpack.c.h.b16 %v360
        %v1013 = vunpack.c.l.b16 %v361
        %v1014 = vunpack.c.h.b16 %v361
        %v1015 = vunpack.c.l.b16 %v362
        %v1016 = vunpack.c.h.b16 %v362
        %v1017 = vunpack.c.l.b16 %v363
        %v1018 = vunpack.c.h.b16 %v363
        %v1019 = vunpack.c.l.b16 %v364
        %v1020 = vunpack.c.h.b16 %v364
        %v1021 = vunpack.c.l.b16 %v365
        %v1022 = vunpack.c.h.b16 %v365
        %v1023 = vunpack.c.l.b16 %v366
        %v1024 = vunpack.c.h.b16 %v366
        %v1025 = vunpack.c.l.b16 %v367
        %v1026 = vunpack.c.h.b16 %v367
        %v1027 = vunpack.c.l.b16 %v368
        %v1028 = vunpack.c.h.b16 %v368
        %v1029 = vunpack.c.l.b16 %v369
        %v1030 = vunpack.c.h.b16 %v369
        %v1031 = vunpack.c.l.b16 %v370
        %v1032 = vunpack.c.h.b16 %v370
        %v1033 = vunpack.c.l.b16 %v371
        %v1034 = vunpack.c.h.b16 %v371
        %v1035 = vunpack.c.l.b16 %v372
        %v1036 = vunpack.c.h.b16 %v372
        %v1037 = vunpack.c.l.b16 %v373
        %v1038 = vunpack.c.h.b16 %v373
        %v1039 = vunpack.c.l.b16 %v374
        %v1040 = vunpack.c.h.b16 %v374
        %v1041 = vunpack.c.l.b16 %v375
        %v1042 = vunpack.c.h.b16 %v375
        %v1043 = vunpack.c.l.b16 %v376
        %v1044 = vunpack.c.h.b16 %v376
        %v1045 = vunpack.c.l.b16 %v377
        %v1046 = vunpack.c.h.b16 %v377
        %v1047 = vunpack.c.l.b16 %v378
        %v1048 = vunpack.c.h.b16 %v378
        %v1049 = vunpack.c.l.b16 %v379
        %v1050 = vunpack.c.h.b16 %v379
        %v1051 = vunpack.c.l.b16 %v380
        %v1052 = vunpack.c.h.b16 %v380
        %v1053 = vunpack.c.l.b16 %v381
        %v1054 = vunpack.c.h.b16 %v381
        %v1055 = vunpack.c.l.b16 %v382
        %v1056 = vunpack.c.h.b16 %v382
        %v1057 = vunpack.c.l.b16 %v383
        %v1058 = vunpack.c.h.b16 %v383
        %v1059 = vunpack.c.l.b16 %v384
        %v1060 = vunpack.c.h.b16 %v384
        %v1061 = vunpack.c.l.b16 %v385
        %v1062 = vunpack.c.h.b16 %v385
        %v1063 = vunpack.c.l.b16 %v386
        %v1064 = vunpack.c.h.b16 %v386
        %v1065 = vunpack.c.l.b16 %v387
        %v1066 = vunpack.c.h.b16 %v387
        %v1067 = vunpack.c.l.b16 %v388
        %v1068 = vunpack.c.h.b16 %v388
        %v1069 = vunpack.c.l.b16 %v389
        %v1070 = vunpack.c.h.b16 %v389
        %v1071 = vunpack.c.l.b16 %v390
        %v1072 = vunpack.c.h.b16 %v390
        %v1073 = vunpack.c.l.b16 %v391
        %v1074 = vunpack.c.h.b16 %v391
        %v1075 = vunpack.c.l.b16 %v392
        %v1076 = vunpack.c.h.b16 %v392
        %v1077 = vunpack.c.l.b16 %v393
        %v1078 = vunpack.c.h.b16 %v393
        %v1079 = vunpack.c.l.b16 %v394
        %v1080 = vunpack.c.h.b16 %v394
        %v1081 = vunpack.c.l.b16 %v395
        %v1082 = vunpack.c.h.b16 %v395
        %v1083 = vunpack.c.l.b16 %v396
        %v1084 = vunpack.c.h.b16 %v396
        %v1085 = vunpack.c.l.b16 %v397
        %v1086 = vunpack.c.h.b16 %v397
        %v1087 = vunpack.c.l.b16 %v398
        %v1088 = vunpack.c.h.b16 %v398
        %v1089 = vunpack.c.l.b16 %v399
        %v1090 = vunpack.c.h.b16 %v399
        %v1091 = vunpack.c.l.b16 %v400
        %v1092 = vunpack.c.h.b16 %v400
        %v1093 = vunpack.c.l.b16 %v401
        %v1094 = vunpack.c.h.b16 %v401
        %v1095 = vunpack.c.l.b16 %v402
        %v1096 = vunpack.c.h.b16 %v402
        %v1097 = vunpack.c.l.b16 %v403
        %v1098 = vunpack.c.h.b16 %v403
        %v1099 = vunpack.c.l.b16 %v404
        %v1100 = vunpack.c.h.b16 %v404
        %v1101 = vunpack.c.l.b16 %v405
        %v1102 = vunpack.c.h.b16 %v405
        %v1103 = vunpack.c.l.b16 %v406
        %v1104 = vunpack.c.h.b16 %v406
        %v1105 = vunpack.c.l.b16 %v407
        %v1106 = vunpack.c.h.b16 %v407
        %v1107 = vunpack.c.l.b16 %v408
        %v1108 = vunpack.c.h.b16 %v408
        %v1109 = vunpack.c.l.b16 %v409
        %v1110 = vunpack.c.h.b16 %v409
        %v1111 = vunpack.c.l.b16 %v410
        %v1112 = vunpack.c.h.b16 %v410
        %v1113 = vunpack.c.l.b16 %v411
        %v1114 = vunpack.c.h.b16 %v411
        %v1115 = vunpack.c.l.b16 %v412
        %v1116 = vunpack.c.h.b16 %v412
        %v1117 = vunpack.c.l.b16 %v413
        %v1118 = vunpack.c.h.b16 %v413
        %v1119 = vunpack.c.l.b16 %v414
        %v1120 = vunpack.c.h.b16 %v414
        %v1121 = vunpack.c.l.b16 %v415
        %v1122 = vunpack.c.h.b16 %v415
        %v1123 = vunpack.c.l.b16 %v416
        %v1124 = vunpack.c.h.b16 %v416
        %v1125 = vunpack.c.l.b16 %v417
        %v1126 = vunpack.c.h.b16 %v417
        %v1127 = vunpack.c.l.b16 %v418
        %v1128 = vunpack.c.h.b16 %v418
        %v1129 = vunpack.c.l.b16 %v419
        %v1130 = vunpack.c.h.b16 %v419
        %v1131 = vunpack.c.l.b16 %v420
        %v1132 = vunpack.c.h.b16 %v420
        %v1133 = vunpack.c.l.b16 %v421
        %v1134 = vunpack.c.h.b16 %v421
        %v1135 = vunpack.c.l.b16 %v422
        %v1136 = vunpack.c.h.b16 %v422
        %v1137 = vunpack.c.l.b16 %v423
        %v1138 = vunpack.c.h.b16 %v423
        %v1139 = vunpack.c.l.b16 %v424
        %v1140 = vunpack.c.h.b16 %v424
        %v1141 = vunpack.c.l.b16 %v425
        %v1142 = vunpack.c.h.b16 %v425
        %v1143 = vunpack.c.l.b16 %v426
        %v1144 = vunpack.c.h.b16 %v426
        %v1145 = vunpack.c.l.b16 %v427
        %v1146 = vunpack.c.h.b16 %v427
        %v1147 = vunpack.c.l.b16 %v428
        %v1148 = vunpack.c.h.b16 %v428
        %v1149 = vunpack.c.l.b16 %v429
        %v1150 = vunpack.c.h.b16 %v429
        %v1151 = vunpack.c.l.b16 %v430
        %v1152 = vunpack.c.h.b16 %v430
        %v1153 = vunpack.c.l.b16 %v431
        %v1154 = vunpack.c.h.b16 %v431
        %v1155 = vunpack.c.l.b16 %v432
        %v1156 = vunpack.c.h.b16 %v432
        %v1157 = vunpack.c.l.b16 %v433
        %v1158 = vunpack.c.h.b16 %v433
        %v1159 = vunpack.c.l.b16 %v434
        %v1160 = vunpack.c.h.b16 %v434
        %v1161 = vunpack.c.l.b16 %v435
        %v1162 = vunpack.c.h.b16 %v435
        %v1163 = vunpack.c.l.b16 %v436
        %v1164 = vunpack.c.h.b16 %v436
        %v1165 = vunpack.c.l.b16 %v437
        %v1166 = vunpack.c.h.b16 %v437
        %v1167 = vunpack.c.l.b16 %v438
        %v1168 = vunpack.c.h.b16 %v438
        %v1169 = vunpack.c.l.b16 %v439
        %v1170 = vunpack.c.h.b16 %v439
        %v1171 = vunpack.c.l.b16 %v440
        %v1172 = vunpack.c.h.b16 %v440
        %v1173 = vunpack.c.l.b16 %v441
        %v1174 = vunpack.c.h.b16 %v441
        %v1175 = vunpack.c.l.b16 %v442
        %v1176 = vunpack.c.h.b16 %v442
        %v1177 = vunpack.c.l.b16 %v443
        %v1178 = vunpack.c.h.b16 %v443
        %v1179 = vunpack.c.l.b16 %v444
        %v1180 = vunpack.c.h.b16 %v444
        %v1181 = vunpack.c.l.b16 %v445
        %v1182 = vunpack.c.h.b16 %v445
        %v1183 = vunpack.c.l.b16 %v446
        %v1184 = vunpack.c.h.b16 %v446
        %v1185 = vunpack.c.l.b16 %v447
        %v1186 = vunpack.c.h.b16 %v447
        %v1187 = vunpack.c.l.b16 %v448
        %v1188 = vunpack.c.h.b16 %v448
        %v1189 = vunpack.c.l.b16 %v449
        %v1190 = vunpack.c.h.b16 %v449
        %v1191 = vunpack.c.l.b16 %v450
        %v1192 = vunpack.c.h.b16 %v450
        %v1193 = vunpack.c.l.b16 %v451
        %v1194 = vunpack.c.h.b16 %v451
        %v1195 = vunpack.c.l.b16 %v452
        %v1196 = vunpack.c.h.b16 %v452
        %v1197 = vunpack.c.l.b16 %v453
        %v1198 = vunpack.c.h.b16 %v453
        %v1199 = vunpack.c.l.b16 %v454
        %v1200 = vunpack.c.h.b16 %v454
        %v1201 = vunpack.c.l.b16 %v455
        %v1202 = vunpack.c.h.b16 %v455
        %v1203 = vunpack.c.l.b16 %v456
        %v1204 = vunpack.c.h.b16 %v456
        %v1205 = vunpack.c.l.b16 %v457
        %v1206 = vunpack.c.h.b16 %v457
        %v1207 = vunpack.c.l.b16 %v458
        %v1208 = vunpack.c.h.b16 %v458
        %v1209 = vunpack.c.l.b16 %v459
        %v1210 = vunpack.c.h.b16 %v459
        %v1211 = vunpack.c.l.b16 %v460
        %v1212 = vunpack.c.h.b16 %v460
        %v1213 = vunpack.c.l.b16 %v461
        %v1214 = vunpack.c.h.b16 %v461
        %v1215 = vunpack.c.l.b16 %v462
        %v1216 = vunpack.c.h.b16 %v462
        %v1217 = vunpack.c.l.b16 %v463
        %v1218 = vunpack.c.h.b16 %v463
        %v1219 = vunpack.c.l.b16 %v464
        %v1220 = vunpack.c.h.b16 %v464
        %v1221 = vunpack.c.l.b16 %v465
        %v1222 = vunpack.c.h.b16 %v465
        %v1223 = vunpack.c.l.b16 %v466
        %v1224 = vunpack.c.h.b16 %v466
        %v1225 = vunpack.c.l.b16 %v467
        %v1226 = vunpack.c.h.b16 %v467
        %v1227 = vunpack.c.l.b16 %v468
        %v1228 = vunpack.c.h.b16 %v468
        %v1229 = vunpack.c.l.b16 %v469
        %v1230 = vunpack.c.h.b16 %v469
        %v1231 = vunpack.c.l.b16 %v470
        %v1232 = vunpack.c.h.b16 %v470
        %v1233 = vunpack.c.l.b16 %v471
        %v1234 = vunpack.c.h.b16 %v471
        %v1235 = vunpack.c.l.b16 %v472
        %v1236 = vunpack.c.h.b16 %v472
        %v1237 = vunpack.c.l.b16 %v473
        %v1238 = vunpack.c.h.b16 %v473
        %v1239 = vunpack.c.l.b16 %v474
        %v1240 = vunpack.c.h.b16 %v474
        %v1241 = vunpack.c.l.b16 %v475
        %v1242 = vunpack.c.h.b16 %v475
        %v1243 = vunpack.c.l.b16 %v476
        %v1244 = vunpack.c.h.b16 %v476
        %v1245 = vunpack.c.l.b16 %v477
        %v1246 = vunpack.c.h.b16 %v477
        %v1247 = vunpack.c.l.b16 %v478
        %v1248 = vunpack.c.h.b16 %v478
        %v1249 = vunpack.c.l.b16 %v479
        %v1250 = vunpack.c.h.b16 %v479
        %v1251 = vunpack.c.l.b16 %v480
        %v1252 = vunpack.c.h.b16 %v480
        %v1253 = vunpack.c.l.b16 %v481
        %v1254 = vunpack.c.h.b16 %v481
        %v1255 = vunpack.c.l.b16 %v482
        %v1256 = vunpack.c.h.b16 %v482
        %v1257 = vunpack.c.l.b16 %v483
        %v1258 = vunpack.c.h.b16 %v483
        %v1259 = vunpack.c.l.b16 %v484
        %v1260 = vunpack.c.h.b16 %v484
        %v1261 = vunpack.c.l.b16 %v485
        %v1262 = vunpack.c.h.b16 %v485
        %v1263 = vunpack.c.l.b16 %v486
        %v1264 = vunpack.c.h.b16 %v486
        %v1265 = vunpack.c.l.b16 %v487
        %v1266 = vunpack.c.h.b16 %v487
        %v1267 = vunpack.c.l.b16 %v488
        %v1268 = vunpack.c.h.b16 %v488
        %v1269 = vunpack.c.l.b16 %v489
        %v1270 = vunpack.c.h.b16 %v489
        %v1271 = vunpack.c.l.b16 %v490
        %v1272 = vunpack.c.h.b16 %v490
        %v1273 = vunpack.c.l.b16 %v491
        %v1274 = vunpack.c.h.b16 %v491
        %v1275 = vunpack.c.l.b16 %v492
        %v1276 = vunpack.c.h.b16 %v492
        %v1277 = vunpack.c.l.b16 %v493
        %v1278 = vunpack.c.h.b16 %v493
        %v1279 = vunpack.c.l.b16 %v494
        %v1280 = vunpack.c.h.b16 %v494
        %v1281 = vunpack.c.l.b16 %v495
        %v1282 = vunpack.c.h.b16 %v495
        %v1283 = vunpack.c.l.b16 %v496
        %v1284 = vunpack.c.h.b16 %v496
        %v1285 = vunpack.c.l.b16 %v497
        %v1286 = vunpack.c.h.b16 %v497
        %v1287 = vunpack.c.l.b16 %v498
        %v1288 = vunpack.c.h.b16 %v498
        %v1289 = vunpack.c.l.b16 %v499
        %v1290 = vunpack.c.h.b16 %v499
        %v1291 = vunpack.c.l.b16 %v500
        %v1292 = vunpack.c.h.b16 %v500
        %v1293 = vunpack.c.l.b16 %v501
        %v1294 = vunpack.c.h.b16 %v501
        %v1295 = vunpack.c.l.b16 %v502
        %v1296 = vunpack.c.h.b16 %v502
        %v1297 = vunpack.c.l.b16 %v503
        %v1298 = vunpack.c.h.b16 %v503
        %v1299 = vunpack.c.l.b16 %v504
        %v1300 = vunpack.c.h.b16 %v504
        %v1301 = vunpack.c.l.b16 %v505
        %v1302 = vunpack.c.h.b16 %v505
        %v1303 = vunpack.c.l.b16 %v506
        %v1304 = vunpack.c.h.b16 %v506
        %v1305 = vunpack.c.l.b16 %v507
        %v1306 = vunpack.c.h.b16 %v507
        %v1307 = vunpack.c.l.b16 %v508
        %v1308 = vunpack.c.h.b16 %v508
        %v1309 = vunpack.c.l.b16 %v509
        %v1310 = vunpack.c.h.b16 %v509
        %v1311 = vunpack.c.l.b16 %v510
        %v1312 = vunpack.c.h.b16 %v510
        %v1313 = vunpack.c.l.b16 %v511
        %v1314 = vunpack.c.h.b16 %v511
        %v1315 = vunpack.c.l.b16 %v512
        %v1316 = vunpack.c.h.b16 %v512
        %v1317 = vunpack.c.l.b16 %v513
        %v1318 = vunpack.c.h.b16 %v513
        %v1319 = vunpack.c.l.b16 %v514
        %v1320 = vunpack.c.h.b16 %v514
        %v1321 = vunpack.c.l.b16 %v515
        %v1322 = vunpack.c.h.b16 %v515
        %v1323 = vunpack.c.l.b16 %v516
        %v1324 = vunpack.c.h.b16 %v516
        %v1325 = vunpack.c.l.b16 %v517
        %v1326 = vunpack.c.h.b16 %v517
        %v1327 = vunpack.c.l.b16 %v518
        %v1328 = vunpack.c.h.b16 %v518
        %v1329 = vunpack.c.l.b16 %v519
        %v1330 = vunpack.c.h.b16 %v519
        %v1331 = vunpack.c.l.b16 %v520
        %v1332 = vunpack.c.h.b16 %v520
        %v1333 = vunpack.c.l.b16 %v521
        %v1334 = vunpack.c.h.b16 %v521
        %v1335 = vunpack.c.l.b16 %v522
        %v1336 = vunpack.c.h.b16 %v522
        %v1337 = vunpack.c.l.b16 %v523
        %v1338 = vunpack.c.h.b16 %v523
        %v1339 = vunpack.c.l.b16 %v524
        %v1340 = vunpack.c.h.b16 %v524
        %v1341 = vunpack.c.l.b16 %v525
        %v1342 = vunpack.c.h.b16 %v525
        %v1343 = vunpack.c.l.b16 %v526
        %v1344 = vunpack.c.h.b16 %v526
        %v1345 = vunpack.c.l.b16 %v527
        %v1346 = vunpack.c.h.b16 %v527
        %v1347 = vunpack.c.l.b16 %v528
        %v1348 = vunpack.c.h.b16 %v528
        %v1349 = vunpack.c.l.b16 %v529
        %v1350 = vunpack.c.h.b16 %v529
        %v1351 = vunpack.c.l.b16 %v530
        %v1352 = vunpack.c.h.b16 %v530
        %v1353 = vunpack.c.l.b16 %v531
        %v1354 = vunpack.c.h.b16 %v531
        %v1355 = vunpack.c.l.b16 %v532
        %v1356 = vunpack.c.h.b16 %v532
        %v1357 = vunpack.c.l.b16 %v533
        %v1358 = vunpack.c.h.b16 %v533
        %v1359 = vunpack.c.l.b16 %v534
        %v1360 = vunpack.c.h.b16 %v534
        %v1361 = vunpack.c.l.b16 %v535
        %v1362 = vunpack.c.h.b16 %v535
        %v1363 = vunpack.c.l.b16 %v536
        %v1364 = vunpack.c.h.b16 %v536
        %v1365 = vunpack.c.l.b16 %v537
        %v1366 = vunpack.c.h.b16 %v537
        %v1367 = vunpack.c.l.b16 %v538
        %v1368 = vunpack.c.h.b16 %v538
        %v1369 = vunpack.c.l.b16 %v539
        %v1370 = vunpack.c.h.b16 %v539
        %v1371 = vunpack.c.l.b16 %v540
        %v1372 = vunpack.c.h.b16 %v540
        %v1373 = vunpack.c.l.b16 %v541
        %v1374 = vunpack.c.h.b16 %v541
        %v1375 = vunpack.c.l.b16 %v542
        %v1376 = vunpack.c.h.b16 %v542
        %v1377 = vunpack.c.l.b16 %v543
        %v1378 = vunpack.c.h.b16 %v543
        %v1379 = vunpack.c.l.b16 %v544
        %v1380 = vunpack.c.h.b16 %v544
        %v1381 = vunpack.c.l.b16 %v545
        %v1382 = vunpack.c.h.b16 %v545
        %v1383 = vunpack.c.l.b16 %v546
        %v1384 = vunpack.c.h.b16 %v546
        %v1385 = vunpack.c.l.b16 %v547
        %v1386 = vunpack.c.h.b16 %v547
        %v1387 = vunpack.c.l.b16 %v548
        %v1388 = vunpack.c.h.b16 %v548
        %v1389 = vunpack.c.l.b16 %v549
        %v1390 = vunpack.c.h.b16 %v549
        %v1391 = vunpack.c.l.b16 %v550
        %v1392 = vunpack.c.h.b16 %v550
        %v1393 = vunpack.c.l.b16 %v551
        %v1394 = vunpack.c.h.b16 %v551
        %v1395 = vunpack.c.l.b16 %v552
        %v1396 = vunpack.c.h.b16 %v552
        %v1397 = vunpack.c.l.b16 %v553
        %v1398 = vunpack.c.h.b16 %v553
        %v1399 = vunpack.c.l.b16 %v554
        %v1400 = vunpack.c.h.b16 %v554
        %v1401 = vunpack.c.l.b16 %v555
        %v1402 = vunpack.c.h.b16 %v555
        %v1403 = vunpack.c.l.b16 %v556
        %v1404 = vunpack.c.h.b16 %v556
        %v1405 = vpack.c.b16 %v897, %v893
        %v1406 = vpack.c.b16 %v898, %v894
        %v1407 = vpack.c.b16 %v899, %v895
        %v1408 = vpack.c.b16 %v900, %v896
        %v1409 = vpack.c.b16 %v905, %v901
        %v1410 = vpack.c.b16 %v906, %v902
        %v1411 = vpack.c.b16 %v907, %v903
        %v1412 = vpack.c.b16 %v908, %v904
        %v1413 = vpack.c.b16 %v913, %v909
        %v1414 = vpack.c.b16 %v914, %v910
        %v1415 = vpack.c.b16 %v915, %v911
        %v1416 = vpack.c.b16 %v916, %v912
        %v1417 = vpack.c.b16 %v921, %v917
        %v1418 = vpack.c.b16 %v922, %v918
        %v1419 = vpack.c.b16 %v923, %v919
        %v1420 = vpack.c.b16 %v924, %v920
        %v1421 = vpack.c.b16 %v929, %v925
        %v1422 = vpack.c.b16 %v930, %v926
        %v1423 = vpack.c.b16 %v931, %v927
        %v1424 = vpack.c.b16 %v932, %v928
        %v1425 = vpack.c.b16 %v937, %v933
        %v1426 = vpack.c.b16 %v938, %v934
        %v1427 = vpack.c.b16 %v939, %v935
        %v1428 = vpack.c.b16 %v940, %v936
        %v1429 = vpack.c.b16 %v945, %v941
        %v1430 = vpack.c.b16 %v946, %v942
        %v1431 = vpack.c.b16 %v947, %v943
        %v1432 = vpack.c.b16 %v948, %v944
        %v1433 = vpack.c.b16 %v953, %v949
        %v1434 = vpack.c.b16 %v954, %v950
        %v1435 = vpack.c.b16 %v955, %v951
        %v1436 = vpack.c.b16 %v956, %v952
        %v1437 = vpack.c.b16 %v961, %v957
        %v1438 = vpack.c.b16 %v962, %v958
        %v1439 = vpack.c.b16 %v963, %v959
        %v1440 = vpack.c.b16 %v964, %v960
        %v1441 = vpack.c.b16 %v969, %v965
        %v1442 = vpack.c.b16 %v970, %v966
        %v1443 = vpack.c.b16 %v971, %v967
        %v1444 = vpack.c.b16 %v972, %v968
        %v1445 = vpack.c.b16 %v977, %v973
        %v1446 = vpack.c.b16 %v978, %v974
        %v1447 = vpack.c.b16 %v979, %v975
        %v1448 = vpack.c.b16 %v980, %v976
        %v1449 = vpack.c.b16 %v985, %v981
        %v1450 = vpack.c.b16 %v986, %v982
        %v1451 = vpack.c.b16 %v987, %v983
        %v1452 = vpack.c.b16 %v988, %v984
        %v1453 = vpack.c.b16 %v993, %v989
        %v1454 = vpack.c.b16 %v994, %v990
        %v1455 = vpack.c.b16 %v995, %v991
        %v1456 = vpack.c.b16 %v996, %v992
        %v1457 = vpack.c.b16 %v1001, %v997
        %v1458 = vpack.c.b16 %v1002, %v998
        %v1459 = vpack.c.b16 %v1003, %v999
        %v1460 = vpack.c.b16 %v1004, %v1000
        %v1461 = vpack.c.b16 %v1009, %v1005
        %v1462 = vpack.c.b16 %v1010, %v1006
        %v1463 = vpack.c.b16 %v1011, %v1007
        %v1464 = vpack.c.b16 %v1012, %v1008
        %v1465 = vpack.c.b16 %v1017, %v1013
        %v1466 = vpack.c.b16 %v1018, %v1014
        %v1467 = vpack.c.b16 %v1019, %v1015
        %v1468 = vpack.c.b16 %v1020, %v1016
        %v1469 = vpack.c.b16 %v1025, %v1021
        %v1470 = vpack.c.b16 %v1026, %v1022
        %v1471 = vpack.c.b16 %v1027, %v1023
        %v1472 = vpack.c.b16 %v1028, %v1024
        %v1473 = vpack.c.b16 %v1033, %v1029
        %v1474 = vpack.c.b16 %v1034, %v1030
        %v1475 = vpack.c.b16 %v1035, %v1031
        %v1476 = vpack.c.b16 %v1036, %v1032
        %v1477 = vpack.c.b16 %v1041, %v1037
        %v1478 = vpack.c.b16 %v1042, %v1038
        %v1479 = vpack.c.b16 %v1043, %v1039
        %v1480 = vpack.c.b16 %v1044, %v1040
        %v1481 = vpack.c.b16 %v1049, %v1045
        %v1482 = vpack.c.b16 %v1050, %v1046
        %v1483 = vpack.c.b16 %v1051, %v1047
        %v1484 = vpack.c.b16 %v1052, %v1048
        %v1485 = vpack.c.b16 %v1057, %v1053
        %v1486 = vpack.c.b16 %v1058, %v1054
        %v1487 = vpack.c.b16 %v1059, %v1055
        %v1488 = vpack.c.b16 %v1060, %v1056
        %v1489 = vpack.c.b16 %v1065, %v1061
        %v1490 = vpack.c.b16 %v1066, %v1062
        %v1491 = vpack.c.b16 %v1067, %v1063
        %v1492 = vpack.c.b16 %v1068, %v1064
        %v1493 = vpack.c.b16 %v1073, %v1069
        %v1494 = vpack.c.b16 %v1074, %v1070
        %v1495 = vpack.c.b16 %v1075, %v1071
        %v1496 = vpack.c.b16 %v1076, %v1072
        %v1497 = vpack.c.b16 %v1081, %v1077
        %v1498 = vpack.c.b16 %v1082, %v1078
        %v1499 = vpack.c.b16 %v1083, %v1079
        %v1500 = vpack.c.b16 %v1084, %v1080
        %v1501 = vpack.c.b16 %v1089, %v1085
        %v1502 = vpack.c.b16 %v1090, %v1086
        %v1503 = vpack.c.b16 %v1091, %v1087
        %v1504 = vpack.c.b16 %v1092, %v1088
        %v1505 = vpack.c.b16 %v1097, %v1093
        %v1506 = vpack.c.b16 %v1098, %v1094
        %v1507 = vpack.c.b16 %v1099, %v1095
        %v1508 = vpack.c.b16 %v1100, %v1096
        %v1509 = vpack.c.b16 %v1105, %v1101
        %v1510 = vpack.c.b16 %v1106, %v1102
        %v1511 = vpack.c.b16 %v1107, %v1103
        %v1512 = vpack.c.b16 %v1108, %v1104
        %v1513 = vpack.c.b16 %v1113, %v1109
        %v1514 = vpack.c.b16 %v1114, %v1110
        %v1515 = vpack.c.b16 %v1115, %v1111
        %v1516 = vpack.c.b16 %v1116, %v1112
        %v1517 = vpack.c.b16 %v1121, %v1117
        %v1518 = vpack.c.b16 %v1122, %v1118
        %v1519 = vpack.c.b16 %v1123, %v1119
        %v1520 = vpack.c.b16 %v1124, %v1120
        %v1521 = vpack.c.b16 %v1129, %v1125
        %v1522 = vpack.c.b16 %v1130, %v1126
        %v1523 = vpack.c.b16 %v1131, %v1127
        %v1524 = vpack.c.b16 %v1132, %v1128
        %v1525 = vpack.c.b16 %v1137, %v1133
        %v1526 = vpack.c.b16 %v1138, %v1134
        %v1527 = vpack.c.b16 %v1139, %v1135
        %v1528 = vpack.c.b16 %v1140, %v1136
        %v1529 = vpack.c.b16 %v1145, %v1141
        %v1530 = vpack.c.b16 %v1146, %v1142
        %v1531 = vpack.c.b16 %v1147, %v1143
        %v1532 = vpack.c.b16 %v1148, %v1144
        %v1533 = vpack.c.b16 %v1153, %v1149
        %v1534 = vpack.c.b16 %v1154, %v1150
        %v1535 = vpack.c.b16 %v1155, %v1151
        %v1536 = vpack.c.b16 %v1156, %v1152
        %v1537 = vpack.c.b16 %v1161, %v1157
        %v1538 = vpack.c.b16 %v1162, %v1158
        %v1539 = vpack.c.b16 %v1163, %v1159
        %v1540 = vpack.c.b16 %v1164, %v1160
        %v1541 = vpack.c.b16 %v1169, %v1165
        %v1542 = vpack.c.b16 %v1170, %v1166
        %v1543 = vpack.c.b16 %v1171, %v1167
        %v1544 = vpack.c.b16 %v1172, %v1168
        %v1545 = vpack.c.b16 %v1177, %v1173
        %v1546 = vpack.c.b16 %v1178, %v1174
        %v1547 = vpack.c.b16 %v1179, %v1175
        %v1548 = vpack.c.b16 %v1180, %v1176
        %v1549 = vpack.c.b16 %v1185, %v1181
        %v1550 = vpack.c.b16 %v1186, %v1182
        %v1551 = vpack.c.b16 %v1187, %v1183
        %v1552 = vpack.c.b16 %v1188, %v1184
        %v1553 = vpack.c.b16 %v1193, %v1189
        %v1554 = vpack.c.b16 %v1194, %v1190
        %v1555 = vpack.c.b16 %v1195, %v1191
        %v1556 = vpack.c.b16 %v1196, %v1192
        %v1557 = vpack.c.b16 %v1201, %v1197
        %v1558 = vpack.c.b16 %v1202, %v1198
        %v1559 = vpack.c.b16 %v1203, %v1199
        %v1560 = vpack.c.b16 %v1204, %v1200
        %v1561 = vpack.c.b16 %v1209, %v1205
        %v1562 = vpack.c.b16 %v1210, %v1206
        %v1563 = vpack.c.b16 %v1211, %v1207
        %v1564 = vpack.c.b16 %v1212, %v1208
        %v1565 = vpack.c.b16 %v1217, %v1213
        %v1566 = vpack.c.b16 %v1218, %v1214
        %v1567 = vpack.c.b16 %v1219, %v1215
        %v1568 = vpack.c.b16 %v1220, %v1216
        %v1569 = vpack.c.b16 %v1225, %v1221
        %v1570 = vpack.c.b16 %v1226, %v1222
        %v1571 = vpack.c.b16 %v1227, %v1223
        %v1572 = vpack.c.b16 %v1228, %v1224
        %v1573 = vpack.c.b16 %v1233, %v1229
        %v1574 = vpack.c.b16 %v1234, %v1230
        %v1575 = vpack.c.b16 %v1235, %v1231
        %v1576 = vpack.c.b16 %v1236, %v1232
        %v1577 = vpack.c.b16 %v1241, %v1237
        %v1578 = vpack.c.b16 %v1242, %v1238
        %v1579 = vpack.c.b16 %v1243, %v1239
        %v1580 = vpack.c.b16 %v1244, %v1240
        %v1581 = vpack.c.b16 %v1249, %v1245
        %v1582 = vpack.c.b16 %v1250, %v1246
        %v1583 = vpack.c.b16 %v1251, %v1247
        %v1584 = vpack.c.b16 %v1252, %v1248
        %v1585 = vpack.c.b16 %v1257, %v1253
        %v1586 = vpack.c.b16 %v1258, %v1254
        %v1587 = vpack.c.b16 %v1259, %v1255
        %v1588 = vpack.c.b16 %v1260, %v1256
        %v1589 = vpack.c.b16 %v1265, %v1261
        %v1590 = vpack.c.b16 %v1266, %v1262
        %v1591 = vpack.c.b16 %v1267, %v1263
        %v1592 = vpack.c.b16 %v1268, %v1264
        %v1593 = vpack.c.b16 %v1273, %v1269
        %v1594 = vpack.c.b16 %v1274, %v1270
        %v1595 = vpack.c.b16 %v1275, %v1271
        %v1596 = vpack.c.b16 %v1276, %v1272
        %v1597 = vpack.c.b16 %v1281, %v1277
        %v1598 = vpack.c.b16 %v1282, %v1278
        %v1599 = vpack.c.b16 %v1283, %v1279
        %v1600 = vpack.c.b16 %v1284, %v1280
        %v1601 = vpack.c.b16 %v1289, %v1285
        %v1602 = vpack.c.b16 %v1290, %v1286
        %v1603 = vpack.c.b16 %v1291, %v1287
        %v1604 = vpack.c.b16 %v1292, %v1288
        %v1605 = vpack.c.b16 %v1297, %v1293
        %v1606 = vpack.c.b16 %v1298, %v1294
        %v1607 = vpack.c.b16 %v1299, %v1295
        %v1608 = vpack.c.b16 %v1300, %v1296
        %v1609 = vpack.c.b16 %v1305, %v1301
        %v1610 = vpack.c.b16 %v1306, %v1302
        %v1611 = vpack.c.b16 %v1307, %v1303
        %v1612 = vpack.c.b16 %v1308, %v1304
        %v1613 = vpack.c.b16 %v1313, %v1309
        %v1614 = vpack.c.b16 %v1314, %v1310
        %v1615 = vpack.c.b16 %v1315, %v1311
        %v1616 = vpack.c.b16 %v1316, %v1312
        %v1617 = vpack.c.b16 %v1321, %v1317
        %v1618 = vpack.c.b16 %v1322, %v1318
        %v1619 = vpack.c.b16 %v1323, %v1319
        %v1620 = vpack.c.b16 %v1324, %v1320
        %v1621 = vpack.c.b16 %v1329, %v1325
        %v1622 = vpack.c.b16 %v1330, %v1326
        %v1623 = vpack.c.b16 %v1331, %v1327
        %v1624 = vpack.c.b16 %v1332, %v1328
        %v1625 = vpack.c.b16 %v1337, %v1333
        %v1626 = vpack.c.b16 %v1338, %v1334
        %v1627 = vpack.c.b16 %v1339, %v1335
        %v1628 = vpack.c.b16 %v1340, %v1336
        %v1629 = vpack.c.b16 %v1345, %v1341
        %v1630 = vpack.c.b16 %v1346, %v1342
        %v1631 = vpack.c.b16 %v1347, %v1343
        %v1632 = vpack.c.b16 %v1348, %v1344
        %v1633 = vpack.c.b16 %v1353, %v1349
        %v1634 = vpack.c.b16 %v1354, %v1350
        %v1635 = vpack.c.b16 %v1355, %v1351
        %v1636 = vpack.c.b16 %v1356, %v1352
        %v1637 = vpack.c.b16 %v1361, %v1357
        %v1638 = vpack.c.b16 %v1362, %v1358
        %v1639 = vpack.c.b16 %v1363, %v1359
        %v1640 = vpack.c.b16 %v1364, %v1360
        %v1641 = vpack.c.b16 %v1369, %v1365
        %v1642 = vpack.c.b16 %v1370, %v1366
        %v1643 = vpack.c.b16 %v1371, %v1367
        %v1644 = vpack.c.b16 %v1372, %v1368
        %v1645 = vpack.c.b16 %v1377, %v1373
        %v1646 = vpack.c.b16 %v1378, %v1374
        %v1647 = vpack.c.b16 %v1379, %v1375
        %v1648 = vpack.c.b16 %v1380, %v1376
        %v1649 = vpack.c.b16 %v1385, %v1381
        %v1650 = vpack.c.b16 %v1386, %v1382
        %v1651 = vpack.c.b16 %v1387, %v1383
        %v1652 = vpack.c.b16 %v1388, %v1384
        %v1653 = vpack.c.b16 %v1393, %v1389
        %v1654 = vpack.c.b16 %v1394, %v1390
        %v1655 = vpack.c.b16 %v1395, %v1391
        %v1656 = vpack.c.b16 %v1396, %v1392
        %v1657 = vpack.c.b16 %v1401, %v1397
        %v1658 = vpack.c.b16 %v1402, %v1398
        %v1659 = vpack.c.b16 %v1403, %v1399
        %v1660 = vpack.c.b16 %v1404, %v1400
        %1917 = vmatprep.subr.bf16.mxu0 %v1406
        %1918 = vmatpush1.bf16.msra.mxu0 %v1405
        %1919 = vmatprep.subr.bf16.mxu0 %v1410
        %1920 = vmatpush1.bf16.msra.mxu0 %v1409
        %1921 = vmatprep.subr.bf16.mxu0 %v1414
        %1922 = vmatpush1.bf16.msra.mxu0 %v1413
        %1923 = vmatprep.subr.bf16.mxu0 %v1418
        %1924 = vmatpush1.bf16.msra.mxu0 %v1417
        %1925 = vmatprep.subr.bf16.mxu0 %v1422
        %1926 = vmatpush1.bf16.msra.mxu0 %v1421
        %1927 = vmatprep.subr.bf16.mxu0 %v1426
        %1928 = vmatpush1.bf16.msra.mxu0 %v1425
        %1929 = vmatprep.subr.bf16.mxu0 %v1430
        %1930 = vmatpush1.bf16.msra.mxu0 %v1429
        %1931 = vmatprep.subr.bf16.mxu0 %v1434
        %1932 = vmatpush1.bf16.msra.mxu0 %v1433
        %1933 = vmatprep.subr.bf16.mxu0 %v1438
        %1934 = vmatpush1.bf16.msra.mxu0 %v1437
        %1935 = vmatprep.subr.bf16.mxu0 %v1442
        %1936 = vmatpush1.bf16.msra.mxu0 %v1441
        %1937 = vmatprep.subr.bf16.mxu0 %v1446
        %1938 = vmatpush1.bf16.msra.mxu0 %v1445
        %1939 = vmatprep.subr.bf16.mxu0 %v1450
        %1940 = vmatpush1.bf16.msra.mxu0 %v1449
        %1941 = vmatprep.subr.bf16.mxu0 %v1454
        %1942 = vmatpush1.bf16.msra.mxu0 %v1453
        %1943 = vmatprep.subr.bf16.mxu0 %v1458
        %1944 = vmatpush1.bf16.msra.mxu0 %v1457
        %1945 = vmatprep.subr.bf16.mxu0 %v1462
        %1946 = vmatpush1.bf16.msra.mxu0 %v1461
        %1947 = vmatprep.subr.bf16.mxu0 %v1466
        %1948 = vmatpush1.bf16.msra.mxu0 %v1465
        %1949 = vmatprep.mubr.bf16.mxu0 %v617
        %1950 = vmatmul.mubr.bf16.gmra.mrb[0].mxu0 %v603
        %v1951 = vpop.f32.mrb[0].mxu0
        %v1952 = vadd.f32 %v562, %v1951
        %v1953 = vpop.f32.mrb[0].mxu0
        %v1954 = vadd.f32 %v566, %v1953
        %v1955 = vpop.f32.mrb[0].mxu0
        %v1956 = vpop.f32.mrb[0].mxu0
        %1957 = vdwg.mxu0
        %1958 = vmatprep.subr.bf16.mxu0 %v1470
        %1959 = vmatpush1.bf16.msra.mxu0 %v1469
        %1960 = vmatprep.subr.bf16.mxu0 %v1474
        %1961 = vmatpush1.bf16.msra.mxu0 %v1473
        %1962 = vmatprep.subr.bf16.mxu0 %v1478
        %1963 = vmatpush1.bf16.msra.mxu0 %v1477
        %1964 = vmatprep.subr.bf16.mxu0 %v1482
        %1965 = vmatpush1.bf16.msra.mxu0 %v1481
        %1966 = vmatprep.subr.bf16.mxu0 %v1486
        %1967 = vmatpush1.bf16.msra.mxu0 %v1485
        %1968 = vmatprep.subr.bf16.mxu0 %v1490
        %1969 = vmatpush1.bf16.msra.mxu0 %v1489
        %1970 = vmatprep.subr.bf16.mxu0 %v1494
        %1971 = vmatpush1.bf16.msra.mxu0 %v1493
        %1972 = vmatprep.subr.bf16.mxu0 %v1498
        %1973 = vmatpush1.bf16.msra.mxu0 %v1497
        %1974 = vmatprep.subr.bf16.mxu0 %v1502
        %1975 = vmatpush1.bf16.msra.mxu0 %v1501
        %1976 = vmatprep.subr.bf16.mxu0 %v1506
        %1977 = vmatpush1.bf16.msra.mxu0 %v1505
        %1978 = vmatprep.subr.bf16.mxu0 %v1510
        %1979 = vmatpush1.bf16.msra.mxu0 %v1509
        %1980 = vmatprep.subr.bf16.mxu0 %v1514
        %1981 = vmatpush1.bf16.msra.mxu0 %v1513
        %1982 = vmatprep.subr.bf16.mxu0 %v1518
        %1983 = vmatpush1.bf16.msra.mxu0 %v1517
        %1984 = vmatprep.subr.bf16.mxu0 %v1522
        %1985 = vmatpush1.bf16.msra.mxu0 %v1521
        %1986 = vmatprep.subr.bf16.mxu0 %v1526
        %1987 = vmatpush1.bf16.msra.mxu0 %v1525
        %1988 = vmatprep.subr.bf16.mxu0 %v1530
        %1989 = vmatpush1.bf16.msra.mxu0 %v1529
        %1990 = vmatprep.mubr.bf16.mxu0 %v627
        %1991 = vmatmul.mubr.bf16.gmra.mrb[0].mxu0 %v625
        %v1992 = vpop.f32.mrb[0].mxu0
        %v1993 = vadd.f32 %v1952, %v1992
        %v1994 = vpop.f32.mrb[0].mxu0
        %v1995 = vadd.f32 %v1954, %v1994
        %v1996 = vpop.f32.mrb[0].mxu0
        %v1997 = vpop.f32.mrb[0].mxu0
        %1998 = vdwg.mxu0
        %1999 = vmatprep.subr.bf16.mxu0 %v1534
        %2000 = vmatpush1.bf16.msra.mxu0 %v1533
        %2001 = vmatprep.subr.bf16.mxu0 %v1538
        %2002 = vmatpush1.bf16.msra.mxu0 %v1537
        %2003 = vmatprep.subr.bf16.mxu0 %v1542
        %2004 = vmatpush1.bf16.msra.mxu0 %v1541
        %2005 = vmatprep.subr.bf16.mxu0 %v1546
        %2006 = vmatpush1.bf16.msra.mxu0 %v1545
        %2007 = vmatprep.subr.bf16.mxu0 %v1550
        %2008 = vmatpush1.bf16.msra.mxu0 %v1549
        %2009 = vmatprep.subr.bf16.mxu0 %v1554
        %2010 = vmatpush1.bf16.msra.mxu0 %v1553
        %2011 = vmatprep.subr.bf16.mxu0 %v1558
        %2012 = vmatpush1.bf16.msra.mxu0 %v1557
        %2013 = vmatprep.subr.bf16.mxu0 %v1562
        %2014 = vmatpush1.bf16.msra.mxu0 %v1561
        %2015 = vmatprep.subr.bf16.mxu0 %v1566
        %2016 = vmatpush1.bf16.msra.mxu0 %v1565
        %2017 = vmatprep.subr.bf16.mxu0 %v1570
        %2018 = vmatpush1.bf16.msra.mxu0 %v1569
        %2019 = vmatprep.subr.bf16.mxu0 %v1574
        %2020 = vmatpush1.bf16.msra.mxu0 %v1573
        %2021 = vmatprep.subr.bf16.mxu0 %v1578
        %2022 = vmatpush1.bf16.msra.mxu0 %v1577
        %2023 = vmatprep.subr.bf16.mxu0 %v1582
        %2024 = vmatpush1.bf16.msra.mxu0 %v1581
        %2025 = vmatprep.subr.bf16.mxu0 %v1586
        %2026 = vmatpush1.bf16.msra.mxu0 %v1585
        %2027 = vmatprep.subr.bf16.mxu0 %v1590
        %2028 = vmatpush1.bf16.msra.mxu0 %v1589
        %2029 = vmatprep.subr.bf16.mxu0 %v1594
        %2030 = vmatpush1.bf16.msra.mxu0 %v1593
        %2031 = vmatprep.mubr.bf16.mxu0 %v624
        %2032 = vmatmul.mubr.bf16.gmra.mrb[0].mxu0 %v610
        %v2033 = vpop.f32.mrb[0].mxu0
        %v2034 = vadd.f32 %v1993, %v2033
        %v2035 = vpop.f32.mrb[0].mxu0
        %v2036 = vadd.f32 %v1995, %v2035
        %v2037 = vpop.f32.mrb[0].mxu0
        %v2038 = vpop.f32.mrb[0].mxu0
        %2039 = vdwg.mxu0
        %2040 = vmatprep.subr.bf16.mxu0 %v1598
        %2041 = vmatpush1.bf16.msra.mxu0 %v1597
        %2042 = vmatprep.subr.bf16.mxu0 %v1602
        %2043 = vmatpush1.bf16.msra.mxu0 %v1601
        %2044 = vmatprep.subr.bf16.mxu0 %v1606
        %2045 = vmatpush1.bf16.msra.mxu0 %v1605
        %2046 = vmatprep.subr.bf16.mxu0 %v1610
        %2047 = vmatpush1.bf16.msra.mxu0 %v1609
        %2048 = vmatprep.subr.bf16.mxu0 %v1614
        %2049 = vmatpush1.bf16.msra.mxu0 %v1613
        %2050 = vmatprep.subr.bf16.mxu0 %v1618
        %2051 = vmatpush1.bf16.msra.mxu0 %v1617
        %2052 = vmatprep.subr.bf16.mxu0 %v1622
        %2053 = vmatpush1.bf16.msra.mxu0 %v1621
        %2054 = vmatprep.subr.bf16.mxu0 %v1626
        %2055 = vmatpush1.bf16.msra.mxu0 %v1625
        %2056 = vmatprep.subr.bf16.mxu0 %v1630
        %2057 = vmatpush1.bf16.msra.mxu0 %v1629
        %2058 = vmatprep.subr.bf16.mxu0 %v1634
        %2059 = vmatpush1.bf16.msra.mxu0 %v1633
        %2060 = vmatprep.subr.bf16.mxu0 %v1638
        %2061 = vmatpush1.bf16.msra.mxu0 %v1637
        %2062 = vmatprep.subr.bf16.mxu0 %v1642
        %2063 = vmatpush1.bf16.msra.mxu0 %v1641
        %2064 = vmatprep.subr.bf16.mxu0 %v1646
        %2065 = vmatpush1.bf16.msra.mxu0 %v1645
        %2066 = vmatprep.subr.bf16.mxu0 %v1650
        %2067 = vmatpush1.bf16.msra.mxu0 %v1649
        %2068 = vmatprep.subr.bf16.mxu0 %v1654
        %2069 = vmatpush1.bf16.msra.mxu0 %v1653
        %2070 = vmatprep.subr.bf16.mxu0 %v1658
        %2071 = vmatpush1.bf16.msra.mxu0 %v1657
        %2072 = vmatprep.mubr.bf16.mxu0 %v628
        %2073 = vmatmul.mubr.bf16.gmra.mrb[0].mxu0 %v626
        %v2074 = vpop.f32.mrb[0].mxu0
        %v2075 = vadd.f32 %v2034, %v2074
        %v2076 = vpop.f32.mrb[0].mxu0
        %v2077 = vadd.f32 %v2036, %v2076
        %v2078 = vpop.f32.mrb[0].mxu0
        %v2079 = vpop.f32.mrb[0].mxu0
        %2080 = vdwg.mxu0
        %2081 = vmatprep.subr.bf16.mxu0 %v1408
        %2082 = vmatpush1.bf16.msra.mxu0 %v1407
        %2083 = vmatprep.subr.bf16.mxu0 %v1412
        %2084 = vmatpush1.bf16.msra.mxu0 %v1411
        %2085 = vmatprep.subr.bf16.mxu0 %v1416
        %2086 = vmatpush1.bf16.msra.mxu0 %v1415
        %2087 = vmatprep.subr.bf16.mxu0 %v1420
        %2088 = vmatpush1.bf16.msra.mxu0 %v1419
        %2089 = vmatprep.subr.bf16.mxu0 %v1424
        %2090 = vmatpush1.bf16.msra.mxu0 %v1423
        %2091 = vmatprep.subr.bf16.mxu0 %v1428
        %2092 = vmatpush1.bf16.msra.mxu0 %v1427
        %2093 = vmatprep.subr.bf16.mxu0 %v1432
        %2094 = vmatpush1.bf16.msra.mxu0 %v1431
        %2095 = vmatprep.subr.bf16.mxu0 %v1436
        %2096 = vmatpush1.bf16.msra.mxu0 %v1435
        %2097 = vmatprep.subr.bf16.mxu0 %v1440
        %2098 = vmatpush1.bf16.msra.mxu0 %v1439
        %2099 = vmatprep.subr.bf16.mxu0 %v1444
        %2100 = vmatpush1.bf16.msra.mxu0 %v1443
        %2101 = vmatprep.subr.bf16.mxu0 %v1448
        %2102 = vmatpush1.bf16.msra.mxu0 %v1447
        %2103 = vmatprep.subr.bf16.mxu0 %v1452
        %2104 = vmatpush1.bf16.msra.mxu0 %v1451
        %2105 = vmatprep.subr.bf16.mxu0 %v1456
        %2106 = vmatpush1.bf16.msra.mxu0 %v1455
        %2107 = vmatprep.subr.bf16.mxu0 %v1460
        %2108 = vmatpush1.bf16.msra.mxu0 %v1459
        %2109 = vmatprep.subr.bf16.mxu0 %v1464
        %2110 = vmatpush1.bf16.msra.mxu0 %v1463
        %2111 = vmatprep.subr.bf16.mxu0 %v1468
        %2112 = vmatpush1.bf16.msra.mxu0 %v1467
        %2113 = vmatprep.mubr.bf16.mxu0 %v617
        %2114 = vmatmul.mubr.bf16.gmra.mrb[0].mxu0 %v603
        %v2115 = vpop.f32.mrb[0].mxu0
        %v2116 = vadd.f32 %v570, %v2115
        %v2117 = vpop.f32.mrb[0].mxu0
        %v2118 = vadd.f32 %v574, %v2117
        %v2119 = vpop.f32.mrb[0].mxu0
        %v2120 = vpop.f32.mrb[0].mxu0
        %2121 = vdwg.mxu0
        %2122 = vmatprep.subr.bf16.mxu0 %v1472
        %2123 = vmatpush1.bf16.msra.mxu0 %v1471
        %2124 = vmatprep.subr.bf16.mxu0 %v1476
        %2125 = vmatpush1.bf16.msra.mxu0 %v1475
        %2126 = vmatprep.subr.bf16.mxu0 %v1480
        %2127 = vmatpush1.bf16.msra.mxu0 %v1479
        %2128 = vmatprep.subr.bf16.mxu0 %v1484
        %2129 = vmatpush1.bf16.msra.mxu0 %v1483
        %2130 = vmatprep.subr.bf16.mxu0 %v1488
        %2131 = vmatpush1.bf16.msra.mxu0 %v1487
        %2132 = vmatprep.subr.bf16.mxu0 %v1492
        %2133 = vmatpush1.bf16.msra.mxu0 %v1491
        %2134 = vmatprep.subr.bf16.mxu0 %v1496
        %2135 = vmatpush1.bf16.msra.mxu0 %v1495
        %2136 = vmatprep.subr.bf16.mxu0 %v1500
        %2137 = vmatpush1.bf16.msra.mxu0 %v1499
        %2138 = vmatprep.subr.bf16.mxu0 %v1504
        %2139 = vmatpush1.bf16.msra.mxu0 %v1503
        %2140 = vmatprep.subr.bf16.mxu0 %v1508
        %2141 = vmatpush1.bf16.msra.mxu0 %v1507
        %2142 = vmatprep.subr.bf16.mxu0 %v1512
        %2143 = vmatpush1.bf16.msra.mxu0 %v1511
        %2144 = vmatprep.subr.bf16.mxu0 %v1516
        %2145 = vmatpush1.bf16.msra.mxu0 %v1515
        %2146 = vmatprep.subr.bf16.mxu0 %v1520
        %2147 = vmatpush1.bf16.msra.mxu0 %v1519
        %2148 = vmatprep.subr.bf16.mxu0 %v1524
        %2149 = vmatpush1.bf16.msra.mxu0 %v1523
        %2150 = vmatprep.subr.bf16.mxu0 %v1528
        %2151 = vmatpush1.bf16.msra.mxu0 %v1527
        %2152 = vmatprep.subr.bf16.mxu0 %v1532
        %2153 = vmatpush1.bf16.msra.mxu0 %v1531
        %2154 = vmatprep.mubr.bf16.mxu0 %v627
        %2155 = vmatmul.mubr.bf16.gmra.mrb[0].mxu0 %v625
        %v2156 = vpop.f32.mrb[0].mxu0
        %v2157 = vadd.f32 %v2116, %v2156
        %v2158 = vpop.f32.mrb[0].mxu0
        %v2159 = vadd.f32 %v2118, %v2158
        %v2160 = vpop.f32.mrb[0].mxu0
        %v2161 = vpop.f32.mrb[0].mxu0
        %2162 = vdwg.mxu0
        %2163 = vmatprep.subr.bf16.mxu0 %v1536
        %2164 = vmatpush1.bf16.msra.mxu0 %v1535
        %2165 = vmatprep.subr.bf16.mxu0 %v1540
        %2166 = vmatpush1.bf16.msra.mxu0 %v1539
        %2167 = vmatprep.subr.bf16.mxu0 %v1544
        %2168 = vmatpush1.bf16.msra.mxu0 %v1543
        %2169 = vmatprep.subr.bf16.mxu0 %v1548
        %2170 = vmatpush1.bf16.msra.mxu0 %v1547
        %2171 = vmatprep.subr.bf16.mxu0 %v1552
        %2172 = vmatpush1.bf16.msra.mxu0 %v1551
        %2173 = vmatprep.subr.bf16.mxu0 %v1556
        %2174 = vmatpush1.bf16.msra.mxu0 %v1555
        %2175 = vmatprep.subr.bf16.mxu0 %v1560
        %2176 = vmatpush1.bf16.msra.mxu0 %v1559
        %2177 = vmatprep.subr.bf16.mxu0 %v1564
        %2178 = vmatpush1.bf16.msra.mxu0 %v1563
        %2179 = vmatprep.subr.bf16.mxu0 %v1568
        %2180 = vmatpush1.bf16.msra.mxu0 %v1567
        %2181 = vmatprep.subr.bf16.mxu0 %v1572
        %2182 = vmatpush1.bf16.msra.mxu0 %v1571
        %2183 = vmatprep.subr.bf16.mxu0 %v1576
        %2184 = vmatpush1.bf16.msra.mxu0 %v1575
        %2185 = vmatprep.subr.bf16.mxu0 %v1580
        %2186 = vmatpush1.bf16.msra.mxu0 %v1579
        %2187 = vmatprep.subr.bf16.mxu0 %v1584
        %2188 = vmatpush1.bf16.msra.mxu0 %v1583
        %2189 = vmatprep.subr.bf16.mxu0 %v1588
        %2190 = vmatpush1.bf16.msra.mxu0 %v1587
        %2191 = vmatprep.subr.bf16.mxu0 %v1592
        %2192 = vmatpush1.bf16.msra.mxu0 %v1591
        %2193 = vmatprep.subr.bf16.mxu0 %v1596
        %2194 = vmatpush1.bf16.msra.mxu0 %v1595
        %2195 = vmatprep.mubr.bf16.mxu0 %v624
        %2196 = vmatmul.mubr.bf16.gmra.mrb[0].mxu0 %v610
        %v2197 = vpop.f32.mrb[0].mxu0
        %v2198 = vadd.f32 %v2157, %v2197
        %v2199 = vpop.f32.mrb[0].mxu0
        %v2200 = vadd.f32 %v2159, %v2199
        %v2201 = vpop.f32.mrb[0].mxu0
        %v2202 = vpop.f32.mrb[0].mxu0
        %2203 = vdwg.mxu0
        %2204 = vmatprep.subr.bf16.mxu0 %v1600
        %2205 = vmatpush1.bf16.msra.mxu0 %v1599
        %2206 = vmatprep.subr.bf16.mxu0 %v1604
        %2207 = vmatpush1.bf16.msra.mxu0 %v1603
        %2208 = vmatprep.subr.bf16.mxu0 %v1608
        %2209 = vmatpush1.bf16.msra.mxu0 %v1607
        %2210 = vmatprep.subr.bf16.mxu0 %v1612
        %2211 = vmatpush1.bf16.msra.mxu0 %v1611
        %2212 = vmatprep.subr.bf16.mxu0 %v1616
        %2213 = vmatpush1.bf16.msra.mxu0 %v1615
        %2214 = vmatprep.subr.bf16.mxu0 %v1620
        %2215 = vmatpush1.bf16.msra.mxu0 %v1619
        %2216 = vmatprep.subr.bf16.mxu0 %v1624
        %2217 = vmatpush1.bf16.msra.mxu0 %v1623
        %2218 = vmatprep.subr.bf16.mxu0 %v1628
        %2219 = vmatpush1.bf16.msra.mxu0 %v1627
        %2220 = vmatprep.subr.bf16.mxu0 %v1632
        %2221 = vmatpush1.bf16.msra.mxu0 %v1631
        %2222 = vmatprep.subr.bf16.mxu0 %v1636
        %2223 = vmatpush1.bf16.msra.mxu0 %v1635
        %2224 = vmatprep.subr.bf16.mxu0 %v1640
        %2225 = vmatpush1.bf16.msra.mxu0 %v1639
        %2226 = vmatprep.subr.bf16.mxu0 %v1644
        %2227 = vmatpush1.bf16.msra.mxu0 %v1643
        %2228 = vmatprep.subr.bf16.mxu0 %v1648
        %2229 = vmatpush1.bf16.msra.mxu0 %v1647
        %2230 = vmatprep.subr.bf16.mxu0 %v1652
        %2231 = vmatpush1.bf16.msra.mxu0 %v1651
        %2232 = vmatprep.subr.bf16.mxu0 %v1656
        %2233 = vmatpush1.bf16.msra.mxu0 %v1655
        %2234 = vmatprep.subr.bf16.mxu0 %v1660
        %2235 = vmatpush1.bf16.msra.mxu0 %v1659
        %2236 = vmatprep.mubr.bf16.mxu0 %v628
        %2237 = vmatmul.mubr.bf16.gmra.mrb[0].mxu0 %v626
        %v2238 = vpop.f32.mrb[0].mxu0
        %v2239 = vadd.f32 %v2198, %v2238
        %v2240 = vpop.f32.mrb[0].mxu0
        %v2241 = vadd.f32 %v2200, %v2240
        %v2242 = vpop.f32.mrb[0].mxu0
        %v2243 = vpop.f32.mrb[0].mxu0
        %2244 = vdwg.mxu0
        %vm2245 = vcmp.gt.f32.partialorder %v2075, 0.0
        %vm2246 = vcmp.gt.f32.partialorder %v2077, 0.0
        %vm2247 = vcmp.gt.f32.partialorder %v2239, 0.0
        %vm2248 = vcmp.gt.f32.partialorder %v2241, 0.0
        %v2249 = vmul.f32 %v2075, 0.01
        %v2250 = vmul.f32 %v2077, 0.01
        %v2251 = vmul.f32 %v2239, 0.01
        %v2252 = vmul.f32 %v2241, 0.01
        %v2253 = vsel %vm2245, %v2075, %v2249
        %v2254 = vsel %vm2246, %v2077, %v2250
        %v2255 = vsel %vm2247, %v2239, %v2251
        %v2256 = vsel %vm2248, %v2241, %v2252
        %v2257 = vpack.c.bf16 %v2253, %v2253
        %v2258 = vpack.c.bf16 %v2254, %v2254
        %v2259 = vpack.c.bf16 %v2255, %v2255
        %v2260 = vpack.c.bf16 %v2256, %v2256
        %v2265 = vcombine.low %v2257, %v2258
        %v2266 = vcombine.low %v2259, %v2260
        %v2268 = vunpack.c.l.s4 1966171168
        %v2269 = vunpack.c.0.s8 %v2268
        %v2270 = vlaneseq
        %v2271 = vshrl.u32 %v2270, 7
        %v2272 = vsub.s32 %v2269, %v2271
        %v2273 = vrot.slane %v2265, %v2272
        %v2275 = vunpack.c.l.s4 1966171168
        %v2276 = vunpack.c.0.s8 %v2275
        %v2277 = vlaneseq
        %v2278 = vshrl.u32 %v2277, 7
        %v2279 = vsub.s32 %v2276, %v2278
        %v2280 = vrot.slane %v2266, %v2279
        %v2281 = vcombine.low %v2273, %v2280
        %v2283 = vunpack.c.l.s4 1966171168
        %v2284 = vunpack.c.0.s8 %v2283
        %v2285 = vlaneseq
        %v2286 = vshrl.u32 %v2285, 7
        %v2287 = vsub.s32 %v2284, %v2286
        %v2288 = vrot.slane %v2281, %v2287
        %2290 = vst [vmem:[%s296] sm:$0xf] %v2288
        %s2291 = sand.u32 %s138, 1
        %s2292 = scalar_lea.sflag [#allocation4], %s2291
        %s2293 = sand.u32 %s138, 1
        %s2294 = smul.addr %s2293, 4
        %s2295 = scalar_lea.vmem [#allocation8], %s2294
        // Predicated region
        $region45: #{critic_forward.4} parent=31 // pred_check
          %p2296 = pneg %p148
        $region46: #{critic_forward.4} parent=31 // pred_check_branch
          %2298 = sbr.rel (%p2296) target = $region48
        $region47: #{critic_forward.4} parent=31 // pred_region
          %s2299 = smul.u32 4, %s30
          %s2301 = ssub.s32 64, 64
          %2302 = vsyncadd %s2292, %s2301
          %s2303 = smul.addr %s29, 4
          %s2304 = sadd.s32 %s2299, %s2303
          %s2305 = smul.addr %s28, 4
          %s2306 = sadd.s32 %s2304, %s2305
          %s2307 = smul.addr %s2306, 16
          %s2308 = scalar_lea.hbm %s3, %s2307
          %s2310 = sshll.u32 %s2295, 4
          %s2311 = int_to_ptr.vmem [resolvable:$true] %s2310
          %2313 = dma.vmem_to_hbm [thread:$0]  %s2311, 64, %s2308, %s2292
        $region48: #{critic_forward.4} parent=31 // pred_fallthru
          _
      $region32: #{critic_forward.4} parent=5 // pred_fallthru
        _
      %p2314 = scmp.le.s32.totalorder 2, %s18
      // Predicated region
      $region49: #{critic_forward.4} parent=5 // pred_check
        %p2315 = pneg %p2314
      $region50: #{critic_forward.4} parent=5 // pred_check_branch
        %2317 = sbr.rel (%p2315) target = $region52
      $region51: #{critic_forward.4} parent=5 // pred_region
        %s2318 = ssub.s32 %s18, 2
        // Predicated region
        $region53: #{critic_forward.4} parent=51 // pred_check
          %p2319 = pneg %p154
        $region54: #{critic_forward.4} parent=51 // pred_check_branch
          %2321 = sbr.rel (%p2319) target = $region56
        $region55: #{critic_forward.4} parent=51 // pred_region
          %s2322 = sand.u32 %s139, 1
          %s2323 = scalar_lea.sflag [#allocation4], %s2322
          %s2324 = sand.u32 %s139, 1
          %s2325 = smul.addr %s2324, 4
          %s2326 = scalar_lea.vmem [#allocation8], %s2325
          %2327 = dma.done %s2323, 64
        $region56: #{critic_forward.4} parent=51 // pred_fallthru
          _
      $region52: #{critic_forward.4} parent=5 // pred_fallthru
        _
    $region6: #{critic_forward.4} parent=1 // loop_footer
      %s22 = sadd.s32 1, %s18
    $region7: #{critic_forward.4} parent=1 // loop_footer_branch
      %17 = sbr.rel target = $region3
    $region8: #{critic_forward.4} parent=1 // loop_exit
      _
    %2328 = vsyncpa [#allocation3], 1
    %s2329 = scalar_lea.sflag [#allocation3], 1
    %2330 = vsyncpa %s2329, 1
    %2331 = vsyncpa [#allocation6], 1
    %s2332 = scalar_lea.sflag [#allocation6], 1
    %2333 = vsyncpa %s2332, 1
    %2334 = vsyncpa [#allocation4], 1
    %s2335 = scalar_lea.sflag [#allocation4], 1
    %2336 = vsyncpa %s2335, 1

</llo_original>
